<compile_context>
chip_gen: v7x
topology: tpu7x:2x2x1
jax: 0.10.0
libtpu: 0.0.40
codegen_flags: <defaults>
</compile_context>

<pallas_src>
import functools

import jax
import jax.numpy as jnp
from jax import lax
from jax.experimental import pallas as pl
from jax.experimental.pallas import tpu as pltpu


# ----------------------------- shared math helpers -----------------------------
def _layernorm(x, g, b, eps=1e-5):
    mu = jnp.mean(x, axis=-1, keepdims=True)
    var = jnp.mean((x - mu) ** 2, axis=-1, keepdims=True)
    return (x - mu) * jax.lax.rsqrt(var + eps) * g + b


def _gru_dir(hs, mask, h0, wih, whh, bih, bhh, times, Hr):
    """Reference-only: one GRU direction, mask-gated (holds state on padded steps)."""
    h = h0
    for t in times:
        x_t = hs[:, t, :]
        gx = jnp.dot(x_t, wih, preferred_element_type=jnp.float32) + bih
        gh = jnp.dot(h, whh, preferred_element_type=jnp.float32) + bhh
        r = jax.nn.sigmoid(gx[:, 0 * Hr:1 * Hr] + gh[:, 0 * Hr:1 * Hr])
        z = jax.nn.sigmoid(gx[:, 1 * Hr:2 * Hr] + gh[:, 1 * Hr:2 * Hr])
        n = jnp.tanh(gx[:, 2 * Hr:3 * Hr] + r * gh[:, 2 * Hr:3 * Hr])
        h_new = (1.0 - z) * n + z * h
        m = mask[:, t:t + 1]
        h = m * h_new + (1.0 - m) * h
    return h


# ----------------------------- the Pallas kernel -----------------------------
def causal_head_kernel(hs_ref, len_ref,
                       wih_ref, whh_ref, bhh_ref, bin_ref,
                       ln_g_ref, ln_b_ref,
                       w1_ref, b1_ref, ln2_g_ref, ln2_b_ref,
                       w2_ref, b2_ref,
                       out_ref, gxf_ref, gxb_ref,
                       *, Tc, n_chunks, U):
    T, blk_b, H = hs_ref.shape
    Hr = gxf_ref.shape[-1] // 3          # per-direction GRU width (== H // 2)

    # ---- phase 1: hoisted input projection (both directions), written in T-chunks ----
    # Chunking bounds the live f32 matmul transient; the scratch itself is stored in
    # compute_dtype (bf16 on v6e/v7x) to halve VMEM footprint & traffic.
    wih_f = wih_ref[0]                   # [H, 3Hr]
    wih_b = wih_ref[1]

    @pl.loop(0, n_chunks)
    def _proj(c):
        t0 = pl.multiple_of(c * Tc, Tc)
        x2d = hs_ref[pl.ds(t0, Tc)].reshape(Tc * blk_b, H)
        gf = jnp.dot(x2d, wih_f, preferred_element_type=jnp.float32)
        gb = jnp.dot(x2d, wih_b, preferred_element_type=jnp.float32)
        gxf_ref[pl.ds(t0, Tc)] = gf.reshape(Tc, blk_b, 3 * Hr).astype(gxf_ref.dtype)
        gxb_ref[pl.ds(t0, Tc)] = gb.reshape(Tc, blk_b, 3 * Hr).astype(gxb_ref.dtype)

    # ---- hoisted loop invariants (broadcasts NOT replayed per step) ----
    len_i = len_ref[...]                 # [blk_b, 1] int32 valid lengths
    thr_b = T - len_i                    # bwd dir valid iff s >= T - len
    whh_f = whh_ref[0]                   # [Hr, 3Hr] (compute_dtype; bf16 shortens MXU pass)
    whh_b = whh_ref[1]
    bhh_fb = jnp.broadcast_to(bhh_ref[0].astype(jnp.float32), (blk_b, 3 * Hr))
    bhh_bb = jnp.broadcast_to(bhh_ref[1].astype(jnp.float32), (blk_b, 3 * Hr))
    bin_fb = jnp.broadcast_to(bin_ref[0].astype(jnp.float32), (blk_b, Hr))
    bin_bb = jnp.broadcast_to(bin_ref[1].astype(jnp.float32), (blk_b, Hr))

    def gru_step(gx_t, h, whh, bhh2, bin2):
        # PyTorch GRU: n = tanh(Wx_n + b_in + r * (Wh_n h + b_hn)); b_ir/b_iz are folded
        # into bhh2 (exact), b_in stays outside the r*(...) term as bin2.
        gh = jnp.dot(h.astype(whh.dtype), whh, preferred_element_type=jnp.float32) + bhh2
        g = gx_t.astype(jnp.float32)
        r = jax.nn.sigmoid(g[:, 0:Hr] + gh[:, 0:Hr])
        z = jax.nn.sigmoid(g[:, Hr:2 * Hr] + gh[:, Hr:2 * Hr])
        n = jnp.tanh(g[:, 2 * Hr:3 * Hr] + bin2 + r * gh[:, 2 * Hr:3 * Hr])
        return n + z * (h - n)           # == (1-z)*n + z*h

    # Two independent chains (fwd at t=s, bwd at t=T-1-s): the scheduler interleaves their
    # MXU/EUP/VPU ops, hiding the serial per-step latency of each chain.
    def step_block(i, carry):
        h_f, h_b = carry
        s0 = i * U
        for u in range(U):               # small static unroll (LLO visibility)
            s = s0 + u
            hf_new = gru_step(gxf_ref[s], h_f, whh_f, bhh_fb, bin_fb)
            hb_new = gru_step(gxb_ref[T - 1 - s], h_b, whh_b, bhh_bb, bin_bb)
            h_f = jnp.where(s < len_i, hf_new, h_f)
            h_b = jnp.where(s >= thr_b, hb_new, h_b)
        return h_f, h_b

    h0 = jnp.zeros((blk_b, Hr), jnp.float32)
    h_f, h_b = lax.fori_loop(0, T // U, step_block, (h0, h0))

    # ---- pooled-embedding norm + classifier: Linear -> LayerNorm -> ReLU -> Linear ----
    # Padded batch rows have length 0 -> h stays 0 -> LayerNorm gives ln_b (no NaN);
    # those rows are sliced off in the wrapper.
    h = jnp.concatenate([h_f, h_b], axis=-1)              # [blk_b, H] = [h_fwd | h_bwd]
    x = _layernorm(h, ln_g_ref[...], ln_b_ref[...])
    h1 = jnp.dot(x, w1_ref[...], preferred_element_type=jnp.float32) + b1_ref[...]
    h1 = _layernorm(h1, ln2_g_ref[...], ln2_b_ref[...])
    h1 = jnp.maximum(h1, 0.0)
    # TODO(synk): Dropout(0.1) treated as eval-mode identity (inference semantics).
    # NOTE: (tile_b, 1) output lowers to a masked store; bytes are tiny, accepted.
    out_ref[...] = jnp.dot(h1, w2_ref[...], preferred_element_type=jnp.float32) + b2_ref[...]


# ----------------------------- wrapper helpers -----------------------------
def _prepare_gru_params(p, Hr, compute_dtype):
    """Stack fwd/bwd weights; exactly fold r/z input biases into the hidden bias."""
    wih = jnp.stack([p['wih_f'], p['wih_b']]).astype(compute_dtype)   # [2, H, 3Hr]
    whh = jnp.stack([p['whh_f'], p['whh_b']]).astype(compute_dtype)   # [2, Hr, 3Hr]

    def fold(bih, bhh):   # b_ir/b_iz commute into b_hr/b_hz; b_in must stay separate.
        return jnp.concatenate([bhh[:, :2 * Hr] + bih[:, :2 * Hr], bhh[:, 2 * Hr:]], axis=1)

    bhh = jnp.stack([fold(p['bih_f'], p['bhh_f']),
                     fold(p['bih_b'], p['bhh_b'])])                   # [2, 1, 3Hr] f32
    bin_ = jnp.stack([p['bih_f'][:, 2 * Hr:], p['bih_b'][:, 2 * Hr:]])  # [2, 1, Hr] f32
    return wih, whh, bhh, bin_


def _tpu_vmem_capacity_bytes():
    """Physical VMEM per core (64 MiB v7x, 128 MiB v5e/v6e); conservative fallback."""
    try:
        info = pltpu.get_tpu_info()
        cap = getattr(info, "vmem_capacity_bytes", None)
        if cap:
            return int(cap)
    except Exception:
        pass
    return 64 * 1024 * 1024


def _choose_tiles(B, per_row_bytes, fixed_bytes, budget_bytes):
    """Largest multiple-of-8 batch tile that fits VMEM; >=2 tiles whenever B > 8 so the
    'parallel' grid axis can feed both TensorCores on v7x."""
    rup = lambda x, m: ((x + m - 1) // m) * m
    Bp8 = rup(max(B, 1), 8)
    avail = budget_bytes - fixed_bytes
    cap = max(8, (avail // max(per_row_bytes, 1)) // 8 * 8) if avail > 0 else 8
    if Bp8 <= 8:
        tile_b = 8
    else:
        half = rup((Bp8 + 1) // 2, 8)
        tile_b = max(8, min(cap, half))
    Bp = rup(Bp8, tile_b)
    # TODO(synk): if even tile_b=8 does not fit (very long T*H), stream T from both ends
    # (two-ended chunked gx) so VMEM becomes independent of T.
    return Bp, tile_b, Bp // tile_b


def _choose_tc(T, tile_b, row_budget=512):
    """Largest divisor of T with Tc*tile_b <= row_budget (bounds phase-1 transient)."""
    tc = 1
    for c in range(1, T + 1):
        if T % c == 0 and c * tile_b <= row_budget:
            tc = c
    return tc


# ----------------------------- wrapper -----------------------------
@functools.partial(jax.jit, static_argnames=("compute_dtype",))
def causal_finetune_head(hidden_states, attention_mask, params, compute_dtype=jnp.float32):
    """hidden_states [B,T,H] f32, attention_mask [B,T] (contiguous right-padding) -> [B,1] f32.

    compute_dtype=jnp.bfloat16 halves hs / gx / GRU-weight VMEM+HBM traffic (recommended on
    v6e/v7x); gate math, accumulation and the classifier stay f32.
    """
    B, T, H = hidden_states.shape
    Hr = H // 2
    cdt = jnp.dtype(compute_dtype)
    hs_isz = cdt.itemsize
    gx_isz = cdt.itemsize

    wih, whh, bhh, bin_ = _prepare_gru_params(params, Hr, compute_dtype)
    weights = [wih, whh, bhh, bin_,
               params['ln_g'], params['ln_b'],
               params['w1'], params['b1'], params['ln2_g'], params['ln2_b'],
               params['w2'], params['b2']]
    weight_bytes = sum(int(w.size) * w.dtype.itemsize for w in weights)

    # Per-generation VMEM plan: ~52 MiB usable on v7x, ~105 MiB on v5e/v6e.
    vmem_cap = _tpu_vmem_capacity_bytes()
    vmem_limit = int(vmem_cap * 0.82)
    budget = max(vmem_limit - (8 << 20), 4 << 20)      # headroom: Mosaic + phase-1 transient

    # Per batch row: hs tile (double-buffered) + two gx scratches (3Hr cols each).
    per_row = T * H * (2 * hs_isz + 3 * gx_isz)
    # TODO(synk): weights are double-buffered by default; pipeline_mode=pl.Buffered(1)
    # would halve this once single-buffered constant blocks are verified on this toolchain.
    fixed = 2 * weight_bytes + (256 << 10)
    Bp, tile_b, nb = _choose_tiles(B, per_row, fixed, budget)

    Tc = _choose_tc(T, tile_b)
    n_chunks = T // Tc
    U = next(u for u in (8, 4, 2, 1) if T % u == 0)

    # TODO(synk): this transpose+pad+cast is a full HBM round trip of hidden_states;
    # removing it needs either a time-major producer or a manual strided-DMA path
    # (memory_space=pl.ANY) inside the kernel.
    hsT = jnp.transpose(hidden_states, (1, 0, 2)).astype(compute_dtype)
    hsT = jnp.pad(hsT, ((0, 0), (0, Bp - B), (0, 0)))
    # NOTE: lengths = sum(mask) matches pack_padded_sequence only for contiguous
    # right-padded masks (same assumption as the PyTorch module's usage).
    lengths = jnp.sum(attention_mask.astype(jnp.float32), axis=1)
    lengths = (jnp.pad(lengths, (0, Bp - B)) + 0.5).astype(jnp.int32).reshape(Bp, 1)

    def const_spec(x):
        nd = x.ndim
        return pl.BlockSpec(x.shape, lambda b, _nd=nd: (0,) * _nd)   # resident across grid

    flops = (4 * T * Bp * H * 3 * Hr            # input projection, both directions
             + 4 * T * Bp * Hr * 3 * Hr         # recurrent matmuls (no zero blocks)
             + 2 * Bp * (H * (H // 2) + (H // 2)))
    bytes_accessed = (hsT.size * hsT.dtype.itemsize + lengths.size * 4
                      + weight_bytes + Bp * 4)

    kernel = functools.partial(causal_head_kernel, Tc=Tc, n_chunks=n_chunks, U=U)
    out = pl.pallas_call(
        kernel,
        out_shape=jax.ShapeDtypeStruct((Bp, 1), jnp.float32),
        grid_spec=pltpu.PrefetchScalarGridSpec(
            num_scalar_prefetch=0,
            grid=(nb,),
            in_specs=[pl.BlockSpec((T, tile_b, H), lambda b: (0, b, 0)),   # hs tile
                      pl.BlockSpec((tile_b, 1), lambda b: (b, 0))]         # lengths tile
                     + [const_spec(w) for w in weights],
            out_specs=pl.BlockSpec((tile_b, 1), lambda b: (b, 0)),
            scratch_shapes=[pltpu.VMEM((T, tile_b, 3 * Hr), compute_dtype),  # gx fwd
                            pltpu.VMEM((T, tile_b, 3 * Hr), compute_dtype)], # gx bwd
        ),
        compiler_params=pltpu.CompilerParams(
            dimension_semantics=("parallel",),       # batch tiles across TCs (v7x 2x)
            vmem_limit_bytes=vmem_limit),
        cost_estimate=pl.CostEstimate(
            flops=flops,
            transcendentals=6 * T * Bp * Hr,
            bytes_accessed=bytes_accessed),
    )(hsT, lengths, *weights)
    return out[:B]


# ----------------------------- params / reference -----------------------------
def init_params(key, H):
    """Deterministic synthetic init matching PyTorch shapes (with_exposure=False)."""
    Hr = H // 2
    ks = jax.random.split(key, 12)
    u = lambda k, shape, bound: jax.random.uniform(k, shape, jnp.float32, -bound, bound)
    gb = 1.0 / (Hr ** 0.5)
    p = {
        'wih_f': u(ks[0], (H, 3 * Hr), gb),  'whh_f': u(ks[1], (Hr, 3 * Hr), gb),
        'bih_f': u(ks[2], (1, 3 * Hr), gb),  'bhh_f': u(ks[3], (1, 3 * Hr), gb),
        'wih_b': u(ks[4], (H, 3 * Hr), gb),  'whh_b': u(ks[5], (Hr, 3 * Hr), gb),
        'bih_b': u(ks[6], (1, 3 * Hr), gb),  'bhh_b': u(ks[7], (1, 3 * Hr), gb),
        'ln_g': jnp.ones((1, H), jnp.float32), 'ln_b': jnp.zeros((1, H), jnp.float32),
    }
    b1 = 1.0 / (H ** 0.5)
    p['w1'] = u(ks[8], (H, H // 2), b1)
    p['b1'] = u(ks[9], (1, H // 2), b1)
    p['ln2_g'] = jnp.ones((1, H // 2), jnp.float32)
    p['ln2_b'] = jnp.zeros((1, H // 2), jnp.float32)
    b2 = 1.0 / ((H // 2) ** 0.5)
    p['w2'] = u(ks[10], (H // 2, 1), b2)
    p['b2'] = u(ks[11], (1, 1), b2)
    return p


def reference(hs, mask, p):
    """Pure-JAX reference with identical semantics (per-direction, mask-gated)."""
    B, T, H = hs.shape
    Hr = H // 2
    h0 = jnp.zeros((B, Hr), jnp.float32)
    h_fwd = _gru_dir(hs, mask, h0, p['wih_f'], p['whh_f'], p['bih_f'], p['bhh_f'],
                     range(T), Hr)
    h_bwd = _gru_dir(hs, mask, h0, p['wih_b'], p['whh_b'], p['bih_b'], p['bhh_b'],
                     range(T - 1, -1, -1), Hr)
    x = _layernorm(jnp.concatenate([h_fwd, h_bwd], axis=-1), p['ln_g'], p['ln_b'])
    h1 = jnp.maximum(_layernorm(x @ p['w1'] + p['b1'], p['ln2_g'], p['ln2_b']), 0.0)
    return h1 @ p['w2'] + p['b2']


# ----------------------------- main -----------------------------
if __name__ == "__main__":
    B, T, H = 2, 8, 32                       # batch=2, seq=8, hidden=32
    key = jax.random.PRNGKey(0)
    k_hs, k_p = jax.random.split(key)

    hidden_states = jax.random.normal(k_hs, (B, T, H), jnp.float32)
    lengths = jnp.array([8, 5], jnp.int32)   # variable-length, right-padded
    attention_mask = (jnp.arange(T)[None, :] < lengths[:, None]).astype(jnp.float32)

    params = init_params(k_p, H)
    ref = reference(hidden_states, attention_mask, params)

    # f32 path: strict check against the pure-JAX reference.
    out = causal_finetune_head(hidden_states, attention_mask, params)
    out = jax.block_until_ready(out)
    assert out.shape == (B, 1), out.shape
    assert jnp.allclose(out, ref, atol=1e-4, rtol=1e-4), (out, ref)

    # bf16 path (recommended on v6e/v7x): exercised with a loose tolerance.
    out_bf16 = causal_finetune_head(hidden_states, attention_mask, params,
                                    compute_dtype=jnp.bfloat16)
    out_bf16 = jax.block_until_ready(out_bf16)
    assert out_bf16.shape == (B, 1), out_bf16.shape
    assert jnp.allclose(out_bf16, ref, atol=5e-2, rtol=5e-2), (out_bf16, ref)

    print("KERNEL_OK")
</pallas_src>

<mosaic_0001>
module attributes {stable_mosaic.version = 11 : i64} {
  func.func @causal_head_kernel(%arg0: i32, %arg1: memref<8x8x32xf32, #tpu.memory_space<vmem>>, %arg2: memref<8x1xi32, #tpu.memory_space<vmem>>, %arg3: memref<2x32x48xf32, #tpu.memory_space<vmem>>, %arg4: memref<2x16x48xf32, #tpu.memory_space<vmem>>, %arg5: memref<2x1x48xf32, #tpu.memory_space<vmem>>, %arg6: memref<2x1x16xf32, #tpu.memory_space<vmem>>, %arg7: memref<1x32xf32, #tpu.memory_space<vmem>>, %arg8: memref<1x32xf32, #tpu.memory_space<vmem>>, %arg9: memref<32x16xf32, #tpu.memory_space<vmem>>, %arg10: memref<1x16xf32, #tpu.memory_space<vmem>>, %arg11: memref<1x16xf32, #tpu.memory_space<vmem>>, %arg12: memref<1x16xf32, #tpu.memory_space<vmem>>, %arg13: memref<16x1xf32, #tpu.memory_space<vmem>>, %arg14: memref<1x1xf32, #tpu.memory_space<vmem>>, %arg15: memref<8x1xf32, #tpu.memory_space<vmem>>, %arg16: memref<8x8x48xf32, #tpu.memory_space<vmem>>, %arg17: memref<8x8x48xf32, #tpu.memory_space<vmem>>) attributes {dimension_semantics = [#tpu.dimension_semantics<parallel>], iteration_bounds = array<i64: 1>, scalar_prefetch = 0 : i64, scratch_operands = 2 : i64, tpu.core_type = #tpu.core_type<tc>, window_params = [{transform_indices = @transform_0, window_bounds = array<i64: 8, 8, 32>}, {transform_indices = @transform_1, window_bounds = array<i64: 8, 1>}, {pipeline_mode = #tpu.pipeline_mode<synchronous>, transform_indices = @transform_2, window_bounds = array<i64: 2, 32, 48>}, {pipeline_mode = #tpu.pipeline_mode<synchronous>, transform_indices = @transform_3, window_bounds = array<i64: 2, 16, 48>}, {pipeline_mode = #tpu.pipeline_mode<synchronous>, transform_indices = @transform_4, window_bounds = array<i64: 2, 1, 48>}, {pipeline_mode = #tpu.pipeline_mode<synchronous>, transform_indices = @transform_5, window_bounds = array<i64: 2, 1, 16>}, {pipeline_mode = #tpu.pipeline_mode<synchronous>, transform_indices = @transform_6, window_bounds = array<i64: 1, 32>}, {pipeline_mode = #tpu.pipeline_mode<synchronous>, transform_indices = @transform_7, window_bounds = array<i64: 1, 32>}, {pipeline_mode = #tpu.pipeline_mode<synchronous>, transform_indices = @transform_8, window_bounds = array<i64: 32, 16>}, {pipeline_mode = #tpu.pipeline_mode<synchronous>, transform_indices = @transform_9, window_bounds = array<i64: 1, 16>}, {pipeline_mode = #tpu.pipeline_mode<synchronous>, transform_indices = @transform_10, window_bounds = array<i64: 1, 16>}, {pipeline_mode = #tpu.pipeline_mode<synchronous>, transform_indices = @transform_11, window_bounds = array<i64: 1, 16>}, {pipeline_mode = #tpu.pipeline_mode<synchronous>, transform_indices = @transform_12, window_bounds = array<i64: 16, 1>}, {pipeline_mode = #tpu.pipeline_mode<synchronous>, transform_indices = @transform_13, window_bounds = array<i64: 1, 1>}, {transform_indices = @transform_14, window_bounds = array<i64: 8, 1>}]} {
    %c0 = arith.constant 0 : index
    %c0_0 = arith.constant 0 : index
    %c0_1 = arith.constant 0 : index
    %0 = vector.load %arg3[%c0, %c0_0, %c0_1] : memref<2x32x48xf32, #tpu.memory_space<vmem>>, vector<1x32x48xf32>
    %1 = vector.shape_cast %0 : vector<1x32x48xf32> to vector<32x48xf32>
    %c1 = arith.constant 1 : index
    %c0_2 = arith.constant 0 : index
    %c0_3 = arith.constant 0 : index
    %2 = vector.load %arg3[%c1, %c0_2, %c0_3] : memref<2x32x48xf32, #tpu.memory_space<vmem>>, vector<1x32x48xf32>
    %3 = vector.shape_cast %2 : vector<1x32x48xf32> to vector<32x48xf32>
    %c0_i32 = arith.constant 0 : i32
    %c1_i32 = arith.constant 1 : i32
    %4 = arith.muli %c0_i32, %c1_i32 : i32
    %c0_i32_4 = arith.constant 0 : i32
    %5 = arith.addi %c0_i32_4, %4 : i32
    %c8_i32 = arith.constant 8 : i32
    %6 = arith.muli %5, %c8_i32 : i32
    %7 = tpu.assume_multiple %6, 8 : i32
    %8 = arith.index_cast %7 : i32 to index
    %c0_5 = arith.constant 0 : index
    %c0_6 = arith.constant 0 : index
    %9 = vector.load %arg1[%8, %c0_5, %c0_6] : memref<8x8x32xf32, #tpu.memory_space<vmem>>, vector<8x8x32xf32>
    %10 = vector.shape_cast %9 : vector<8x8x32xf32> to vector<64x32xf32>
    %cst = arith.constant dense<0.000000e+00> : vector<64x48xf32>
    %11 = tpu.matmul %10, %1, %cst {dimension_numbers = #tpu.dot_dimension_numbers<[1], [0], [0], [1], [0, 0, 1, 1], [], []>} : vector<64x32xf32>, vector<32x48xf32>, vector<64x48xf32> -> vector<64x48xf32>
    %cst_7 = arith.constant dense<0.000000e+00> : vector<64x48xf32>
    %12 = tpu.matmul %10, %3, %cst_7 {dimension_numbers = #tpu.dot_dimension_numbers<[1], [0], [0], [1], [0, 0, 1, 1], [], []>} : vector<64x32xf32>, vector<32x48xf32>, vector<64x48xf32> -> vector<64x48xf32>
    %13 = vector.shape_cast %11 : vector<64x48xf32> to vector<8x8x48xf32>
    %14 = arith.index_cast %7 : i32 to index
    %c0_8 = arith.constant 0 : index
    %c0_9 = arith.constant 0 : index
    %15 = vector.load %arg16[%14, %c0_8, %c0_9] : memref<8x8x48xf32, #tpu.memory_space<vmem>>, vector<8x8x48xf32>
    tpu.vector_store %arg16[%14, %c0_8, %c0_9], %13 {strides = array<i32>} : memref<8x8x48xf32, #tpu.memory_space<vmem>>, vector<8x8x48xf32>,
    %16 = vector.shape_cast %12 : vector<64x48xf32> to vector<8x8x48xf32>
    %17 = arith.index_cast %7 : i32 to index
    %c0_10 = arith.constant 0 : index
    %c0_11 = arith.constant 0 : index
    %18 = vector.load %arg17[%17, %c0_10, %c0_11] : memref<8x8x48xf32, #tpu.memory_space<vmem>>, vector<8x8x48xf32>
    tpu.vector_store %arg17[%17, %c0_10, %c0_11], %16 {strides = array<i32>} : memref<8x8x48xf32, #tpu.memory_space<vmem>>, vector<8x8x48xf32>,
    %c1_i32_12 = arith.constant 1 : i32
    %c0_13 = arith.constant 0 : index
    %c0_14 = arith.constant 0 : index
    %19 = vector.load %arg2[%c0_13, %c0_14] : memref<8x1xi32, #tpu.memory_space<vmem>>, vector<8x1xi32>
    %c8_i32_15 = arith.constant 8 : i32
    %20 = vector.broadcast %c8_i32_15 : i32 to vector<8x1xi32>
    %21 = arith.subi %20, %19 : vector<8x1xi32>
    %c0_16 = arith.constant 0 : index
    %c0_17 = arith.constant 0 : index
    %c0_18 = arith.constant 0 : index
    %22 = vector.load %arg4[%c0_16, %c0_17, %c0_18] : memref<2x16x48xf32, #tpu.memory_space<vmem>>, vector<1x16x48xf32>
    %23 = vector.shape_cast %22 : vector<1x16x48xf32> to vector<16x48xf32>
    %c1_19 = arith.constant 1 : index
    %c0_20 = arith.constant 0 : index
    %c0_21 = arith.constant 0 : index
    %24 = vector.load %arg4[%c1_19, %c0_20, %c0_21] : memref<2x16x48xf32, #tpu.memory_space<vmem>>, vector<1x16x48xf32>
    %25 = vector.shape_cast %24 : vector<1x16x48xf32> to vector<16x48xf32>
    %c0_22 = arith.constant 0 : index
    %c0_23 = arith.constant 0 : index
    %c0_24 = arith.constant 0 : index
    %26 = vector.load %arg5[%c0_22, %c0_23, %c0_24] : memref<2x1x48xf32, #tpu.memory_space<vmem>>, vector<1x1x48xf32>
    %27 = vector.shape_cast %26 : vector<1x1x48xf32> to vector<1x48xf32>
    %28 = vector.shape_cast %27 : vector<1x48xf32> to vector<1x48xf32>
    %29 = vector.broadcast %28 : vector<1x48xf32> to vector<8x48xf32>
    %c1_25 = arith.constant 1 : index
    %c0_26 = arith.constant 0 : index
    %c0_27 = arith.constant 0 : index
    %30 = vector.load %arg5[%c1_25, %c0_26, %c0_27] : memref<2x1x48xf32, #tpu.memory_space<vmem>>, vector<1x1x48xf32>
    %31 = vector.shape_cast %30 : vector<1x1x48xf32> to vector<1x48xf32>
    %32 = vector.shape_cast %31 : vector<1x48xf32> to vector<1x48xf32>
    %33 = vector.broadcast %32 : vector<1x48xf32> to vector<8x48xf32>
    %c0_28 = arith.constant 0 : index
    %c0_29 = arith.constant 0 : index
    %c0_30 = arith.constant 0 : index
    %34 = vector.load %arg6[%c0_28, %c0_29, %c0_30] : memref<2x1x16xf32, #tpu.memory_space<vmem>>, vector<1x1x16xf32>
    %35 = vector.shape_cast %34 : vector<1x1x16xf32> to vector<1x16xf32>
    %36 = vector.shape_cast %35 : vector<1x16xf32> to vector<1x16xf32>
    %37 = vector.broadcast %36 : vector<1x16xf32> to vector<8x16xf32>
    %c1_31 = arith.constant 1 : index
    %c0_32 = arith.constant 0 : index
    %c0_33 = arith.constant 0 : index
    %38 = vector.load %arg6[%c1_31, %c0_32, %c0_33] : memref<2x1x16xf32, #tpu.memory_space<vmem>>, vector<1x1x16xf32>
    %39 = vector.shape_cast %38 : vector<1x1x16xf32> to vector<1x16xf32>
    %40 = vector.shape_cast %39 : vector<1x16xf32> to vector<1x16xf32>
    %41 = vector.broadcast %40 : vector<1x16xf32> to vector<8x16xf32>
    %cst_34 = arith.constant 0.000000e+00 : f32
    %42 = vector.broadcast %cst_34 : f32 to vector<8x16xf32>
    %c0_i32_35 = arith.constant 0 : i32
    %c8_i32_36 = arith.constant 8 : i32
    %43 = arith.muli %c0_i32_35, %c8_i32_36 : i32
    %c0_i32_37 = arith.constant 0 : i32
    %44 = arith.addi %43, %c0_i32_37 : i32
    %45 = arith.index_cast %44 : i32 to index
    %c0_38 = arith.constant 0 : index
    %c0_39 = arith.constant 0 : index
    %46 = vector.load %arg16[%45, %c0_38, %c0_39] : memref<8x8x48xf32, #tpu.memory_space<vmem>>, vector<1x8x48xf32>
    %47 = vector.shape_cast %46 : vector<1x8x48xf32> to vector<8x48xf32>
    %cst_40 = arith.constant dense<0.000000e+00> : vector<8x48xf32>
    %48 = tpu.matmul %42, %23, %cst_40 {dimension_numbers = #tpu.dot_dimension_numbers<[1], [0], [0], [1], [0, 0, 1, 1], [], []>} : vector<8x16xf32>, vector<16x48xf32>, vector<8x48xf32> -> vector<8x48xf32>
    %49 = arith.addf %48, %29 : vector<8x48xf32>
    %50 = vector.extract_strided_slice %47 {offsets = [0, 0], sizes = [8, 16], strides = [1, 1]} : vector<8x48xf32> to vector<8x16xf32>
    %51 = vector.extract_strided_slice %49 {offsets = [0, 0], sizes = [8, 16], strides = [1, 1]} : vector<8x48xf32> to vector<8x16xf32>
    %52 = arith.addf %50, %51 : vector<8x16xf32>
    %53 = arith.negf %52 : vector<8x16xf32>
    %54 = math.exp %53 : vector<8x16xf32>
    %cst_41 = arith.constant 1.000000e+00 : f32
    %55 = vector.broadcast %cst_41 : f32 to vector<8x16xf32>
    %56 = arith.addf %55, %54 : vector<8x16xf32>
    %57 = arith.divf %55, %56 : vector<8x16xf32>
    %58 = vector.extract_strided_slice %47 {offsets = [0, 16], sizes = [8, 16], strides = [1, 1]} : vector<8x48xf32> to vector<8x16xf32>
    %59 = vector.extract_strided_slice %49 {offsets = [0, 16], sizes = [8, 16], strides = [1, 1]} : vector<8x48xf32> to vector<8x16xf32>
    %60 = arith.addf %58, %59 : vector<8x16xf32>
    %61 = arith.negf %60 : vector<8x16xf32>
    %62 = math.exp %61 : vector<8x16xf32>
    %cst_42 = arith.constant 1.000000e+00 : f32
    %63 = vector.broadcast %cst_42 : f32 to vector<8x16xf32>
    %64 = arith.addf %63, %62 : vector<8x16xf32>
    %65 = arith.divf %63, %64 : vector<8x16xf32>
    %66 = vector.extract_strided_slice %47 {offsets = [0, 32], sizes = [8, 16], strides = [1, 1]} : vector<8x48xf32> to vector<8x16xf32>
    %67 = arith.addf %66, %37 : vector<8x16xf32>
    %68 = vector.extract_strided_slice %49 {offsets = [0, 32], sizes = [8, 16], strides = [1, 1]} : vector<8x48xf32> to vector<8x16xf32>
    %69 = arith.mulf %57, %68 : vector<8x16xf32>
    %70 = arith.addf %67, %69 : vector<8x16xf32>
    %71 = math.tanh %70 : vector<8x16xf32>
    %72 = arith.subf %42, %71 : vector<8x16xf32>
    %73 = arith.mulf %65, %72 : vector<8x16xf32>
    %74 = arith.addf %71, %73 : vector<8x16xf32>
    %c7_i32 = arith.constant 7 : i32
    %75 = arith.subi %c7_i32, %44 : i32
    %76 = arith.index_cast %75 : i32 to index
    %c0_43 = arith.constant 0 : index
    %c0_44 = arith.constant 0 : index
    %77 = vector.load %arg17[%76, %c0_43, %c0_44] : memref<8x8x48xf32, #tpu.memory_space<vmem>>, vector<1x8x48xf32>
    %78 = vector.shape_cast %77 : vector<1x8x48xf32> to vector<8x48xf32>
    %cst_45 = arith.constant dense<0.000000e+00> : vector<8x48xf32>
    %79 = tpu.matmul %42, %25, %cst_45 {dimension_numbers = #tpu.dot_dimension_numbers<[1], [0], [0], [1], [0, 0, 1, 1], [], []>} : vector<8x16xf32>, vector<16x48xf32>, vector<8x48xf32> -> vector<8x48xf32>
    %80 = arith.addf %79, %33 : vector<8x48xf32>
    %81 = vector.extract_strided_slice %78 {offsets = [0, 0], sizes = [8, 16], strides = [1, 1]} : vector<8x48xf32> to vector<8x16xf32>
    %82 = vector.extract_strided_slice %80 {offsets = [0, 0], sizes = [8, 16], strides = [1, 1]} : vector<8x48xf32> to vector<8x16xf32>
    %83 = arith.addf %81, %82 : vector<8x16xf32>
    %84 = arith.negf %83 : vector<8x16xf32>
    %85 = math.exp %84 : vector<8x16xf32>
    %cst_46 = arith.constant 1.000000e+00 : f32
    %86 = vector.broadcast %cst_46 : f32 to vector<8x16xf32>
    %87 = arith.addf %86, %85 : vector<8x16xf32>
    %88 = arith.divf %86, %87 : vector<8x16xf32>
    %89 = vector.extract_strided_slice %78 {offsets = [0, 16], sizes = [8, 16], strides = [1, 1]} : vector<8x48xf32> to vector<8x16xf32>
    %90 = vector.extract_strided_slice %80 {offsets = [0, 16], sizes = [8, 16], strides = [1, 1]} : vector<8x48xf32> to vector<8x16xf32>
    %91 = arith.addf %89, %90 : vector<8x16xf32>
    %92 = arith.negf %91 : vector<8x16xf32>
    %93 = math.exp %92 : vector<8x16xf32>
    %cst_47 = arith.constant 1.000000e+00 : f32
    %94 = vector.broadcast %cst_47 : f32 to vector<8x16xf32>
    %95 = arith.addf %94, %93 : vector<8x16xf32>
    %96 = arith.divf %94, %95 : vector<8x16xf32>
    %97 = vector.extract_strided_slice %78 {offsets = [0, 32], sizes = [8, 16], strides = [1, 1]} : vector<8x48xf32> to vector<8x16xf32>
    %98 = arith.addf %97, %41 : vector<8x16xf32>
    %99 = vector.extract_strided_slice %80 {offsets = [0, 32], sizes = [8, 16], strides = [1, 1]} : vector<8x48xf32> to vector<8x16xf32>
    %100 = arith.mulf %88, %99 : vector<8x16xf32>
    %101 = arith.addf %98, %100 : vector<8x16xf32>
    %102 = math.tanh %101 : vector<8x16xf32>
    %103 = arith.subf %42, %102 : vector<8x16xf32>
    %104 = arith.mulf %96, %103 : vector<8x16xf32>
    %105 = arith.addf %102, %104 : vector<8x16xf32>
    %106 = vector.broadcast %44 : i32 to vector<8x1xi32>
    %107 = arith.cmpi slt, %106, %19 : vector<8x1xi32>
    %108 = vector.shape_cast %107 : vector<8x1xi1> to vector<8x1xi1>
    %109 = vector.broadcast %108 : vector<8x1xi1> to vector<8x16xi1>
    %110 = arith.select %109, %74, %42 : vector<8x16xi1>, vector<8x16xf32>
    %111 = vector.broadcast %44 : i32 to vector<8x1xi32>
    %112 = arith.cmpi sge, %111, %21 : vector<8x1xi32>
    %113 = vector.shape_cast %112 : vector<8x1xi1> to vector<8x1xi1>
    %114 = vector.broadcast %113 : vector<8x1xi1> to vector<8x16xi1>
    %115 = arith.select %114, %105, %42 : vector<8x16xi1>, vector<8x16xf32>
    %c1_i32_48 = arith.constant 1 : i32
    %116 = arith.addi %43, %c1_i32_48 : i32
    %117 = arith.index_cast %116 : i32 to index
    %c0_49 = arith.constant 0 : index
    %c0_50 = arith.constant 0 : index
    %118 = vector.load %arg16[%117, %c0_49, %c0_50] : memref<8x8x48xf32, #tpu.memory_space<vmem>>, vector<1x8x48xf32>
    %119 = vector.shape_cast %118 : vector<1x8x48xf32> to vector<8x48xf32>
    %cst_51 = arith.constant dense<0.000000e+00> : vector<8x48xf32>
    %120 = tpu.matmul %110, %23, %cst_51 {dimension_numbers = #tpu.dot_dimension_numbers<[1], [0], [0], [1], [0, 0, 1, 1], [], []>} : vector<8x16xf32>, vector<16x48xf32>, vector<8x48xf32> -> vector<8x48xf32>
    %121 = arith.addf %120, %29 : vector<8x48xf32>
    %122 = vector.extract_strided_slice %119 {offsets = [0, 0], sizes = [8, 16], strides = [1, 1]} : vector<8x48xf32> to vector<8x16xf32>
    %123 = vector.extract_strided_slice %121 {offsets = [0, 0], sizes = [8, 16], strides = [1, 1]} : vector<8x48xf32> to vector<8x16xf32>
    %124 = arith.addf %122, %123 : vector<8x16xf32>
    %125 = arith.negf %124 : vector<8x16xf32>
    %126 = math.exp %125 : vector<8x16xf32>
    %cst_52 = arith.constant 1.000000e+00 : f32
    %127 = vector.broadcast %cst_52 : f32 to vector<8x16xf32>
    %128 = arith.addf %127, %126 : vector<8x16xf32>
    %129 = arith.divf %127, %128 : vector<8x16xf32>
    %130 = vector.extract_strided_slice %119 {offsets = [0, 16], sizes = [8, 16], strides = [1, 1]} : vector<8x48xf32> to vector<8x16xf32>
    %131 = vector.extract_strided_slice %121 {offsets = [0, 16], sizes = [8, 16], strides = [1, 1]} : vector<8x48xf32> to vector<8x16xf32>
    %132 = arith.addf %130, %131 : vector<8x16xf32>
    %133 = arith.negf %132 : vector<8x16xf32>
    %134 = math.exp %133 : vector<8x16xf32>
    %cst_53 = arith.constant 1.000000e+00 : f32
    %135 = vector.broadcast %cst_53 : f32 to vector<8x16xf32>
    %136 = arith.addf %135, %134 : vector<8x16xf32>
    %137 = arith.divf %135, %136 : vector<8x16xf32>
    %138 = vector.extract_strided_slice %119 {offsets = [0, 32], sizes = [8, 16], strides = [1, 1]} : vector<8x48xf32> to vector<8x16xf32>
    %139 = arith.addf %138, %37 : vector<8x16xf32>
    %140 = vector.extract_strided_slice %121 {offsets = [0, 32], sizes = [8, 16], strides = [1, 1]} : vector<8x48xf32> to vector<8x16xf32>
    %141 = arith.mulf %129, %140 : vector<8x16xf32>
    %142 = arith.addf %139, %141 : vector<8x16xf32>
    %143 = math.tanh %142 : vector<8x16xf32>
    %144 = arith.subf %110, %143 : vector<8x16xf32>
    %145 = arith.mulf %137, %144 : vector<8x16xf32>
    %146 = arith.addf %143, %145 : vector<8x16xf32>
    %c7_i32_54 = arith.constant 7 : i32
    %147 = arith.subi %c7_i32_54, %116 : i32
    %148 = arith.index_cast %147 : i32 to index
    %c0_55 = arith.constant 0 : index
    %c0_56 = arith.constant 0 : index
    %149 = vector.load %arg17[%148, %c0_55, %c0_56] : memref<8x8x48xf32, #tpu.memory_space<vmem>>, vector<1x8x48xf32>
    %150 = vector.shape_cast %149 : vector<1x8x48xf32> to vector<8x48xf32>
    %cst_57 = arith.constant dense<0.000000e+00> : vector<8x48xf32>
    %151 = tpu.matmul %115, %25, %cst_57 {dimension_numbers = #tpu.dot_dimension_numbers<[1], [0], [0], [1], [0, 0, 1, 1], [], []>} : vector<8x16xf32>, vector<16x48xf32>, vector<8x48xf32> -> vector<8x48xf32>
    %152 = arith.addf %151, %33 : vector<8x48xf32>
    %153 = vector.extract_strided_slice %150 {offsets = [0, 0], sizes = [8, 16], strides = [1, 1]} : vector<8x48xf32> to vector<8x16xf32>
    %154 = vector.extract_strided_slice %152 {offsets = [0, 0], sizes = [8, 16], strides = [1, 1]} : vector<8x48xf32> to vector<8x16xf32>
    %155 = arith.addf %153, %154 : vector<8x16xf32>
    %156 = arith.negf %155 : vector<8x16xf32>
    %157 = math.exp %156 : vector<8x16xf32>
    %cst_58 = arith.constant 1.000000e+00 : f32
    %158 = vector.broadcast %cst_58 : f32 to vector<8x16xf32>
    %159 = arith.addf %158, %157 : vector<8x16xf32>
    %160 = arith.divf %158, %159 : vector<8x16xf32>
    %161 = vector.extract_strided_slice %150 {offsets = [0, 16], sizes = [8, 16], strides = [1, 1]} : vector<8x48xf32> to vector<8x16xf32>
    %162 = vector.extract_strided_slice %152 {offsets = [0, 16], sizes = [8, 16], strides = [1, 1]} : vector<8x48xf32> to vector<8x16xf32>
    %163 = arith.addf %161, %162 : vector<8x16xf32>
    %164 = arith.negf %163 : vector<8x16xf32>
    %165 = math.exp %164 : vector<8x16xf32>
    %cst_59 = arith.constant 1.000000e+00 : f32
    %166 = vector.broadcast %cst_59 : f32 to vector<8x16xf32>
    %167 = arith.addf %166, %165 : vector<8x16xf32>
    %168 = arith.divf %166, %167 : vector<8x16xf32>
    %169 = vector.extract_strided_slice %150 {offsets = [0, 32], sizes = [8, 16], strides = [1, 1]} : vector<8x48xf32> to vector<8x16xf32>
    %170 = arith.addf %169, %41 : vector<8x16xf32>
    %171 = vector.extract_strided_slice %152 {offsets = [0, 32], sizes = [8, 16], strides = [1, 1]} : vector<8x48xf32> to vector<8x16xf32>
    %172 = arith.mulf %160, %171 : vector<8x16xf32>
    %173 = arith.addf %170, %172 : vector<8x16xf32>
    %174 = math.tanh %173 : vector<8x16xf32>
    %175 = arith.subf %115, %174 : vector<8x16xf32>
    %176 = arith.mulf %168, %175 : vector<8x16xf32>
    %177 = arith.addf %174, %176 : vector<8x16xf32>
    %178 = vector.broadcast %116 : i32 to vector<8x1xi32>
    %179 = arith.cmpi slt, %178, %19 : vector<8x1xi32>
    %180 = vector.shape_cast %179 : vector<8x1xi1> to vector<8x1xi1>
    %181 = vector.broadcast %180 : vector<8x1xi1> to vector<8x16xi1>
    %182 = arith.select %181, %146, %110 : vector<8x16xi1>, vector<8x16xf32>
    %183 = vector.broadcast %116 : i32 to vector<8x1xi32>
    %184 = arith.cmpi sge, %183, %21 : vector<8x1xi32>
    %185 = vector.shape_cast %184 : vector<8x1xi1> to vector<8x1xi1>
    %186 = vector.broadcast %185 : vector<8x1xi1> to vector<8x16xi1>
    %187 = arith.select %186, %177, %115 : vector<8x16xi1>, vector<8x16xf32>
    %c2_i32 = arith.constant 2 : i32
    %188 = arith.addi %43, %c2_i32 : i32
    %189 = arith.index_cast %188 : i32 to index
    %c0_60 = arith.constant 0 : index
    %c0_61 = arith.constant 0 : index
    %190 = vector.load %arg16[%189, %c0_60, %c0_61] : memref<8x8x48xf32, #tpu.memory_space<vmem>>, vector<1x8x48xf32>
    %191 = vector.shape_cast %190 : vector<1x8x48xf32> to vector<8x48xf32>
    %cst_62 = arith.constant dense<0.000000e+00> : vector<8x48xf32>
    %192 = tpu.matmul %182, %23, %cst_62 {dimension_numbers = #tpu.dot_dimension_numbers<[1], [0], [0], [1], [0, 0, 1, 1], [], []>} : vector<8x16xf32>, vector<16x48xf32>, vector<8x48xf32> -> vector<8x48xf32>
    %193 = arith.addf %192, %29 : vector<8x48xf32>
    %194 = vector.extract_strided_slice %191 {offsets = [0, 0], sizes = [8, 16], strides = [1, 1]} : vector<8x48xf32> to vector<8x16xf32>
    %195 = vector.extract_strided_slice %193 {offsets = [0, 0], sizes = [8, 16], strides = [1, 1]} : vector<8x48xf32> to vector<8x16xf32>
    %196 = arith.addf %194, %195 : vector<8x16xf32>
    %197 = arith.negf %196 : vector<8x16xf32>
    %198 = math.exp %197 : vector<8x16xf32>
    %cst_63 = arith.constant 1.000000e+00 : f32
    %199 = vector.broadcast %cst_63 : f32 to vector<8x16xf32>
    %200 = arith.addf %199, %198 : vector<8x16xf32>
    %201 = arith.divf %199, %200 : vector<8x16xf32>
    %202 = vector.extract_strided_slice %191 {offsets = [0, 16], sizes = [8, 16], strides = [1, 1]} : vector<8x48xf32> to vector<8x16xf32>
    %203 = vector.extract_strided_slice %193 {offsets = [0, 16], sizes = [8, 16], strides = [1, 1]} : vector<8x48xf32> to vector<8x16xf32>
    %204 = arith.addf %202, %203 : vector<8x16xf32>
    %205 = arith.negf %204 : vector<8x16xf32>
    %206 = math.exp %205 : vector<8x16xf32>
    %cst_64 = arith.constant 1.000000e+00 : f32
    %207 = vector.broadcast %cst_64 : f32 to vector<8x16xf32>
    %208 = arith.addf %207, %206 : vector<8x16xf32>
    %209 = arith.divf %207, %208 : vector<8x16xf32>
    %210 = vector.extract_strided_slice %191 {offsets = [0, 32], sizes = [8, 16], strides = [1, 1]} : vector<8x48xf32> to vector<8x16xf32>
    %211 = arith.addf %210, %37 : vector<8x16xf32>
    %212 = vector.extract_strided_slice %193 {offsets = [0, 32], sizes = [8, 16], strides = [1, 1]} : vector<8x48xf32> to vector<8x16xf32>
    %213 = arith.mulf %201, %212 : vector<8x16xf32>
    %214 = arith.addf %211, %213 : vector<8x16xf32>
    %215 = math.tanh %214 : vector<8x16xf32>
    %216 = arith.subf %182, %215 : vector<8x16xf32>
    %217 = arith.mulf %209, %216 : vector<8x16xf32>
    %218 = arith.addf %215, %217 : vector<8x16xf32>
    %c7_i32_65 = arith.constant 7 : i32
    %219 = arith.subi %c7_i32_65, %188 : i32
    %220 = arith.index_cast %219 : i32 to index
    %c0_66 = arith.constant 0 : index
    %c0_67 = arith.constant 0 : index
    %221 = vector.load %arg17[%220, %c0_66, %c0_67] : memref<8x8x48xf32, #tpu.memory_space<vmem>>, vector<1x8x48xf32>
    %222 = vector.shape_cast %221 : vector<1x8x48xf32> to vector<8x48xf32>
    %cst_68 = arith.constant dense<0.000000e+00> : vector<8x48xf32>
    %223 = tpu.matmul %187, %25, %cst_68 {dimension_numbers = #tpu.dot_dimension_numbers<[1], [0], [0], [1], [0, 0, 1, 1], [], []>} : vector<8x16xf32>, vector<16x48xf32>, vector<8x48xf32> -> vector<8x48xf32>
    %224 = arith.addf %223, %33 : vector<8x48xf32>
    %225 = vector.extract_strided_slice %222 {offsets = [0, 0], sizes = [8, 16], strides = [1, 1]} : vector<8x48xf32> to vector<8x16xf32>
    %226 = vector.extract_strided_slice %224 {offsets = [0, 0], sizes = [8, 16], strides = [1, 1]} : vector<8x48xf32> to vector<8x16xf32>
    %227 = arith.addf %225, %226 : vector<8x16xf32>
    %228 = arith.negf %227 : vector<8x16xf32>
    %229 = math.exp %228 : vector<8x16xf32>
    %cst_69 = arith.constant 1.000000e+00 : f32
    %230 = vector.broadcast %cst_69 : f32 to vector<8x16xf32>
    %231 = arith.addf %230, %229 : vector<8x16xf32>
    %232 = arith.divf %230, %231 : vector<8x16xf32>
    %233 = vector.extract_strided_slice %222 {offsets = [0, 16], sizes = [8, 16], strides = [1, 1]} : vector<8x48xf32> to vector<8x16xf32>
    %234 = vector.extract_strided_slice %224 {offsets = [0, 16], sizes = [8, 16], strides = [1, 1]} : vector<8x48xf32> to vector<8x16xf32>
    %235 = arith.addf %233, %234 : vector<8x16xf32>
    %236 = arith.negf %235 : vector<8x16xf32>
    %237 = math.exp %236 : vector<8x16xf32>
    %cst_70 = arith.constant 1.000000e+00 : f32
    %238 = vector.broadcast %cst_70 : f32 to vector<8x16xf32>
    %239 = arith.addf %238, %237 : vector<8x16xf32>
    %240 = arith.divf %238, %239 : vector<8x16xf32>
    %241 = vector.extract_strided_slice %222 {offsets = [0, 32], sizes = [8, 16], strides = [1, 1]} : vector<8x48xf32> to vector<8x16xf32>
    %242 = arith.addf %241, %41 : vector<8x16xf32>
    %243 = vector.extract_strided_slice %224 {offsets = [0, 32], sizes = [8, 16], strides = [1, 1]} : vector<8x48xf32> to vector<8x16xf32>
    %244 = arith.mulf %232, %243 : vector<8x16xf32>
    %245 = arith.addf %242, %244 : vector<8x16xf32>
    %246 = math.tanh %245 : vector<8x16xf32>
    %247 = arith.subf %187, %246 : vector<8x16xf32>
    %248 = arith.mulf %240, %247 : vector<8x16xf32>
    %249 = arith.addf %246, %248 : vector<8x16xf32>
    %250 = vector.broadcast %188 : i32 to vector<8x1xi32>
    %251 = arith.cmpi slt, %250, %19 : vector<8x1xi32>
    %252 = vector.shape_cast %251 : vector<8x1xi1> to vector<8x1xi1>
    %253 = vector.broadcast %252 : vector<8x1xi1> to vector<8x16xi1>
    %254 = arith.select %253, %218, %182 : vector<8x16xi1>, vector<8x16xf32>
    %255 = vector.broadcast %188 : i32 to vector<8x1xi32>
    %256 = arith.cmpi sge, %255, %21 : vector<8x1xi32>
    %257 = vector.shape_cast %256 : vector<8x1xi1> to vector<8x1xi1>
    %258 = vector.broadcast %257 : vector<8x1xi1> to vector<8x16xi1>
    %259 = arith.select %258, %249, %187 : vector<8x16xi1>, vector<8x16xf32>
    %c3_i32 = arith.constant 3 : i32
    %260 = arith.addi %43, %c3_i32 : i32
    %261 = arith.index_cast %260 : i32 to index
    %c0_71 = arith.constant 0 : index
    %c0_72 = arith.constant 0 : index
    %262 = vector.load %arg16[%261, %c0_71, %c0_72] : memref<8x8x48xf32, #tpu.memory_space<vmem>>, vector<1x8x48xf32>
    %263 = vector.shape_cast %262 : vector<1x8x48xf32> to vector<8x48xf32>
    %cst_73 = arith.constant dense<0.000000e+00> : vector<8x48xf32>
    %264 = tpu.matmul %254, %23, %cst_73 {dimension_numbers = #tpu.dot_dimension_numbers<[1], [0], [0], [1], [0, 0, 1, 1], [], []>} : vector<8x16xf32>, vector<16x48xf32>, vector<8x48xf32> -> vector<8x48xf32>
    %265 = arith.addf %264, %29 : vector<8x48xf32>
    %266 = vector.extract_strided_slice %263 {offsets = [0, 0], sizes = [8, 16], strides = [1, 1]} : vector<8x48xf32> to vector<8x16xf32>
    %267 = vector.extract_strided_slice %265 {offsets = [0, 0], sizes = [8, 16], strides = [1, 1]} : vector<8x48xf32> to vector<8x16xf32>
    %268 = arith.addf %266, %267 : vector<8x16xf32>
    %269 = arith.negf %268 : vector<8x16xf32>
    %270 = math.exp %269 : vector<8x16xf32>
    %cst_74 = arith.constant 1.000000e+00 : f32
    %271 = vector.broadcast %cst_74 : f32 to vector<8x16xf32>
    %272 = arith.addf %271, %270 : vector<8x16xf32>
    %273 = arith.divf %271, %272 : vector<8x16xf32>
    %274 = vector.extract_strided_slice %263 {offsets = [0, 16], sizes = [8, 16], strides = [1, 1]} : vector<8x48xf32> to vector<8x16xf32>
    %275 = vector.extract_strided_slice %265 {offsets = [0, 16], sizes = [8, 16], strides = [1, 1]} : vector<8x48xf32> to vector<8x16xf32>
    %276 = arith.addf %274, %275 : vector<8x16xf32>
    %277 = arith.negf %276 : vector<8x16xf32>
    %278 = math.exp %277 : vector<8x16xf32>
    %cst_75 = arith.constant 1.000000e+00 : f32
    %279 = vector.broadcast %cst_75 : f32 to vector<8x16xf32>
    %280 = arith.addf %279, %278 : vector<8x16xf32>
    %281 = arith.divf %279, %280 : vector<8x16xf32>
    %282 = vector.extract_strided_slice %263 {offsets = [0, 32], sizes = [8, 16], strides = [1, 1]} : vector<8x48xf32> to vector<8x16xf32>
    %283 = arith.addf %282, %37 : vector<8x16xf32>
    %284 = vector.extract_strided_slice %265 {offsets = [0, 32], sizes = [8, 16], strides = [1, 1]} : vector<8x48xf32> to vector<8x16xf32>
    %285 = arith.mulf %273, %284 : vector<8x16xf32>
    %286 = arith.addf %283, %285 : vector<8x16xf32>
    %287 = math.tanh %286 : vector<8x16xf32>
    %288 = arith.subf %254, %287 : vector<8x16xf32>
    %289 = arith.mulf %281, %288 : vector<8x16xf32>
    %290 = arith.addf %287, %289 : vector<8x16xf32>
    %c7_i32_76 = arith.constant 7 : i32
    %291 = arith.subi %c7_i32_76, %260 : i32
    %292 = arith.index_cast %291 : i32 to index
    %c0_77 = arith.constant 0 : index
    %c0_78 = arith.constant 0 : index
    %293 = vector.load %arg17[%292, %c0_77, %c0_78] : memref<8x8x48xf32, #tpu.memory_space<vmem>>, vector<1x8x48xf32>
    %294 = vector.shape_cast %293 : vector<1x8x48xf32> to vector<8x48xf32>
    %cst_79 = arith.constant dense<0.000000e+00> : vector<8x48xf32>
    %295 = tpu.matmul %259, %25, %cst_79 {dimension_numbers = #tpu.dot_dimension_numbers<[1], [0], [0], [1], [0, 0, 1, 1], [], []>} : vector<8x16xf32>, vector<16x48xf32>, vector<8x48xf32> -> vector<8x48xf32>
    %296 = arith.addf %295, %33 : vector<8x48xf32>
    %297 = vector.extract_strided_slice %294 {offsets = [0, 0], sizes = [8, 16], strides = [1, 1]} : vector<8x48xf32> to vector<8x16xf32>
    %298 = vector.extract_strided_slice %296 {offsets = [0, 0], sizes = [8, 16], strides = [1, 1]} : vector<8x48xf32> to vector<8x16xf32>
    %299 = arith.addf %297, %298 : vector<8x16xf32>
    %300 = arith.negf %299 : vector<8x16xf32>
    %301 = math.exp %300 : vector<8x16xf32>
    %cst_80 = arith.constant 1.000000e+00 : f32
    %302 = vector.broadcast %cst_80 : f32 to vector<8x16xf32>
    %303 = arith.addf %302, %301 : vector<8x16xf32>
    %304 = arith.divf %302, %303 : vector<8x16xf32>
    %305 = vector.extract_strided_slice %294 {offsets = [0, 16], sizes = [8, 16], strides = [1, 1]} : vector<8x48xf32> to vector<8x16xf32>
    %306 = vector.extract_strided_slice %296 {offsets = [0, 16], sizes = [8, 16], strides = [1, 1]} : vector<8x48xf32> to vector<8x16xf32>
    %307 = arith.addf %305, %306 : vector<8x16xf32>
    %308 = arith.negf %307 : vector<8x16xf32>
    %309 = math.exp %308 : vector<8x16xf32>
    %cst_81 = arith.constant 1.000000e+00 : f32
    %310 = vector.broadcast %cst_81 : f32 to vector<8x16xf32>
    %311 = arith.addf %310, %309 : vector<8x16xf32>
    %312 = arith.divf %310, %311 : vector<8x16xf32>
    %313 = vector.extract_strided_slice %294 {offsets = [0, 32], sizes = [8, 16], strides = [1, 1]} : vector<8x48xf32> to vector<8x16xf32>
    %314 = arith.addf %313, %41 : vector<8x16xf32>
    %315 = vector.extract_strided_slice %296 {offsets = [0, 32], sizes = [8, 16], strides = [1, 1]} : vector<8x48xf32> to vector<8x16xf32>
    %316 = arith.mulf %304, %315 : vector<8x16xf32>
    %317 = arith.addf %314, %316 : vector<8x16xf32>
    %318 = math.tanh %317 : vector<8x16xf32>
    %319 = arith.subf %259, %318 : vector<8x16xf32>
    %320 = arith.mulf %312, %319 : vector<8x16xf32>
    %321 = arith.addf %318, %320 : vector<8x16xf32>
    %322 = vector.broadcast %260 : i32 to vector<8x1xi32>
    %323 = arith.cmpi slt, %322, %19 : vector<8x1xi32>
    %324 = vector.shape_cast %323 : vector<8x1xi1> to vector<8x1xi1>
    %325 = vector.broadcast %324 : vector<8x1xi1> to vector<8x16xi1>
    %326 = arith.select %325, %290, %254 : vector<8x16xi1>, vector<8x16xf32>
    %327 = vector.broadcast %260 : i32 to vector<8x1xi32>
    %328 = arith.cmpi sge, %327, %21 : vector<8x1xi32>
    %329 = vector.shape_cast %328 : vector<8x1xi1> to vector<8x1xi1>
    %330 = vector.broadcast %329 : vector<8x1xi1> to vector<8x16xi1>
    %331 = arith.select %330, %321, %259 : vector<8x16xi1>, vector<8x16xf32>
    %c4_i32 = arith.constant 4 : i32
    %332 = arith.addi %43, %c4_i32 : i32
    %333 = arith.index_cast %332 : i32 to index
    %c0_82 = arith.constant 0 : index
    %c0_83 = arith.constant 0 : index
    %334 = vector.load %arg16[%333, %c0_82, %c0_83] : memref<8x8x48xf32, #tpu.memory_space<vmem>>, vector<1x8x48xf32>
    %335 = vector.shape_cast %334 : vector<1x8x48xf32> to vector<8x48xf32>
    %cst_84 = arith.constant dense<0.000000e+00> : vector<8x48xf32>
    %336 = tpu.matmul %326, %23, %cst_84 {dimension_numbers = #tpu.dot_dimension_numbers<[1], [0], [0], [1], [0, 0, 1, 1], [], []>} : vector<8x16xf32>, vector<16x48xf32>, vector<8x48xf32> -> vector<8x48xf32>
    %337 = arith.addf %336, %29 : vector<8x48xf32>
    %338 = vector.extract_strided_slice %335 {offsets = [0, 0], sizes = [8, 16], strides = [1, 1]} : vector<8x48xf32> to vector<8x16xf32>
    %339 = vector.extract_strided_slice %337 {offsets = [0, 0], sizes = [8, 16], strides = [1, 1]} : vector<8x48xf32> to vector<8x16xf32>
    %340 = arith.addf %338, %339 : vector<8x16xf32>
    %341 = arith.negf %340 : vector<8x16xf32>
    %342 = math.exp %341 : vector<8x16xf32>
    %cst_85 = arith.constant 1.000000e+00 : f32
    %343 = vector.broadcast %cst_85 : f32 to vector<8x16xf32>
    %344 = arith.addf %343, %342 : vector<8x16xf32>
    %345 = arith.divf %343, %344 : vector<8x16xf32>
    %346 = vector.extract_strided_slice %335 {offsets = [0, 16], sizes = [8, 16], strides = [1, 1]} : vector<8x48xf32> to vector<8x16xf32>
    %347 = vector.extract_strided_slice %337 {offsets = [0, 16], sizes = [8, 16], strides = [1, 1]} : vector<8x48xf32> to vector<8x16xf32>
    %348 = arith.addf %346, %347 : vector<8x16xf32>
    %349 = arith.negf %348 : vector<8x16xf32>
    %350 = math.exp %349 : vector<8x16xf32>
    %cst_86 = arith.constant 1.000000e+00 : f32
    %351 = vector.broadcast %cst_86 : f32 to vector<8x16xf32>
    %352 = arith.addf %351, %350 : vector<8x16xf32>
    %353 = arith.divf %351, %352 : vector<8x16xf32>
    %354 = vector.extract_strided_slice %335 {offsets = [0, 32], sizes = [8, 16], strides = [1, 1]} : vector<8x48xf32> to vector<8x16xf32>
    %355 = arith.addf %354, %37 : vector<8x16xf32>
    %356 = vector.extract_strided_slice %337 {offsets = [0, 32], sizes = [8, 16], strides = [1, 1]} : vector<8x48xf32> to vector<8x16xf32>
    %357 = arith.mulf %345, %356 : vector<8x16xf32>
    %358 = arith.addf %355, %357 : vector<8x16xf32>
    %359 = math.tanh %358 : vector<8x16xf32>
    %360 = arith.subf %326, %359 : vector<8x16xf32>
    %361 = arith.mulf %353, %360 : vector<8x16xf32>
    %362 = arith.addf %359, %361 : vector<8x16xf32>
    %c7_i32_87 = arith.constant 7 : i32
    %363 = arith.subi %c7_i32_87, %332 : i32
    %364 = arith.index_cast %363 : i32 to index
    %c0_88 = arith.constant 0 : index
    %c0_89 = arith.constant 0 : index
    %365 = vector.load %arg17[%364, %c0_88, %c0_89] : memref<8x8x48xf32, #tpu.memory_space<vmem>>, vector<1x8x48xf32>
    %366 = vector.shape_cast %365 : vector<1x8x48xf32> to vector<8x48xf32>
    %cst_90 = arith.constant dense<0.000000e+00> : vector<8x48xf32>
    %367 = tpu.matmul %331, %25, %cst_90 {dimension_numbers = #tpu.dot_dimension_numbers<[1], [0], [0], [1], [0, 0, 1, 1], [], []>} : vector<8x16xf32>, vector<16x48xf32>, vector<8x48xf32> -> vector<8x48xf32>
    %368 = arith.addf %367, %33 : vector<8x48xf32>
    %369 = vector.extract_strided_slice %366 {offsets = [0, 0], sizes = [8, 16], strides = [1, 1]} : vector<8x48xf32> to vector<8x16xf32>
    %370 = vector.extract_strided_slice %368 {offsets = [0, 0], sizes = [8, 16], strides = [1, 1]} : vector<8x48xf32> to vector<8x16xf32>
    %371 = arith.addf %369, %370 : vector<8x16xf32>
    %372 = arith.negf %371 : vector<8x16xf32>
    %373 = math.exp %372 : vector<8x16xf32>
    %cst_91 = arith.constant 1.000000e+00 : f32
    %374 = vector.broadcast %cst_91 : f32 to vector<8x16xf32>
    %375 = arith.addf %374, %373 : vector<8x16xf32>
    %376 = arith.divf %374, %375 : vector<8x16xf32>
    %377 = vector.extract_strided_slice %366 {offsets = [0, 16], sizes = [8, 16], strides = [1, 1]} : vector<8x48xf32> to vector<8x16xf32>
    %378 = vector.extract_strided_slice %368 {offsets = [0, 16], sizes = [8, 16], strides = [1, 1]} : vector<8x48xf32> to vector<8x16xf32>
    %379 = arith.addf %377, %378 : vector<8x16xf32>
    %380 = arith.negf %379 : vector<8x16xf32>
    %381 = math.exp %380 : vector<8x16xf32>
    %cst_92 = arith.constant 1.000000e+00 : f32
    %382 = vector.broadcast %cst_92 : f32 to vector<8x16xf32>
    %383 = arith.addf %382, %381 : vector<8x16xf32>
    %384 = arith.divf %382, %383 : vector<8x16xf32>
    %385 = vector.extract_strided_slice %366 {offsets = [0, 32], sizes = [8, 16], strides = [1, 1]} : vector<8x48xf32> to vector<8x16xf32>
    %386 = arith.addf %385, %41 : vector<8x16xf32>
    %387 = vector.extract_strided_slice %368 {offsets = [0, 32], sizes = [8, 16], strides = [1, 1]} : vector<8x48xf32> to vector<8x16xf32>
    %388 = arith.mulf %376, %387 : vector<8x16xf32>
    %389 = arith.addf %386, %388 : vector<8x16xf32>
    %390 = math.tanh %389 : vector<8x16xf32>
    %391 = arith.subf %331, %390 : vector<8x16xf32>
    %392 = arith.mulf %384, %391 : vector<8x16xf32>
    %393 = arith.addf %390, %392 : vector<8x16xf32>
    %394 = vector.broadcast %332 : i32 to vector<8x1xi32>
    %395 = arith.cmpi slt, %394, %19 : vector<8x1xi32>
    %396 = vector.shape_cast %395 : vector<8x1xi1> to vector<8x1xi1>
    %397 = vector.broadcast %396 : vector<8x1xi1> to vector<8x16xi1>
    %398 = arith.select %397, %362, %326 : vector<8x16xi1>, vector<8x16xf32>
    %399 = vector.broadcast %332 : i32 to vector<8x1xi32>
    %400 = arith.cmpi sge, %399, %21 : vector<8x1xi32>
    %401 = vector.shape_cast %400 : vector<8x1xi1> to vector<8x1xi1>
    %402 = vector.broadcast %401 : vector<8x1xi1> to vector<8x16xi1>
    %403 = arith.select %402, %393, %331 : vector<8x16xi1>, vector<8x16xf32>
    %c5_i32 = arith.constant 5 : i32
    %404 = arith.addi %43, %c5_i32 : i32
    %405 = arith.index_cast %404 : i32 to index
    %c0_93 = arith.constant 0 : index
    %c0_94 = arith.constant 0 : index
    %406 = vector.load %arg16[%405, %c0_93, %c0_94] : memref<8x8x48xf32, #tpu.memory_space<vmem>>, vector<1x8x48xf32>
    %407 = vector.shape_cast %406 : vector<1x8x48xf32> to vector<8x48xf32>
    %cst_95 = arith.constant dense<0.000000e+00> : vector<8x48xf32>
    %408 = tpu.matmul %398, %23, %cst_95 {dimension_numbers = #tpu.dot_dimension_numbers<[1], [0], [0], [1], [0, 0, 1, 1], [], []>} : vector<8x16xf32>, vector<16x48xf32>, vector<8x48xf32> -> vector<8x48xf32>
    %409 = arith.addf %408, %29 : vector<8x48xf32>
    %410 = vector.extract_strided_slice %407 {offsets = [0, 0], sizes = [8, 16], strides = [1, 1]} : vector<8x48xf32> to vector<8x16xf32>
    %411 = vector.extract_strided_slice %409 {offsets = [0, 0], sizes = [8, 16], strides = [1, 1]} : vector<8x48xf32> to vector<8x16xf32>
    %412 = arith.addf %410, %411 : vector<8x16xf32>
    %413 = arith.negf %412 : vector<8x16xf32>
    %414 = math.exp %413 : vector<8x16xf32>
    %cst_96 = arith.constant 1.000000e+00 : f32
    %415 = vector.broadcast %cst_96 : f32 to vector<8x16xf32>
    %416 = arith.addf %415, %414 : vector<8x16xf32>
    %417 = arith.divf %415, %416 : vector<8x16xf32>
    %418 = vector.extract_strided_slice %407 {offsets = [0, 16], sizes = [8, 16], strides = [1, 1]} : vector<8x48xf32> to vector<8x16xf32>
    %419 = vector.extract_strided_slice %409 {offsets = [0, 16], sizes = [8, 16], strides = [1, 1]} : vector<8x48xf32> to vector<8x16xf32>
    %420 = arith.addf %418, %419 : vector<8x16xf32>
    %421 = arith.negf %420 : vector<8x16xf32>
    %422 = math.exp %421 : vector<8x16xf32>
    %cst_97 = arith.constant 1.000000e+00 : f32
    %423 = vector.broadcast %cst_97 : f32 to vector<8x16xf32>
    %424 = arith.addf %423, %422 : vector<8x16xf32>
    %425 = arith.divf %423, %424 : vector<8x16xf32>
    %426 = vector.extract_strided_slice %407 {offsets = [0, 32], sizes = [8, 16], strides = [1, 1]} : vector<8x48xf32> to vector<8x16xf32>
    %427 = arith.addf %426, %37 : vector<8x16xf32>
    %428 = vector.extract_strided_slice %409 {offsets = [0, 32], sizes = [8, 16], strides = [1, 1]} : vector<8x48xf32> to vector<8x16xf32>
    %429 = arith.mulf %417, %428 : vector<8x16xf32>
    %430 = arith.addf %427, %429 : vector<8x16xf32>
    %431 = math.tanh %430 : vector<8x16xf32>
    %432 = arith.subf %398, %431 : vector<8x16xf32>
    %433 = arith.mulf %425, %432 : vector<8x16xf32>
    %434 = arith.addf %431, %433 : vector<8x16xf32>
    %c7_i32_98 = arith.constant 7 : i32
    %435 = arith.subi %c7_i32_98, %404 : i32
    %436 = arith.index_cast %435 : i32 to index
    %c0_99 = arith.constant 0 : index
    %c0_100 = arith.constant 0 : index
    %437 = vector.load %arg17[%436, %c0_99, %c0_100] : memref<8x8x48xf32, #tpu.memory_space<vmem>>, vector<1x8x48xf32>
    %438 = vector.shape_cast %437 : vector<1x8x48xf32> to vector<8x48xf32>
    %cst_101 = arith.constant dense<0.000000e+00> : vector<8x48xf32>
    %439 = tpu.matmul %403, %25, %cst_101 {dimension_numbers = #tpu.dot_dimension_numbers<[1], [0], [0], [1], [0, 0, 1, 1], [], []>} : vector<8x16xf32>, vector<16x48xf32>, vector<8x48xf32> -> vector<8x48xf32>
    %440 = arith.addf %439, %33 : vector<8x48xf32>
    %441 = vector.extract_strided_slice %438 {offsets = [0, 0], sizes = [8, 16], strides = [1, 1]} : vector<8x48xf32> to vector<8x16xf32>
    %442 = vector.extract_strided_slice %440 {offsets = [0, 0], sizes = [8, 16], strides = [1, 1]} : vector<8x48xf32> to vector<8x16xf32>
    %443 = arith.addf %441, %442 : vector<8x16xf32>
    %444 = arith.negf %443 : vector<8x16xf32>
    %445 = math.exp %444 : vector<8x16xf32>
    %cst_102 = arith.constant 1.000000e+00 : f32
    %446 = vector.broadcast %cst_102 : f32 to vector<8x16xf32>
    %447 = arith.addf %446, %445 : vector<8x16xf32>
    %448 = arith.divf %446, %447 : vector<8x16xf32>
    %449 = vector.extract_strided_slice %438 {offsets = [0, 16], sizes = [8, 16], strides = [1, 1]} : vector<8x48xf32> to vector<8x16xf32>
    %450 = vector.extract_strided_slice %440 {offsets = [0, 16], sizes = [8, 16], strides = [1, 1]} : vector<8x48xf32> to vector<8x16xf32>
    %451 = arith.addf %449, %450 : vector<8x16xf32>
    %452 = arith.negf %451 : vector<8x16xf32>
    %453 = math.exp %452 : vector<8x16xf32>
    %cst_103 = arith.constant 1.000000e+00 : f32
    %454 = vector.broadcast %cst_103 : f32 to vector<8x16xf32>
    %455 = arith.addf %454, %453 : vector<8x16xf32>
    %456 = arith.divf %454, %455 : vector<8x16xf32>
    %457 = vector.extract_strided_slice %438 {offsets = [0, 32], sizes = [8, 16], strides = [1, 1]} : vector<8x48xf32> to vector<8x16xf32>
    %458 = arith.addf %457, %41 : vector<8x16xf32>
    %459 = vector.extract_strided_slice %440 {offsets = [0, 32], sizes = [8, 16], strides = [1, 1]} : vector<8x48xf32> to vector<8x16xf32>
    %460 = arith.mulf %448, %459 : vector<8x16xf32>
    %461 = arith.addf %458, %460 : vector<8x16xf32>
    %462 = math.tanh %461 : vector<8x16xf32>
    %463 = arith.subf %403, %462 : vector<8x16xf32>
    %464 = arith.mulf %456, %463 : vector<8x16xf32>
    %465 = arith.addf %462, %464 : vector<8x16xf32>
    %466 = vector.broadcast %404 : i32 to vector<8x1xi32>
    %467 = arith.cmpi slt, %466, %19 : vector<8x1xi32>
    %468 = vector.shape_cast %467 : vector<8x1xi1> to vector<8x1xi1>
    %469 = vector.broadcast %468 : vector<8x1xi1> to vector<8x16xi1>
    %470 = arith.select %469, %434, %398 : vector<8x16xi1>, vector<8x16xf32>
    %471 = vector.broadcast %404 : i32 to vector<8x1xi32>
    %472 = arith.cmpi sge, %471, %21 : vector<8x1xi32>
    %473 = vector.shape_cast %472 : vector<8x1xi1> to vector<8x1xi1>
    %474 = vector.broadcast %473 : vector<8x1xi1> to vector<8x16xi1>
    %475 = arith.select %474, %465, %403 : vector<8x16xi1>, vector<8x16xf32>
    %c6_i32 = arith.constant 6 : i32
    %476 = arith.addi %43, %c6_i32 : i32
    %477 = arith.index_cast %476 : i32 to index
    %c0_104 = arith.constant 0 : index
    %c0_105 = arith.constant 0 : index
    %478 = vector.load %arg16[%477, %c0_104, %c0_105] : memref<8x8x48xf32, #tpu.memory_space<vmem>>, vector<1x8x48xf32>
    %479 = vector.shape_cast %478 : vector<1x8x48xf32> to vector<8x48xf32>
    %cst_106 = arith.constant dense<0.000000e+00> : vector<8x48xf32>
    %480 = tpu.matmul %470, %23, %cst_106 {dimension_numbers = #tpu.dot_dimension_numbers<[1], [0], [0], [1], [0, 0, 1, 1], [], []>} : vector<8x16xf32>, vector<16x48xf32>, vector<8x48xf32> -> vector<8x48xf32>
    %481 = arith.addf %480, %29 : vector<8x48xf32>
    %482 = vector.extract_strided_slice %479 {offsets = [0, 0], sizes = [8, 16], strides = [1, 1]} : vector<8x48xf32> to vector<8x16xf32>
    %483 = vector.extract_strided_slice %481 {offsets = [0, 0], sizes = [8, 16], strides = [1, 1]} : vector<8x48xf32> to vector<8x16xf32>
    %484 = arith.addf %482, %483 : vector<8x16xf32>
    %485 = arith.negf %484 : vector<8x16xf32>
    %486 = math.exp %485 : vector<8x16xf32>
    %cst_107 = arith.constant 1.000000e+00 : f32
    %487 = vector.broadcast %cst_107 : f32 to vector<8x16xf32>
    %488 = arith.addf %487, %486 : vector<8x16xf32>
    %489 = arith.divf %487, %488 : vector<8x16xf32>
    %490 = vector.extract_strided_slice %479 {offsets = [0, 16], sizes = [8, 16], strides = [1, 1]} : vector<8x48xf32> to vector<8x16xf32>
    %491 = vector.extract_strided_slice %481 {offsets = [0, 16], sizes = [8, 16], strides = [1, 1]} : vector<8x48xf32> to vector<8x16xf32>
    %492 = arith.addf %490, %491 : vector<8x16xf32>
    %493 = arith.negf %492 : vector<8x16xf32>
    %494 = math.exp %493 : vector<8x16xf32>
    %cst_108 = arith.constant 1.000000e+00 : f32
    %495 = vector.broadcast %cst_108 : f32 to vector<8x16xf32>
    %496 = arith.addf %495, %494 : vector<8x16xf32>
    %497 = arith.divf %495, %496 : vector<8x16xf32>
    %498 = vector.extract_strided_slice %479 {offsets = [0, 32], sizes = [8, 16], strides = [1, 1]} : vector<8x48xf32> to vector<8x16xf32>
    %499 = arith.addf %498, %37 : vector<8x16xf32>
    %500 = vector.extract_strided_slice %481 {offsets = [0, 32], sizes = [8, 16], strides = [1, 1]} : vector<8x48xf32> to vector<8x16xf32>
    %501 = arith.mulf %489, %500 : vector<8x16xf32>
    %502 = arith.addf %499, %501 : vector<8x16xf32>
    %503 = math.tanh %502 : vector<8x16xf32>
    %504 = arith.subf %470, %503 : vector<8x16xf32>
    %505 = arith.mulf %497, %504 : vector<8x16xf32>
    %506 = arith.addf %503, %505 : vector<8x16xf32>
    %c7_i32_109 = arith.constant 7 : i32
    %507 = arith.subi %c7_i32_109, %476 : i32
    %508 = arith.index_cast %507 : i32 to index
    %c0_110 = arith.constant 0 : index
    %c0_111 = arith.constant 0 : index
    %509 = vector.load %arg17[%508, %c0_110, %c0_111] : memref<8x8x48xf32, #tpu.memory_space<vmem>>, vector<1x8x48xf32>
    %510 = vector.shape_cast %509 : vector<1x8x48xf32> to vector<8x48xf32>
    %cst_112 = arith.constant dense<0.000000e+00> : vector<8x48xf32>
    %511 = tpu.matmul %475, %25, %cst_112 {dimension_numbers = #tpu.dot_dimension_numbers<[1], [0], [0], [1], [0, 0, 1, 1], [], []>} : vector<8x16xf32>, vector<16x48xf32>, vector<8x48xf32> -> vector<8x48xf32>
    %512 = arith.addf %511, %33 : vector<8x48xf32>
    %513 = vector.extract_strided_slice %510 {offsets = [0, 0], sizes = [8, 16], strides = [1, 1]} : vector<8x48xf32> to vector<8x16xf32>
    %514 = vector.extract_strided_slice %512 {offsets = [0, 0], sizes = [8, 16], strides = [1, 1]} : vector<8x48xf32> to vector<8x16xf32>
    %515 = arith.addf %513, %514 : vector<8x16xf32>
    %516 = arith.negf %515 : vector<8x16xf32>
    %517 = math.exp %516 : vector<8x16xf32>
    %cst_113 = arith.constant 1.000000e+00 : f32
    %518 = vector.broadcast %cst_113 : f32 to vector<8x16xf32>
    %519 = arith.addf %518, %517 : vector<8x16xf32>
    %520 = arith.divf %518, %519 : vector<8x16xf32>
    %521 = vector.extract_strided_slice %510 {offsets = [0, 16], sizes = [8, 16], strides = [1, 1]} : vector<8x48xf32> to vector<8x16xf32>
    %522 = vector.extract_strided_slice %512 {offsets = [0, 16], sizes = [8, 16], strides = [1, 1]} : vector<8x48xf32> to vector<8x16xf32>
    %523 = arith.addf %521, %522 : vector<8x16xf32>
    %524 = arith.negf %523 : vector<8x16xf32>
    %525 = math.exp %524 : vector<8x16xf32>
    %cst_114 = arith.constant 1.000000e+00 : f32
    %526 = vector.broadcast %cst_114 : f32 to vector<8x16xf32>
    %527 = arith.addf %526, %525 : vector<8x16xf32>
    %528 = arith.divf %526, %527 : vector<8x16xf32>
    %529 = vector.extract_strided_slice %510 {offsets = [0, 32], sizes = [8, 16], strides = [1, 1]} : vector<8x48xf32> to vector<8x16xf32>
    %530 = arith.addf %529, %41 : vector<8x16xf32>
    %531 = vector.extract_strided_slice %512 {offsets = [0, 32], sizes = [8, 16], strides = [1, 1]} : vector<8x48xf32> to vector<8x16xf32>
    %532 = arith.mulf %520, %531 : vector<8x16xf32>
    %533 = arith.addf %530, %532 : vector<8x16xf32>
    %534 = math.tanh %533 : vector<8x16xf32>
    %535 = arith.subf %475, %534 : vector<8x16xf32>
    %536 = arith.mulf %528, %535 : vector<8x16xf32>
    %537 = arith.addf %534, %536 : vector<8x16xf32>
    %538 = vector.broadcast %476 : i32 to vector<8x1xi32>
    %539 = arith.cmpi slt, %538, %19 : vector<8x1xi32>
    %540 = vector.shape_cast %539 : vector<8x1xi1> to vector<8x1xi1>
    %541 = vector.broadcast %540 : vector<8x1xi1> to vector<8x16xi1>
    %542 = arith.select %541, %506, %470 : vector<8x16xi1>, vector<8x16xf32>
    %543 = vector.broadcast %476 : i32 to vector<8x1xi32>
    %544 = arith.cmpi sge, %543, %21 : vector<8x1xi32>
    %545 = vector.shape_cast %544 : vector<8x1xi1> to vector<8x1xi1>
    %546 = vector.broadcast %545 : vector<8x1xi1> to vector<8x16xi1>
    %547 = arith.select %546, %537, %475 : vector<8x16xi1>, vector<8x16xf32>
    %c7_i32_115 = arith.constant 7 : i32
    %548 = arith.addi %43, %c7_i32_115 : i32
    %549 = arith.index_cast %548 : i32 to index
    %c0_116 = arith.constant 0 : index
    %c0_117 = arith.constant 0 : index
    %550 = vector.load %arg16[%549, %c0_116, %c0_117] : memref<8x8x48xf32, #tpu.memory_space<vmem>>, vector<1x8x48xf32>
    %551 = vector.shape_cast %550 : vector<1x8x48xf32> to vector<8x48xf32>
    %cst_118 = arith.constant dense<0.000000e+00> : vector<8x48xf32>
    %552 = tpu.matmul %542, %23, %cst_118 {dimension_numbers = #tpu.dot_dimension_numbers<[1], [0], [0], [1], [0, 0, 1, 1], [], []>} : vector<8x16xf32>, vector<16x48xf32>, vector<8x48xf32> -> vector<8x48xf32>
    %553 = arith.addf %552, %29 : vector<8x48xf32>
    %554 = vector.extract_strided_slice %551 {offsets = [0, 0], sizes = [8, 16], strides = [1, 1]} : vector<8x48xf32> to vector<8x16xf32>
    %555 = vector.extract_strided_slice %553 {offsets = [0, 0], sizes = [8, 16], strides = [1, 1]} : vector<8x48xf32> to vector<8x16xf32>
    %556 = arith.addf %554, %555 : vector<8x16xf32>
    %557 = arith.negf %556 : vector<8x16xf32>
    %558 = math.exp %557 : vector<8x16xf32>
    %cst_119 = arith.constant 1.000000e+00 : f32
    %559 = vector.broadcast %cst_119 : f32 to vector<8x16xf32>
    %560 = arith.addf %559, %558 : vector<8x16xf32>
    %561 = arith.divf %559, %560 : vector<8x16xf32>
    %562 = vector.extract_strided_slice %551 {offsets = [0, 16], sizes = [8, 16], strides = [1, 1]} : vector<8x48xf32> to vector<8x16xf32>
    %563 = vector.extract_strided_slice %553 {offsets = [0, 16], sizes = [8, 16], strides = [1, 1]} : vector<8x48xf32> to vector<8x16xf32>
    %564 = arith.addf %562, %563 : vector<8x16xf32>
    %565 = arith.negf %564 : vector<8x16xf32>
    %566 = math.exp %565 : vector<8x16xf32>
    %cst_120 = arith.constant 1.000000e+00 : f32
    %567 = vector.broadcast %cst_120 : f32 to vector<8x16xf32>
    %568 = arith.addf %567, %566 : vector<8x16xf32>
    %569 = arith.divf %567, %568 : vector<8x16xf32>
    %570 = vector.extract_strided_slice %551 {offsets = [0, 32], sizes = [8, 16], strides = [1, 1]} : vector<8x48xf32> to vector<8x16xf32>
    %571 = arith.addf %570, %37 : vector<8x16xf32>
    %572 = vector.extract_strided_slice %553 {offsets = [0, 32], sizes = [8, 16], strides = [1, 1]} : vector<8x48xf32> to vector<8x16xf32>
    %573 = arith.mulf %561, %572 : vector<8x16xf32>
    %574 = arith.addf %571, %573 : vector<8x16xf32>
    %575 = math.tanh %574 : vector<8x16xf32>
    %576 = arith.subf %542, %575 : vector<8x16xf32>
    %577 = arith.mulf %569, %576 : vector<8x16xf32>
    %578 = arith.addf %575, %577 : vector<8x16xf32>
    %c7_i32_121 = arith.constant 7 : i32
    %579 = arith.subi %c7_i32_121, %548 : i32
    %580 = arith.index_cast %579 : i32 to index
    %c0_122 = arith.constant 0 : index
    %c0_123 = arith.constant 0 : index
    %581 = vector.load %arg17[%580, %c0_122, %c0_123] : memref<8x8x48xf32, #tpu.memory_space<vmem>>, vector<1x8x48xf32>
    %582 = vector.shape_cast %581 : vector<1x8x48xf32> to vector<8x48xf32>
    %cst_124 = arith.constant dense<0.000000e+00> : vector<8x48xf32>
    %583 = tpu.matmul %547, %25, %cst_124 {dimension_numbers = #tpu.dot_dimension_numbers<[1], [0], [0], [1], [0, 0, 1, 1], [], []>} : vector<8x16xf32>, vector<16x48xf32>, vector<8x48xf32> -> vector<8x48xf32>
    %584 = arith.addf %583, %33 : vector<8x48xf32>
    %585 = vector.extract_strided_slice %582 {offsets = [0, 0], sizes = [8, 16], strides = [1, 1]} : vector<8x48xf32> to vector<8x16xf32>
    %586 = vector.extract_strided_slice %584 {offsets = [0, 0], sizes = [8, 16], strides = [1, 1]} : vector<8x48xf32> to vector<8x16xf32>
    %587 = arith.addf %585, %586 : vector<8x16xf32>
    %588 = arith.negf %587 : vector<8x16xf32>
    %589 = math.exp %588 : vector<8x16xf32>
    %cst_125 = arith.constant 1.000000e+00 : f32
    %590 = vector.broadcast %cst_125 : f32 to vector<8x16xf32>
    %591 = arith.addf %590, %589 : vector<8x16xf32>
    %592 = arith.divf %590, %591 : vector<8x16xf32>
    %593 = vector.extract_strided_slice %582 {offsets = [0, 16], sizes = [8, 16], strides = [1, 1]} : vector<8x48xf32> to vector<8x16xf32>
    %594 = vector.extract_strided_slice %584 {offsets = [0, 16], sizes = [8, 16], strides = [1, 1]} : vector<8x48xf32> to vector<8x16xf32>
    %595 = arith.addf %593, %594 : vector<8x16xf32>
    %596 = arith.negf %595 : vector<8x16xf32>
    %597 = math.exp %596 : vector<8x16xf32>
    %cst_126 = arith.constant 1.000000e+00 : f32
    %598 = vector.broadcast %cst_126 : f32 to vector<8x16xf32>
    %599 = arith.addf %598, %597 : vector<8x16xf32>
    %600 = arith.divf %598, %599 : vector<8x16xf32>
    %601 = vector.extract_strided_slice %582 {offsets = [0, 32], sizes = [8, 16], strides = [1, 1]} : vector<8x48xf32> to vector<8x16xf32>
    %602 = arith.addf %601, %41 : vector<8x16xf32>
    %603 = vector.extract_strided_slice %584 {offsets = [0, 32], sizes = [8, 16], strides = [1, 1]} : vector<8x48xf32> to vector<8x16xf32>
    %604 = arith.mulf %592, %603 : vector<8x16xf32>
    %605 = arith.addf %602, %604 : vector<8x16xf32>
    %606 = math.tanh %605 : vector<8x16xf32>
    %607 = arith.subf %547, %606 : vector<8x16xf32>
    %608 = arith.mulf %600, %607 : vector<8x16xf32>
    %609 = arith.addf %606, %608 : vector<8x16xf32>
    %610 = vector.broadcast %548 : i32 to vector<8x1xi32>
    %611 = arith.cmpi slt, %610, %19 : vector<8x1xi32>
    %612 = vector.shape_cast %611 : vector<8x1xi1> to vector<8x1xi1>
    %613 = vector.broadcast %612 : vector<8x1xi1> to vector<8x16xi1>
    %614 = arith.select %613, %578, %542 : vector<8x16xi1>, vector<8x16xf32>
    %615 = vector.broadcast %548 : i32 to vector<8x1xi32>
    %616 = arith.cmpi sge, %615, %21 : vector<8x1xi32>
    %617 = vector.shape_cast %616 : vector<8x1xi1> to vector<8x1xi1>
    %618 = vector.broadcast %617 : vector<8x1xi1> to vector<8x16xi1>
    %619 = arith.select %618, %609, %547 : vector<8x16xi1>, vector<8x16xf32>
    %c1_i32_127 = arith.constant 1 : i32
    %620 = tpu.concatenate %614, %619 in 1 : vector<8x16xf32>, vector<8x16xf32> -> vector<8x32xf32>
    %c0_128 = arith.constant 0 : index
    %c0_129 = arith.constant 0 : index
    %621 = vector.load %arg7[%c0_128, %c0_129] : memref<1x32xf32, #tpu.memory_space<vmem>>, vector<1x32xf32>
    %c0_130 = arith.constant 0 : index
    %c0_131 = arith.constant 0 : index
    %622 = vector.load %arg8[%c0_130, %c0_131] : memref<1x32xf32, #tpu.memory_space<vmem>>, vector<1x32xf32>
    %cst_132 = arith.constant dense<0.000000e+00> : vector<8xf32>
    %623 = vector.multi_reduction <add>, %620, %cst_132 [1] : vector<8x32xf32> to vector<8xf32>
    %624 = vector.shape_cast %623 : vector<8xf32> to vector<8x1xf32>
    %cst_133 = arith.constant 3.200000e+01 : f32
    %625 = vector.broadcast %cst_133 : f32 to vector<8x1xf32>
    %626 = arith.divf %624, %625 : vector<8x1xf32>
    %627 = vector.broadcast %626 : vector<8x1xf32> to vector<8x32xf32>
    %628 = arith.subf %620, %627 : vector<8x32xf32>
    %629 = arith.mulf %628, %628 : vector<8x32xf32>
    %cst_134 = arith.constant dense<0.000000e+00> : vector<8xf32>
    %630 = vector.multi_reduction <add>, %629, %cst_134 [1] : vector<8x32xf32> to vector<8xf32>
    %631 = vector.shape_cast %630 : vector<8xf32> to vector<8x1xf32>
    %cst_135 = arith.constant 3.200000e+01 : f32
    %632 = vector.broadcast %cst_135 : f32 to vector<8x1xf32>
    %633 = arith.divf %631, %632 : vector<8x1xf32>
    %634 = vector.broadcast %626 : vector<8x1xf32> to vector<8x32xf32>
    %635 = arith.subf %620, %634 : vector<8x32xf32>
    %cst_136 = arith.constant 9.99999974E-6 : f32
    %636 = vector.broadcast %cst_136 : f32 to vector<8x1xf32>
    %637 = arith.addf %633, %636 : vector<8x1xf32>
    %638 = math.rsqrt %637 : vector<8x1xf32>
    %639 = vector.broadcast %638 : vector<8x1xf32> to vector<8x32xf32>
    %640 = arith.mulf %635, %639 : vector<8x32xf32>
    %641 = vector.broadcast %621 : vector<1x32xf32> to vector<8x32xf32>
    %642 = arith.mulf %640, %641 : vector<8x32xf32>
    %643 = vector.broadcast %622 : vector<1x32xf32> to vector<8x32xf32>
    %644 = arith.addf %642, %643 : vector<8x32xf32>
    %c0_137 = arith.constant 0 : index
    %c0_138 = arith.constant 0 : index
    %645 = vector.load %arg9[%c0_137, %c0_138] : memref<32x16xf32, #tpu.memory_space<vmem>>, vector<32x16xf32>
    %cst_139 = arith.constant dense<0.000000e+00> : vector<8x16xf32>
    %646 = tpu.matmul %644, %645, %cst_139 {dimension_numbers = #tpu.dot_dimension_numbers<[1], [0], [0], [1], [0, 0, 1, 1], [], []>} : vector<8x32xf32>, vector<32x16xf32>, vector<8x16xf32> -> vector<8x16xf32>
    %c0_140 = arith.constant 0 : index
    %c0_141 = arith.constant 0 : index
    %647 = vector.load %arg10[%c0_140, %c0_141] : memref<1x16xf32, #tpu.memory_space<vmem>>, vector<1x16xf32>
    %648 = vector.broadcast %647 : vector<1x16xf32> to vector<8x16xf32>
    %649 = arith.addf %646, %648 : vector<8x16xf32>
    %c0_142 = arith.constant 0 : index
    %c0_143 = arith.constant 0 : index
    %650 = vector.load %arg11[%c0_142, %c0_143] : memref<1x16xf32, #tpu.memory_space<vmem>>, vector<1x16xf32>
    %c0_144 = arith.constant 0 : index
    %c0_145 = arith.constant 0 : index
    %651 = vector.load %arg12[%c0_144, %c0_145] : memref<1x16xf32, #tpu.memory_space<vmem>>, vector<1x16xf32>
    %cst_146 = arith.constant dense<0.000000e+00> : vector<8xf32>
    %652 = vector.multi_reduction <add>, %649, %cst_146 [1] : vector<8x16xf32> to vector<8xf32>
    %653 = vector.shape_cast %652 : vector<8xf32> to vector<8x1xf32>
    %cst_147 = arith.constant 1.600000e+01 : f32
    %654 = vector.broadcast %cst_147 : f32 to vector<8x1xf32>
    %655 = arith.divf %653, %654 : vector<8x1xf32>
    %656 = vector.broadcast %655 : vector<8x1xf32> to vector<8x16xf32>
    %657 = arith.subf %649, %656 : vector<8x16xf32>
    %658 = arith.mulf %657, %657 : vector<8x16xf32>
    %cst_148 = arith.constant dense<0.000000e+00> : vector<8xf32>
    %659 = vector.multi_reduction <add>, %658, %cst_148 [1] : vector<8x16xf32> to vector<8xf32>
    %660 = vector.shape_cast %659 : vector<8xf32> to vector<8x1xf32>
    %cst_149 = arith.constant 1.600000e+01 : f32
    %661 = vector.broadcast %cst_149 : f32 to vector<8x1xf32>
    %662 = arith.divf %660, %661 : vector<8x1xf32>
    %663 = vector.broadcast %655 : vector<8x1xf32> to vector<8x16xf32>
    %664 = arith.subf %649, %663 : vector<8x16xf32>
    %cst_150 = arith.constant 9.99999974E-6 : f32
    %665 = vector.broadcast %cst_150 : f32 to vector<8x1xf32>
    %666 = arith.addf %662, %665 : vector<8x1xf32>
    %667 = math.rsqrt %666 : vector<8x1xf32>
    %668 = vector.broadcast %667 : vector<8x1xf32> to vector<8x16xf32>
    %669 = arith.mulf %664, %668 : vector<8x16xf32>
    %670 = vector.broadcast %650 : vector<1x16xf32> to vector<8x16xf32>
    %671 = arith.mulf %669, %670 : vector<8x16xf32>
    %672 = vector.broadcast %651 : vector<1x16xf32> to vector<8x16xf32>
    %673 = arith.addf %671, %672 : vector<8x16xf32>
    %cst_151 = arith.constant 0.000000e+00 : f32
    %674 = vector.broadcast %cst_151 : f32 to vector<8x16xf32>
    %675 = arith.maximumf %673, %674 : vector<8x16xf32>
    %c0_152 = arith.constant 0 : index
    %c0_153 = arith.constant 0 : index
    %676 = vector.load %arg13[%c0_152, %c0_153] : memref<16x1xf32, #tpu.memory_space<vmem>>, vector<16x1xf32>
    %cst_154 = arith.constant dense<0.000000e+00> : vector<8x1xf32>
    %677 = tpu.matmul %675, %676, %cst_154 {dimension_numbers = #tpu.dot_dimension_numbers<[1], [0], [0], [1], [0, 0, 1, 1], [], []>} : vector<8x16xf32>, vector<16x1xf32>, vector<8x1xf32> -> vector<8x1xf32>
    %c0_155 = arith.constant 0 : index
    %c0_156 = arith.constant 0 : index
    %678 = vector.load %arg14[%c0_155, %c0_156] : memref<1x1xf32, #tpu.memory_space<vmem>>, vector<1x1xf32>
    %679 = vector.broadcast %678 : vector<1x1xf32> to vector<8x1xf32>
    %680 = arith.addf %677, %679 : vector<8x1xf32>
    %c0_157 = arith.constant 0 : index
    %c0_158 = arith.constant 0 : index
    %681 = vector.load %arg15[%c0_157, %c0_158] : memref<8x1xf32, #tpu.memory_space<vmem>>, vector<8x1xf32>
    tpu.vector_store %arg15[%c0_157, %c0_158], %680 {strides = array<i32>} : memref<8x1xf32, #tpu.memory_space<vmem>>, vector<8x1xf32>,
    return
  }
  func.func @transform_0(%arg0: i32) -> (i32, i32, i32) {
    %c0_i32 = arith.constant 0 : i32
    %c0_i32_0 = arith.constant 0 : i32
    %c0_i32_1 = arith.constant 0 : i32
    return %c0_i32, %arg0, %c0_i32_0 : i32, i32, i32
  }
  func.func @transform_1(%arg0: i32) -> (i32, i32) {
    %c0_i32 = arith.constant 0 : i32
    %c0_i32_0 = arith.constant 0 : i32
    return %arg0, %c0_i32 : i32, i32
  }
  func.func @transform_2(%arg0: i32) -> (i32, i32, i32) {
    %c0_i32 = arith.constant 0 : i32
    %c0_i32_0 = arith.constant 0 : i32
    %c0_i32_1 = arith.constant 0 : i32
    %c0_i32_2 = arith.constant 0 : i32
    return %c0_i32, %c0_i32_0, %c0_i32_1 : i32, i32, i32
  }
  func.func @transform_3(%arg0: i32) -> (i32, i32, i32) {
    %c0_i32 = arith.constant 0 : i32
    %c0_i32_0 = arith.constant 0 : i32
    %c0_i32_1 = arith.constant 0 : i32
    %c0_i32_2 = arith.constant 0 : i32
    return %c0_i32, %c0_i32_0, %c0_i32_1 : i32, i32, i32
  }
  func.func @transform_4(%arg0: i32) -> (i32, i32, i32) {
    %c0_i32 = arith.constant 0 : i32
    %c0_i32_0 = arith.constant 0 : i32
    %c0_i32_1 = arith.constant 0 : i32
    %c0_i32_2 = arith.constant 0 : i32
    return %c0_i32, %c0_i32_0, %c0_i32_1 : i32, i32, i32
  }
  func.func @transform_5(%arg0: i32) -> (i32, i32, i32) {
    %c0_i32 = arith.constant 0 : i32
    %c0_i32_0 = arith.constant 0 : i32
    %c0_i32_1 = arith.constant 0 : i32
    %c0_i32_2 = arith.constant 0 : i32
    return %c0_i32, %c0_i32_0, %c0_i32_1 : i32, i32, i32
  }
  func.func @transform_6(%arg0: i32) -> (i32, i32) {
    %c0_i32 = arith.constant 0 : i32
    %c0_i32_0 = arith.constant 0 : i32
    %c0_i32_1 = arith.constant 0 : i32
    return %c0_i32, %c0_i32_0 : i32, i32
  }
  func.func @transform_7(%arg0: i32) -> (i32, i32) {
    %c0_i32 = arith.constant 0 : i32
    %c0_i32_0 = arith.constant 0 : i32
    %c0_i32_1 = arith.constant 0 : i32
    return %c0_i32, %c0_i32_0 : i32, i32
  }
  func.func @transform_8(%arg0: i32) -> (i32, i32) {
    %c0_i32 = arith.constant 0 : i32
    %c0_i32_0 = arith.constant 0 : i32
    %c0_i32_1 = arith.constant 0 : i32
    return %c0_i32, %c0_i32_0 : i32, i32
  }
  func.func @transform_9(%arg0: i32) -> (i32, i32) {
    %c0_i32 = arith.constant 0 : i32
    %c0_i32_0 = arith.constant 0 : i32
    %c0_i32_1 = arith.constant 0 : i32
    return %c0_i32, %c0_i32_0 : i32, i32
  }
  func.func @transform_10(%arg0: i32) -> (i32, i32) {
    %c0_i32 = arith.constant 0 : i32
    %c0_i32_0 = arith.constant 0 : i32
    %c0_i32_1 = arith.constant 0 : i32
    return %c0_i32, %c0_i32_0 : i32, i32
  }
  func.func @transform_11(%arg0: i32) -> (i32, i32) {
    %c0_i32 = arith.constant 0 : i32
    %c0_i32_0 = arith.constant 0 : i32
    %c0_i32_1 = arith.constant 0 : i32
    return %c0_i32, %c0_i32_0 : i32, i32
  }
  func.func @transform_12(%arg0: i32) -> (i32, i32) {
    %c0_i32 = arith.constant 0 : i32
    %c0_i32_0 = arith.constant 0 : i32
    %c0_i32_1 = arith.constant 0 : i32
    return %c0_i32, %c0_i32_0 : i32, i32
  }
  func.func @transform_13(%arg0: i32) -> (i32, i32) {
    %c0_i32 = arith.constant 0 : i32
    %c0_i32_0 = arith.constant 0 : i32
    %c0_i32_1 = arith.constant 0 : i32
    return %c0_i32, %c0_i32_0 : i32, i32
  }
  func.func @transform_14(%arg0: i32) -> (i32, i32) {
    %c0_i32 = arith.constant 0 : i32
    %c0_i32_0 = arith.constant 0 : i32
    return %arg0, %c0_i32 : i32, i32
  }
}

</mosaic_0001>

<llo_original>
// kernel: causal_finetune_head.1
$region0: #{causal_finetune_head.1}
  #allocation0 [shape = 'u32[]', space=smem, size = 0x4, offset = 0x4, fixed_abs, tag = 'smem constant byte address 0x4 - core index']
  #allocation1 [shape = 'u32[144,128]{1,0:T(1,128)}', space=vmem, size = 0x12000, scoped, tag = 'internal scratch']
  #allocation2 [shape = 'f32[8,8,48]{2,1,0:T(8,128)}', space=vmem, size = 0x8000, scoped, tag = 'scratch operand']
  #allocation3 [shape = 'f32[8,8,48]{2,1,0:T(8,128)}', space=vmem, size = 0x8000, scoped, tag = 'scratch operand']
  #allocation4 [shape = 'f32[1,1]{1,0:T(1,128)S(1)}', space=vmem, size = 0x200, scoped, tag = 'scoped memory for causal_finetune_head.1']
  %s0 = inlined_call_operand.vmem [shape: f32[8,8,32], index: 0, kind: input, shape index: {}]
  %s1 = inlined_call_operand.vmem [shape: s32[8,1], index: 1, kind: input, shape index: {}]
  %s2 = inlined_call_operand.vmem [shape: f32[2,32,48], index: 2, kind: input, shape index: {}]
  %s3 = inlined_call_operand.vmem [shape: f32[2,16,48], index: 3, kind: input, shape index: {}]
  %s4 = inlined_call_operand.vmem [shape: f32[2,1,48], index: 4, kind: input, shape index: {}]
  %s5 = inlined_call_operand.vmem [shape: f32[2,1,16], index: 5, kind: input, shape index: {}]
  %s6 = inlined_call_operand.vmem [shape: f32[1,32], index: 6, kind: input, shape index: {}]
  %s7 = inlined_call_operand.vmem [shape: f32[1,32], index: 7, kind: input, shape index: {}]
  %s8 = inlined_call_operand.vmem [shape: f32[32,16], index: 8, kind: input, shape index: {}]
  %s9 = inlined_call_operand.vmem [shape: f32[1,16], index: 9, kind: input, shape index: {}]
  %s10 = inlined_call_operand.vmem [shape: f32[1,16], index: 10, kind: input, shape index: {}]
  %s11 = inlined_call_operand.vmem [shape: f32[1,16], index: 11, kind: input, shape index: {}]
  %s12 = inlined_call_operand.vmem [shape: f32[16,1], index: 12, kind: input, shape index: {}]
  %s13 = inlined_call_operand.<no memory space> [shape: f32[1,1], index: 13, kind: input, shape index: {}]
  %s14 = inlined_call_operand.vmem [shape: f32[8,1], index: 14, kind: output, shape index: {}]
  %s15 = sld [smem:[#allocation0]]
  $region66: #{causal_finetune_head.1} parent=0
    _
  %s17 = ssub.s32 1, %s15
  %s18 = scalar_select 0, %s17, %s15
  %v19 = vstv %s13
  %20 = vst [vmem:[#allocation4] sm:$0x1] %v19
  // Predicated region
  $region2: #{causal_finetune_head.1} parent=0 // pred_check
    _
  $region3: #{causal_finetune_head.1} parent=0 // pred_check_branch
    %22 = sbr.rel (0) target = $region5
  $region4: #{causal_finetune_head.1} parent=0 // pred_region
    _
  $region5: #{causal_finetune_head.1} parent=0 // pred_fallthru
    _
  // Predicated region
  $region6: #{causal_finetune_head.1} parent=0 // pred_check
    _
  $region7: #{causal_finetune_head.1} parent=0 // pred_check_branch
    %24 = sbr.rel (0) target = $region9
  $region8: #{causal_finetune_head.1} parent=0 // pred_region
    _
  $region9: #{causal_finetune_head.1} parent=0 // pred_fallthru
    _
  // Predicated region
  $region10: #{causal_finetune_head.1} parent=0 // pred_check
    _
  $region11: #{causal_finetune_head.1} parent=0 // pred_check_branch
    %26 = sbr.rel (0) target = $region13
  $region12: #{causal_finetune_head.1} parent=0 // pred_region
    _
  $region13: #{causal_finetune_head.1} parent=0 // pred_fallthru
    _
  // Predicated region
  $region14: #{causal_finetune_head.1} parent=0 // pred_check
    _
  $region15: #{causal_finetune_head.1} parent=0 // pred_check_branch
    %28 = sbr.rel (0) target = $region17
  $region16: #{causal_finetune_head.1} parent=0 // pred_region
    _
  $region17: #{causal_finetune_head.1} parent=0 // pred_fallthru
    _
  // Predicated region
  $region18: #{causal_finetune_head.1} parent=0 // pred_check
    _
  $region19: #{causal_finetune_head.1} parent=0 // pred_check_branch
    %30 = sbr.rel (0) target = $region21
  $region20: #{causal_finetune_head.1} parent=0 // pred_region
    _
  $region21: #{causal_finetune_head.1} parent=0 // pred_fallthru
    _
  // Predicated region
  $region22: #{causal_finetune_head.1} parent=0 // pred_check
    _
  $region23: #{causal_finetune_head.1} parent=0 // pred_check_branch
    %32 = sbr.rel (0) target = $region25
  $region24: #{causal_finetune_head.1} parent=0 // pred_region
    _
  $region25: #{causal_finetune_head.1} parent=0 // pred_fallthru
    _
  // Predicated region
  $region26: #{causal_finetune_head.1} parent=0 // pred_check
    _
  $region27: #{causal_finetune_head.1} parent=0 // pred_check_branch
    %34 = sbr.rel (0) target = $region29
  $region28: #{causal_finetune_head.1} parent=0 // pred_region
    _
  $region29: #{causal_finetune_head.1} parent=0 // pred_fallthru
    _
  // Predicated region
  $region30: #{causal_finetune_head.1} parent=0 // pred_check
    _
  $region31: #{causal_finetune_head.1} parent=0 // pred_check_branch
    %36 = sbr.rel (0) target = $region33
  $region32: #{causal_finetune_head.1} parent=0 // pred_region
    _
  $region33: #{causal_finetune_head.1} parent=0 // pred_fallthru
    _
  // Predicated region
  $region34: #{causal_finetune_head.1} parent=0 // pred_check
    _
  $region35: #{causal_finetune_head.1} parent=0 // pred_check_branch
    %38 = sbr.rel (0) target = $region37
  $region36: #{causal_finetune_head.1} parent=0 // pred_region
    _
  $region37: #{causal_finetune_head.1} parent=0 // pred_fallthru
    _
  // Predicated region
  $region38: #{causal_finetune_head.1} parent=0 // pred_check
    _
  $region39: #{causal_finetune_head.1} parent=0 // pred_check_branch
    %40 = sbr.rel (0) target = $region41
  $region40: #{causal_finetune_head.1} parent=0 // pred_region
    _
  $region41: #{causal_finetune_head.1} parent=0 // pred_fallthru
    _
  // Predicated region
  $region42: #{causal_finetune_head.1} parent=0 // pred_check
    _
  $region43: #{causal_finetune_head.1} parent=0 // pred_check_branch
    %42 = sbr.rel (0) target = $region45
  $region44: #{causal_finetune_head.1} parent=0 // pred_region
    _
  $region45: #{causal_finetune_head.1} parent=0 // pred_fallthru
    _
  // Predicated region
  $region46: #{causal_finetune_head.1} parent=0 // pred_check
    _
  $region47: #{causal_finetune_head.1} parent=0 // pred_check_branch
    %44 = sbr.rel (0) target = $region49
  $region48: #{causal_finetune_head.1} parent=0 // pred_region
    _
  $region49: #{causal_finetune_head.1} parent=0 // pred_fallthru
    _
  // Predicated region
  $region50: #{causal_finetune_head.1} parent=0 // pred_check
    _
  $region51: #{causal_finetune_head.1} parent=0 // pred_check_branch
    %46 = sbr.rel (0) target = $region53
  $region52: #{causal_finetune_head.1} parent=0 // pred_region
    _
  $region53: #{causal_finetune_head.1} parent=0 // pred_fallthru
    _
  // Predicated region
  $region54: #{causal_finetune_head.1} parent=0 // pred_check
    _
  $region55: #{causal_finetune_head.1} parent=0 // pred_check_branch
    %48 = sbr.rel (0) target = $region57
  $region56: #{causal_finetune_head.1} parent=0 // pred_region
    _
  $region57: #{causal_finetune_head.1} parent=0 // pred_fallthru
    _
  %v49 = vld [vmem:[%s2] sm:$0xff]
  %v50 = vld [vmem:[%s2 + $0x8] sm:$0xff]
  %v51 = vld [vmem:[%s2 + $0x10] sm:$0xff]
  %v52 = vld [vmem:[%s2 + $0x18] sm:$0xff]
  %s53 = scalar_lea.vmem %s2, 32
  %v54 = vld [vmem:[%s53] sm:$0xff]
  %v55 = vld [vmem:[%s53 + $0x8] sm:$0xff]
  %v56 = vld [vmem:[%s53 + $0x10] sm:$0xff]
  %v57 = vld [vmem:[%s53 + $0x18] sm:$0xff]
  %s58 = smul.u32 0, 8
  %s59 = scalar_lea.vmem %s0, %s58
  %v60 = vld [vmem:[%s59] sm:$0xff]
  %v61 = vld [vmem:[%s59 + $0x8] sm:$0xff]
  %v62 = vld [vmem:[%s59 + $0x10] sm:$0xff]
  %v63 = vld [vmem:[%s59 + $0x18] sm:$0xff]
  %v64 = vld [vmem:[%s59 + $0x20] sm:$0xff]
  %v65 = vld [vmem:[%s59 + $0x28] sm:$0xff]
  %v66 = vld [vmem:[%s59 + $0x30] sm:$0xff]
  %v67 = vld [vmem:[%s59 + $0x38] sm:$0xff]
  %vm68 = vcmask 261120
  %v70 = vsel %vm68, %v60, 0
  %v73 = vsel %vm68, %v61, 0
  %v76 = vsel %vm68, %v62, 0
  %v79 = vsel %vm68, %v63, 0
  %v82 = vsel %vm68, %v64, 0
  %v85 = vsel %vm68, %v65, 0
  %v88 = vsel %vm68, %v66, 0
  %v91 = vsel %vm68, %v67, 0
  %93 = vmatprep.subr.mxu0 0.0
  %94 = vmatpush1.msra.mxu0 %v49
  %95 = vmatprep.subr.mxu0 0.0
  %96 = vmatpush1.msra.mxu0 %v50
  %97 = vmatprep.subr.mxu0 0.0
  %98 = vmatpush1.msra.mxu0 %v51
  %99 = vmatprep.subr.mxu0 0.0
  %100 = vmatpush1.msra.mxu0 %v52
  %101 = vmatprep.subr.mxu0 0.0
  %102 = vmatpush1.msra.mxu0 0.0
  %103 = vmatprep.subr.mxu0 0.0
  %104 = vmatpush1.msra.mxu0 0.0
  %105 = vmatprep.subr.mxu0 0.0
  %106 = vmatpush1.msra.mxu0 0.0
  %107 = vmatprep.subr.mxu0 0.0
  %108 = vmatpush1.msra.mxu0 0.0
  %109 = vmatprep.subr.mxu0 0.0
  %110 = vmatpush1.msra.mxu0 0.0
  %111 = vmatprep.subr.mxu0 0.0
  %112 = vmatpush1.msra.mxu0 0.0
  %113 = vmatprep.subr.mxu0 0.0
  %114 = vmatpush1.msra.mxu0 0.0
  %115 = vmatprep.subr.mxu0 0.0
  %116 = vmatpush1.msra.mxu0 0.0
  %117 = vmatprep.subr.mxu0 0.0
  %118 = vmatpush1.msra.mxu0 0.0
  %119 = vmatprep.subr.mxu0 0.0
  %120 = vmatpush1.msra.mxu0 0.0
  %121 = vmatprep.subr.mxu0 0.0
  %122 = vmatpush1.msra.mxu0 0.0
  %123 = vmatprep.subr.mxu0 0.0
  %124 = vmatpush1.msra.mxu0 0.0
  %125 = vmatprep.subr.mxu0 0.0
  %126 = vmatpush1.msra.mxu0 0.0
  %127 = vmatprep.subr.mxu0 0.0
  %128 = vmatpush1.msra.mxu0 0.0
  %129 = vmatprep.subr.mxu0 0.0
  %130 = vmatpush1.msra.mxu0 0.0
  %131 = vmatprep.subr.mxu0 0.0
  %132 = vmatpush1.msra.mxu0 0.0
  %133 = vmatprep.subr.mxu0 0.0
  %134 = vmatpush1.msra.mxu0 0.0
  %135 = vmatprep.subr.mxu0 0.0
  %136 = vmatpush1.msra.mxu0 0.0
  %137 = vmatprep.subr.mxu0 0.0
  %138 = vmatpush1.msra.mxu0 0.0
  %139 = vmatprep.subr.mxu0 0.0
  %140 = vmatpush1.msra.mxu0 0.0
  %141 = vmatprep.subr.mxu0 0.0
  %142 = vmatpush1.msra.mxu0 0.0
  %143 = vmatprep.subr.mxu0 0.0
  %144 = vmatpush1.msra.mxu0 0.0
  %145 = vmatprep.subr.mxu0 0.0
  %146 = vmatpush1.msra.mxu0 0.0
  %147 = vmatprep.subr.mxu0 0.0
  %148 = vmatpush1.msra.mxu0 0.0
  %149 = vmatprep.subr.mxu0 0.0
  %150 = vmatpush1.msra.mxu0 0.0
  %151 = vmatprep.subr.mxu0 0.0
  %152 = vmatpush1.msra.mxu0 0.0
  %153 = vmatprep.subr.mxu0 0.0
  %154 = vmatpush1.msra.mxu0 0.0
  %155 = vmatprep.subr.mxu0 0.0
  %156 = vmatpush1.msra.mxu0 0.0
  %157 = vmatprep.mubr.f32.mxu0 0.0
  %158 = vmatmul.mubr.f32.gmra.mrb[0].mxu0 %v70
  %v159 = vpop.f32.mrb[0].mxu0
  %v160 = vadd.f32 0.0, %v159
  %v161 = vpop.f32.mrb[0].mxu0
  %162 = vmatprep.mubr.f32.mxu0 0.0
  %163 = vmatmul.mubr.f32.gmra.mrb[0].mxu0 %v73
  %v164 = vpop.f32.mrb[0].mxu0
  %v165 = vadd.f32 0.0, %v164
  %v166 = vpop.f32.mrb[0].mxu0
  %167 = vmatprep.mubr.f32.mxu0 0.0
  %168 = vmatmul.mubr.f32.gmra.mrb[0].mxu0 %v76
  %v169 = vpop.f32.mrb[0].mxu0
  %v170 = vadd.f32 0.0, %v169
  %v171 = vpop.f32.mrb[0].mxu0
  %172 = vmatprep.mubr.f32.mxu0 0.0
  %173 = vmatmul.mubr.f32.gmra.mrb[0].mxu0 %v79
  %v174 = vpop.f32.mrb[0].mxu0
  %v175 = vadd.f32 0.0, %v174
  %v176 = vpop.f32.mrb[0].mxu0
  %177 = vmatprep.mubr.f32.mxu0 0.0
  %178 = vmatmul.mubr.f32.gmra.mrb[0].mxu0 %v82
  %v179 = vpop.f32.mrb[0].mxu0
  %v180 = vadd.f32 0.0, %v179
  %v181 = vpop.f32.mrb[0].mxu0
  %182 = vmatprep.mubr.f32.mxu0 0.0
  %183 = vmatmul.mubr.f32.gmra.mrb[0].mxu0 %v85
  %v184 = vpop.f32.mrb[0].mxu0
  %v185 = vadd.f32 0.0, %v184
  %v186 = vpop.f32.mrb[0].mxu0
  %187 = vmatprep.mubr.f32.mxu0 0.0
  %188 = vmatmul.mubr.f32.gmra.mrb[0].mxu0 %v88
  %v189 = vpop.f32.mrb[0].mxu0
  %v190 = vadd.f32 0.0, %v189
  %v191 = vpop.f32.mrb[0].mxu0
  %192 = vmatprep.mubr.f32.mxu0 0.0
  %193 = vmatmul.mubr.f32.gmra.mrb[0].mxu0 %v91
  %v194 = vpop.f32.mrb[0].mxu0
  %v195 = vadd.f32 0.0, %v194
  %v196 = vpop.f32.mrb[0].mxu0
  %197 = vdwg.mxu0
  %198 = vmatprep.subr.mxu0 0.0
  %199 = vmatpush1.msra.mxu0 %v54
  %200 = vmatprep.subr.mxu0 0.0
  %201 = vmatpush1.msra.mxu0 %v55
  %202 = vmatprep.subr.mxu0 0.0
  %203 = vmatpush1.msra.mxu0 %v56
  %204 = vmatprep.subr.mxu0 0.0
  %205 = vmatpush1.msra.mxu0 %v57
  %206 = vmatprep.subr.mxu0 0.0
  %207 = vmatpush1.msra.mxu0 0.0
  %208 = vmatprep.subr.mxu0 0.0
  %209 = vmatpush1.msra.mxu0 0.0
  %210 = vmatprep.subr.mxu0 0.0
  %211 = vmatpush1.msra.mxu0 0.0
  %212 = vmatprep.subr.mxu0 0.0
  %213 = vmatpush1.msra.mxu0 0.0
  %214 = vmatprep.subr.mxu0 0.0
  %215 = vmatpush1.msra.mxu0 0.0
  %216 = vmatprep.subr.mxu0 0.0
  %217 = vmatpush1.msra.mxu0 0.0
  %218 = vmatprep.subr.mxu0 0.0
  %219 = vmatpush1.msra.mxu0 0.0
  %220 = vmatprep.subr.mxu0 0.0
  %221 = vmatpush1.msra.mxu0 0.0
  %222 = vmatprep.subr.mxu0 0.0
  %223 = vmatpush1.msra.mxu0 0.0
  %224 = vmatprep.subr.mxu0 0.0
  %225 = vmatpush1.msra.mxu0 0.0
  %226 = vmatprep.subr.mxu0 0.0
  %227 = vmatpush1.msra.mxu0 0.0
  %228 = vmatprep.subr.mxu0 0.0
  %229 = vmatpush1.msra.mxu0 0.0
  %230 = vmatprep.subr.mxu0 0.0
  %231 = vmatpush1.msra.mxu0 0.0
  %232 = vmatprep.subr.mxu0 0.0
  %233 = vmatpush1.msra.mxu0 0.0
  %234 = vmatprep.subr.mxu0 0.0
  %235 = vmatpush1.msra.mxu0 0.0
  %236 = vmatprep.subr.mxu0 0.0
  %237 = vmatpush1.msra.mxu0 0.0
  %238 = vmatprep.subr.mxu0 0.0
  %239 = vmatpush1.msra.mxu0 0.0
  %240 = vmatprep.subr.mxu0 0.0
  %241 = vmatpush1.msra.mxu0 0.0
  %242 = vmatprep.subr.mxu0 0.0
  %243 = vmatpush1.msra.mxu0 0.0
  %244 = vmatprep.subr.mxu0 0.0
  %245 = vmatpush1.msra.mxu0 0.0
  %246 = vmatprep.subr.mxu0 0.0
  %247 = vmatpush1.msra.mxu0 0.0
  %248 = vmatprep.subr.mxu0 0.0
  %249 = vmatpush1.msra.mxu0 0.0
  %250 = vmatprep.subr.mxu0 0.0
  %251 = vmatpush1.msra.mxu0 0.0
  %252 = vmatprep.subr.mxu0 0.0
  %253 = vmatpush1.msra.mxu0 0.0
  %254 = vmatprep.subr.mxu0 0.0
  %255 = vmatpush1.msra.mxu0 0.0
  %256 = vmatprep.subr.mxu0 0.0
  %257 = vmatpush1.msra.mxu0 0.0
  %258 = vmatprep.subr.mxu0 0.0
  %259 = vmatpush1.msra.mxu0 0.0
  %260 = vmatprep.subr.mxu0 0.0
  %261 = vmatpush1.msra.mxu0 0.0
  %262 = vmatprep.mubr.f32.mxu0 0.0
  %263 = vmatmul.mubr.f32.gmra.mrb[0].mxu0 %v70
  %v264 = vpop.f32.mrb[0].mxu0
  %v265 = vadd.f32 0.0, %v264
  %v266 = vpop.f32.mrb[0].mxu0
  %267 = vmatprep.mubr.f32.mxu0 0.0
  %268 = vmatmul.mubr.f32.gmra.mrb[0].mxu0 %v73
  %v269 = vpop.f32.mrb[0].mxu0
  %v270 = vadd.f32 0.0, %v269
  %v271 = vpop.f32.mrb[0].mxu0
  %272 = vmatprep.mubr.f32.mxu0 0.0
  %273 = vmatmul.mubr.f32.gmra.mrb[0].mxu0 %v76
  %v274 = vpop.f32.mrb[0].mxu0
  %v275 = vadd.f32 0.0, %v274
  %v276 = vpop.f32.mrb[0].mxu0
  %277 = vmatprep.mubr.f32.mxu0 0.0
  %278 = vmatmul.mubr.f32.gmra.mrb[0].mxu0 %v79
  %v279 = vpop.f32.mrb[0].mxu0
  %v280 = vadd.f32 0.0, %v279
  %v281 = vpop.f32.mrb[0].mxu0
  %282 = vmatprep.mubr.f32.mxu0 0.0
  %283 = vmatmul.mubr.f32.gmra.mrb[0].mxu0 %v82
  %v284 = vpop.f32.mrb[0].mxu0
  %v285 = vadd.f32 0.0, %v284
  %v286 = vpop.f32.mrb[0].mxu0
  %287 = vmatprep.mubr.f32.mxu0 0.0
  %288 = vmatmul.mubr.f32.gmra.mrb[0].mxu0 %v85
  %v289 = vpop.f32.mrb[0].mxu0
  %v290 = vadd.f32 0.0, %v289
  %v291 = vpop.f32.mrb[0].mxu0
  %292 = vmatprep.mubr.f32.mxu0 0.0
  %293 = vmatmul.mubr.f32.gmra.mrb[0].mxu0 %v88
  %v294 = vpop.f32.mrb[0].mxu0
  %v295 = vadd.f32 0.0, %v294
  %v296 = vpop.f32.mrb[0].mxu0
  %297 = vmatprep.mubr.f32.mxu0 0.0
  %298 = vmatmul.mubr.f32.gmra.mrb[0].mxu0 %v91
  %v299 = vpop.f32.mrb[0].mxu0
  %v300 = vadd.f32 0.0, %v299
  %v301 = vpop.f32.mrb[0].mxu0
  %302 = vdwg.mxu0
  %s303 = scalar_lea.vmem [#allocation2], %s58
  %vm304 = vcmask 392192
  %305 = vst.msk [vmem:[%s303] sm:$0xff] %vm304, %v160
  %306 = vst.msk [vmem:[%s303 + $0x8] sm:$0xff] %vm304, %v165
  %307 = vst.msk [vmem:[%s303 + $0x10] sm:$0xff] %vm304, %v170
  %308 = vst.msk [vmem:[%s303 + $0x18] sm:$0xff] %vm304, %v175
  %309 = vst.msk [vmem:[%s303 + $0x20] sm:$0xff] %vm304, %v180
  %310 = vst.msk [vmem:[%s303 + $0x28] sm:$0xff] %vm304, %v185
  %311 = vst.msk [vmem:[%s303 + $0x30] sm:$0xff] %vm304, %v190
  %312 = vst.msk [vmem:[%s303 + $0x38] sm:$0xff] %vm304, %v195
  %s313 = scalar_lea.vmem [#allocation3], %s58
  %314 = vst.msk [vmem:[%s313] sm:$0xff] %vm304, %v265
  %315 = vst.msk [vmem:[%s313 + $0x8] sm:$0xff] %vm304, %v270
  %316 = vst.msk [vmem:[%s313 + $0x10] sm:$0xff] %vm304, %v275
  %317 = vst.msk [vmem:[%s313 + $0x18] sm:$0xff] %vm304, %v280
  %318 = vst.msk [vmem:[%s313 + $0x20] sm:$0xff] %vm304, %v285
  %319 = vst.msk [vmem:[%s313 + $0x28] sm:$0xff] %vm304, %v290
  %320 = vst.msk [vmem:[%s313 + $0x30] sm:$0xff] %vm304, %v295
  %321 = vst.msk [vmem:[%s313 + $0x38] sm:$0xff] %vm304, %v300
  %v322 = vld [vmem:[%s1] sm:$0xff]
  %v323 = vsub.s32 8, %v322
  %v324 = vld [vmem:[%s3] sm:$0xff]
  %v325 = vld [vmem:[%s3 + $0x8] sm:$0xff]
  %s326 = scalar_lea.vmem %s3, 16
  %v327 = vld [vmem:[%s326] sm:$0xff]
  %v328 = vld [vmem:[%s326 + $0x8] sm:$0xff]
  %v329 = vld [vmem:[%s4] sm:$0x1]
  %v331 = vlaneseq
  %v332 = vshrl.u32 %v331, 7
  %v333 = vsub.s32 0, %v332
  %v334 = vrot.slane %v329, %v333
  %s336 = scalar_lea.vmem %s4, 1
  %v337 = vld [vmem:[%s336] sm:$0x1]
  %v339 = vlaneseq
  %v340 = vshrl.u32 %v339, 7
  %v341 = vsub.s32 0, %v340
  %v342 = vrot.slane %v337, %v341
  %v344 = vld [vmem:[%s5] sm:$0x1]
  %v346 = vlaneseq
  %v347 = vshrl.u32 %v346, 7
  %v348 = vsub.s32 0, %v347
  %v349 = vrot.slane %v344, %v348
  %s350 = scalar_lea.vmem %s5, 1
  %v351 = vld [vmem:[%s350] sm:$0x1]
  %v353 = vlaneseq
  %v354 = vshrl.u32 %v353, 7
  %v355 = vsub.s32 0, %v354
  %v356 = vrot.slane %v351, %v355
  %v357 = vld [vmem:[#allocation2] sm:$0xff]
  %vm358 = vcmask 130048
  %v360 = vsel %vm358, 0.0, 0
  %362 = vmatprep.subr.mxu0 0.0
  %363 = vmatpush1.msra.mxu0 %v324
  %364 = vmatprep.subr.mxu0 0.0
  %365 = vmatpush1.msra.mxu0 %v325
  %366 = vmatprep.subr.mxu0 0.0
  %367 = vmatpush1.msra.mxu0 0.0
  %368 = vmatprep.subr.mxu0 0.0
  %369 = vmatpush1.msra.mxu0 0.0
  %370 = vmatprep.subr.mxu0 0.0
  %371 = vmatpush1.msra.mxu0 0.0
  %372 = vmatprep.subr.mxu0 0.0
  %373 = vmatpush1.msra.mxu0 0.0
  %374 = vmatprep.subr.mxu0 0.0
  %375 = vmatpush1.msra.mxu0 0.0
  %376 = vmatprep.subr.mxu0 0.0
  %377 = vmatpush1.msra.mxu0 0.0
  %378 = vmatprep.subr.mxu0 0.0
  %379 = vmatpush1.msra.mxu0 0.0
  %380 = vmatprep.subr.mxu0 0.0
  %381 = vmatpush1.msra.mxu0 0.0
  %382 = vmatprep.subr.mxu0 0.0
  %383 = vmatpush1.msra.mxu0 0.0
  %384 = vmatprep.subr.mxu0 0.0
  %385 = vmatpush1.msra.mxu0 0.0
  %386 = vmatprep.subr.mxu0 0.0
  %387 = vmatpush1.msra.mxu0 0.0
  %388 = vmatprep.subr.mxu0 0.0
  %389 = vmatpush1.msra.mxu0 0.0
  %390 = vmatprep.subr.mxu0 0.0
  %391 = vmatpush1.msra.mxu0 0.0
  %392 = vmatprep.subr.mxu0 0.0
  %393 = vmatpush1.msra.mxu0 0.0
  %394 = vmatprep.subr.mxu0 0.0
  %395 = vmatpush1.msra.mxu0 0.0
  %396 = vmatprep.subr.mxu0 0.0
  %397 = vmatpush1.msra.mxu0 0.0
  %398 = vmatprep.subr.mxu0 0.0
  %399 = vmatpush1.msra.mxu0 0.0
  %400 = vmatprep.subr.mxu0 0.0
  %401 = vmatpush1.msra.mxu0 0.0
  %402 = vmatprep.subr.mxu0 0.0
  %403 = vmatpush1.msra.mxu0 0.0
  %404 = vmatprep.subr.mxu0 0.0
  %405 = vmatpush1.msra.mxu0 0.0
  %406 = vmatprep.subr.mxu0 0.0
  %407 = vmatpush1.msra.mxu0 0.0
  %408 = vmatprep.subr.mxu0 0.0
  %409 = vmatpush1.msra.mxu0 0.0
  %410 = vmatprep.subr.mxu0 0.0
  %411 = vmatpush1.msra.mxu0 0.0
  %412 = vmatprep.subr.mxu0 0.0
  %413 = vmatpush1.msra.mxu0 0.0
  %414 = vmatprep.subr.mxu0 0.0
  %415 = vmatpush1.msra.mxu0 0.0
  %416 = vmatprep.subr.mxu0 0.0
  %417 = vmatpush1.msra.mxu0 0.0
  %418 = vmatprep.subr.mxu0 0.0
  %419 = vmatpush1.msra.mxu0 0.0
  %420 = vmatprep.subr.mxu0 0.0
  %421 = vmatpush1.msra.mxu0 0.0
  %422 = vmatprep.subr.mxu0 0.0
  %423 = vmatpush1.msra.mxu0 0.0
  %424 = vmatprep.subr.mxu0 0.0
  %425 = vmatpush1.msra.mxu0 0.0
  %426 = vmatprep.mubr.f32.mxu0 0.0
  %427 = vmatmul.mubr.f32.gmra.mrb[0].mxu0 %v360
  %v428 = vpop.f32.mrb[0].mxu0
  %v429 = vadd.f32 %v334, %v428
  %v430 = vpop.f32.mrb[0].mxu0
  %431 = vdwg.mxu0
  %v432 = vadd.f32 %v357, %v429
  %v433 = vxor.u32 %v432, 2147483648
  %v434 = vmul.f32 %v433, 1.442695
  %v435 = vpow.pop %v434
  %v436 = vadd.f32 %v435, 1.0
  %v437 = vrcp.pop %v436
  %v438 = vmul.f32 1.0, %v437
  %439 = vrot.lane.b32.xlu0 %v349, 32
  %v440 = vpop.permute.xlu0 %439
  %v442 = vadd.f32 %v357, %v440
  %444 = vrot.lane.b32.xlu0 %v429, 96
  %v445 = vpop.permute.xlu0 %444
  %v447 = vmul.f32 %v438, %v445
  %449 = vrot.lane.b32.xlu0 %v447, 32
  %v450 = vpop.permute.xlu0 %449
  %v452 = vadd.f32 %v442, %v450
  %v453 = vtanh.pop %v452
  %v454 = vsub.f32 0.0, %v453
  %456 = vrot.lane.b32.xlu0 %v454, 112
  %v457 = vpop.permute.xlu0 %456
  %v459 = vmul.f32 %v438, %v457
  %461 = vrot.lane.b32.xlu0 %v459, 16
  %v462 = vpop.permute.xlu0 %461
  %v464 = vadd.f32 %v453, %v462
  %s465 = scalar_lea.vmem [#allocation3], 56
  %v466 = vld [vmem:[%s465] sm:$0xff]
  %467 = vmatprep.subr.mxu0 0.0
  %468 = vmatpush1.msra.mxu0 %v327
  %469 = vmatprep.subr.mxu0 0.0
  %470 = vmatpush1.msra.mxu0 %v328
  %471 = vmatprep.subr.mxu0 0.0
  %472 = vmatpush1.msra.mxu0 0.0
  %473 = vmatprep.subr.mxu0 0.0
  %474 = vmatpush1.msra.mxu0 0.0
  %475 = vmatprep.subr.mxu0 0.0
  %476 = vmatpush1.msra.mxu0 0.0
  %477 = vmatprep.subr.mxu0 0.0
  %478 = vmatpush1.msra.mxu0 0.0
  %479 = vmatprep.subr.mxu0 0.0
  %480 = vmatpush1.msra.mxu0 0.0
  %481 = vmatprep.subr.mxu0 0.0
  %482 = vmatpush1.msra.mxu0 0.0
  %483 = vmatprep.subr.mxu0 0.0
  %484 = vmatpush1.msra.mxu0 0.0
  %485 = vmatprep.subr.mxu0 0.0
  %486 = vmatpush1.msra.mxu0 0.0
  %487 = vmatprep.subr.mxu0 0.0
  %488 = vmatpush1.msra.mxu0 0.0
  %489 = vmatprep.subr.mxu0 0.0
  %490 = vmatpush1.msra.mxu0 0.0
  %491 = vmatprep.subr.mxu0 0.0
  %492 = vmatpush1.msra.mxu0 0.0
  %493 = vmatprep.subr.mxu0 0.0
  %494 = vmatpush1.msra.mxu0 0.0
  %495 = vmatprep.subr.mxu0 0.0
  %496 = vmatpush1.msra.mxu0 0.0
  %497 = vmatprep.subr.mxu0 0.0
  %498 = vmatpush1.msra.mxu0 0.0
  %499 = vmatprep.subr.mxu0 0.0
  %500 = vmatpush1.msra.mxu0 0.0
  %501 = vmatprep.subr.mxu0 0.0
  %502 = vmatpush1.msra.mxu0 0.0
  %503 = vmatprep.subr.mxu0 0.0
  %504 = vmatpush1.msra.mxu0 0.0
  %505 = vmatprep.subr.mxu0 0.0
  %506 = vmatpush1.msra.mxu0 0.0
  %507 = vmatprep.subr.mxu0 0.0
  %508 = vmatpush1.msra.mxu0 0.0
  %509 = vmatprep.subr.mxu0 0.0
  %510 = vmatpush1.msra.mxu0 0.0
  %511 = vmatprep.subr.mxu0 0.0
  %512 = vmatpush1.msra.mxu0 0.0
  %513 = vmatprep.subr.mxu0 0.0
  %514 = vmatpush1.msra.mxu0 0.0
  %515 = vmatprep.subr.mxu0 0.0
  %516 = vmatpush1.msra.mxu0 0.0
  %517 = vmatprep.subr.mxu0 0.0
  %518 = vmatpush1.msra.mxu0 0.0
  %519 = vmatprep.subr.mxu0 0.0
  %520 = vmatpush1.msra.mxu0 0.0
  %521 = vmatprep.subr.mxu0 0.0
  %522 = vmatpush1.msra.mxu0 0.0
  %523 = vmatprep.subr.mxu0 0.0
  %524 = vmatpush1.msra.mxu0 0.0
  %525 = vmatprep.subr.mxu0 0.0
  %526 = vmatpush1.msra.mxu0 0.0
  %527 = vmatprep.subr.mxu0 0.0
  %528 = vmatpush1.msra.mxu0 0.0
  %529 = vmatprep.subr.mxu0 0.0
  %530 = vmatpush1.msra.mxu0 0.0
  %531 = vmatprep.mubr.f32.mxu0 0.0
  %532 = vmatmul.mubr.f32.gmra.mrb[0].mxu0 %v360
  %v533 = vpop.f32.mrb[0].mxu0
  %v534 = vadd.f32 %v342, %v533
  %v535 = vpop.f32.mrb[0].mxu0
  %536 = vdwg.mxu0
  %v537 = vadd.f32 %v466, %v534
  %v538 = vxor.u32 %v537, 2147483648
  %v539 = vmul.f32 %v538, 1.442695
  %v540 = vpow.pop %v539
  %v541 = vadd.f32 %v540, 1.0
  %v542 = vrcp.pop %v541
  %v543 = vmul.f32 1.0, %v542
  %544 = vrot.lane.b32.xlu0 %v356, 32
  %v545 = vpop.permute.xlu0 %544
  %v547 = vadd.f32 %v466, %v545
  %549 = vrot.lane.b32.xlu0 %v534, 96
  %v550 = vpop.permute.xlu0 %549
  %v552 = vmul.f32 %v543, %v550
  %554 = vrot.lane.b32.xlu0 %v552, 32
  %v555 = vpop.permute.xlu0 %554
  %v557 = vadd.f32 %v547, %v555
  %v558 = vtanh.pop %v557
  %v559 = vsub.f32 0.0, %v558
  %561 = vrot.lane.b32.xlu0 %v559, 112
  %v562 = vpop.permute.xlu0 %561
  %v564 = vmul.f32 %v543, %v562
  %566 = vrot.lane.b32.xlu0 %v564, 16
  %v567 = vpop.permute.xlu0 %566
  %v569 = vadd.f32 %v558, %v567
  %vm570 = vcmp.gt.s32.totalorder %v322, 0
  %v571 = vsel %vm570, 1, 0
  %572 = vset.pattern.permute.xlu0 0
  %573 = vperm.xlu0 %572, %v571
  %v574 = vpop.permute.xlu0 %573
  %vm575 = vcmp.eq.s32.totalorder %v574, 1
  %v576 = vsel %vm575, %v464, 0.0
  %vm577 = vcmp.le.s32.totalorder %v323, 0
  %v578 = vsel %vm577, 1, 0
  %579 = vset.pattern.permute.xlu0 0
  %580 = vperm.xlu0 %579, %v578
  %v581 = vpop.permute.xlu0 %580
  %vm582 = vcmp.eq.s32.totalorder %v581, 1
  %v583 = vsel %vm582, %v569, 0.0
  %s584 = scalar_lea.vmem [#allocation2], 8
  %v585 = vld [vmem:[%s584] sm:$0xff]
  %587 = vrot.lane.b32.xlu0 %v576, 96
  %v588 = vpop.permute.xlu0 %587
  %v589 = vsel %vm358, %v588, 0
  %591 = vmatprep.subr.mxu0 0.0
  %592 = vmatpush1.msra.mxu0 %v324
  %593 = vmatprep.subr.mxu0 0.0
  %594 = vmatpush1.msra.mxu0 %v325
  %595 = vmatprep.subr.mxu0 0.0
  %596 = vmatpush1.msra.mxu0 0.0
  %597 = vmatprep.subr.mxu0 0.0
  %598 = vmatpush1.msra.mxu0 0.0
  %599 = vmatprep.subr.mxu0 0.0
  %600 = vmatpush1.msra.mxu0 0.0
  %601 = vmatprep.subr.mxu0 0.0
  %602 = vmatpush1.msra.mxu0 0.0
  %603 = vmatprep.subr.mxu0 0.0
  %604 = vmatpush1.msra.mxu0 0.0
  %605 = vmatprep.subr.mxu0 0.0
  %606 = vmatpush1.msra.mxu0 0.0
  %607 = vmatprep.subr.mxu0 0.0
  %608 = vmatpush1.msra.mxu0 0.0
  %609 = vmatprep.subr.mxu0 0.0
  %610 = vmatpush1.msra.mxu0 0.0
  %611 = vmatprep.subr.mxu0 0.0
  %612 = vmatpush1.msra.mxu0 0.0
  %613 = vmatprep.subr.mxu0 0.0
  %614 = vmatpush1.msra.mxu0 0.0
  %615 = vmatprep.subr.mxu0 0.0
  %616 = vmatpush1.msra.mxu0 0.0
  %617 = vmatprep.subr.mxu0 0.0
  %618 = vmatpush1.msra.mxu0 0.0
  %619 = vmatprep.subr.mxu0 0.0
  %620 = vmatpush1.msra.mxu0 0.0
  %621 = vmatprep.subr.mxu0 0.0
  %622 = vmatpush1.msra.mxu0 0.0
  %623 = vmatprep.subr.mxu0 0.0
  %624 = vmatpush1.msra.mxu0 0.0
  %625 = vmatprep.subr.mxu0 0.0
  %626 = vmatpush1.msra.mxu0 0.0
  %627 = vmatprep.subr.mxu0 0.0
  %628 = vmatpush1.msra.mxu0 0.0
  %629 = vmatprep.subr.mxu0 0.0
  %630 = vmatpush1.msra.mxu0 0.0
  %631 = vmatprep.subr.mxu0 0.0
  %632 = vmatpush1.msra.mxu0 0.0
  %633 = vmatprep.subr.mxu0 0.0
  %634 = vmatpush1.msra.mxu0 0.0
  %635 = vmatprep.subr.mxu0 0.0
  %636 = vmatpush1.msra.mxu0 0.0
  %637 = vmatprep.subr.mxu0 0.0
  %638 = vmatpush1.msra.mxu0 0.0
  %639 = vmatprep.subr.mxu0 0.0
  %640 = vmatpush1.msra.mxu0 0.0
  %641 = vmatprep.subr.mxu0 0.0
  %642 = vmatpush1.msra.mxu0 0.0
  %643 = vmatprep.subr.mxu0 0.0
  %644 = vmatpush1.msra.mxu0 0.0
  %645 = vmatprep.subr.mxu0 0.0
  %646 = vmatpush1.msra.mxu0 0.0
  %647 = vmatprep.subr.mxu0 0.0
  %648 = vmatpush1.msra.mxu0 0.0
  %649 = vmatprep.subr.mxu0 0.0
  %650 = vmatpush1.msra.mxu0 0.0
  %651 = vmatprep.subr.mxu0 0.0
  %652 = vmatpush1.msra.mxu0 0.0
  %653 = vmatprep.subr.mxu0 0.0
  %654 = vmatpush1.msra.mxu0 0.0
  %655 = vmatprep.mubr.f32.mxu0 0.0
  %656 = vmatmul.mubr.f32.gmra.mrb[0].mxu0 %v589
  %v657 = vpop.f32.mrb[0].mxu0
  %v658 = vadd.f32 %v334, %v657
  %v659 = vpop.f32.mrb[0].mxu0
  %660 = vdwg.mxu0
  %v661 = vadd.f32 %v585, %v658
  %v662 = vxor.u32 %v661, 2147483648
  %v663 = vmul.f32 %v662, 1.442695
  %v664 = vpow.pop %v663
  %v665 = vadd.f32 %v664, 1.0
  %v666 = vrcp.pop %v665
  %v667 = vmul.f32 1.0, %v666
  %v668 = vadd.f32 %v585, %v440
  %670 = vrot.lane.b32.xlu0 %v658, 96
  %v671 = vpop.permute.xlu0 %670
  %v673 = vmul.f32 %v667, %v671
  %675 = vrot.lane.b32.xlu0 %v673, 32
  %v676 = vpop.permute.xlu0 %675
  %v678 = vadd.f32 %v668, %v676
  %v679 = vtanh.pop %v678
  %v680 = vsub.f32 %v576, %v679
  %682 = vrot.lane.b32.xlu0 %v680, 112
  %v683 = vpop.permute.xlu0 %682
  %v685 = vmul.f32 %v667, %v683
  %687 = vrot.lane.b32.xlu0 %v685, 16
  %v688 = vpop.permute.xlu0 %687
  %v690 = vadd.f32 %v679, %v688
  %s691 = scalar_lea.vmem [#allocation3], 48
  %v692 = vld [vmem:[%s691] sm:$0xff]
  %694 = vrot.lane.b32.xlu0 %v583, 96
  %v695 = vpop.permute.xlu0 %694
  %v696 = vsel %vm358, %v695, 0
  %698 = vmatprep.subr.mxu0 0.0
  %699 = vmatpush1.msra.mxu0 %v327
  %700 = vmatprep.subr.mxu0 0.0
  %701 = vmatpush1.msra.mxu0 %v328
  %702 = vmatprep.subr.mxu0 0.0
  %703 = vmatpush1.msra.mxu0 0.0
  %704 = vmatprep.subr.mxu0 0.0
  %705 = vmatpush1.msra.mxu0 0.0
  %706 = vmatprep.subr.mxu0 0.0
  %707 = vmatpush1.msra.mxu0 0.0
  %708 = vmatprep.subr.mxu0 0.0
  %709 = vmatpush1.msra.mxu0 0.0
  %710 = vmatprep.subr.mxu0 0.0
  %711 = vmatpush1.msra.mxu0 0.0
  %712 = vmatprep.subr.mxu0 0.0
  %713 = vmatpush1.msra.mxu0 0.0
  %714 = vmatprep.subr.mxu0 0.0
  %715 = vmatpush1.msra.mxu0 0.0
  %716 = vmatprep.subr.mxu0 0.0
  %717 = vmatpush1.msra.mxu0 0.0
  %718 = vmatprep.subr.mxu0 0.0
  %719 = vmatpush1.msra.mxu0 0.0
  %720 = vmatprep.subr.mxu0 0.0
  %721 = vmatpush1.msra.mxu0 0.0
  %722 = vmatprep.subr.mxu0 0.0
  %723 = vmatpush1.msra.mxu0 0.0
  %724 = vmatprep.subr.mxu0 0.0
  %725 = vmatpush1.msra.mxu0 0.0
  %726 = vmatprep.subr.mxu0 0.0
  %727 = vmatpush1.msra.mxu0 0.0
  %728 = vmatprep.subr.mxu0 0.0
  %729 = vmatpush1.msra.mxu0 0.0
  %730 = vmatprep.subr.mxu0 0.0
  %731 = vmatpush1.msra.mxu0 0.0
  %732 = vmatprep.subr.mxu0 0.0
  %733 = vmatpush1.msra.mxu0 0.0
  %734 = vmatprep.subr.mxu0 0.0
  %735 = vmatpush1.msra.mxu0 0.0
  %736 = vmatprep.subr.mxu0 0.0
  %737 = vmatpush1.msra.mxu0 0.0
  %738 = vmatprep.subr.mxu0 0.0
  %739 = vmatpush1.msra.mxu0 0.0
  %740 = vmatprep.subr.mxu0 0.0
  %741 = vmatpush1.msra.mxu0 0.0
  %742 = vmatprep.subr.mxu0 0.0
  %743 = vmatpush1.msra.mxu0 0.0
  %744 = vmatprep.subr.mxu0 0.0
  %745 = vmatpush1.msra.mxu0 0.0
  %746 = vmatprep.subr.mxu0 0.0
  %747 = vmatpush1.msra.mxu0 0.0
  %748 = vmatprep.subr.mxu0 0.0
  %749 = vmatpush1.msra.mxu0 0.0
  %750 = vmatprep.subr.mxu0 0.0
  %751 = vmatpush1.msra.mxu0 0.0
  %752 = vmatprep.subr.mxu0 0.0
  %753 = vmatpush1.msra.mxu0 0.0
  %754 = vmatprep.subr.mxu0 0.0
  %755 = vmatpush1.msra.mxu0 0.0
  %756 = vmatprep.subr.mxu0 0.0
  %757 = vmatpush1.msra.mxu0 0.0
  %758 = vmatprep.subr.mxu0 0.0
  %759 = vmatpush1.msra.mxu0 0.0
  %760 = vmatprep.subr.mxu0 0.0
  %761 = vmatpush1.msra.mxu0 0.0
  %762 = vmatprep.mubr.f32.mxu0 0.0
  %763 = vmatmul.mubr.f32.gmra.mrb[0].mxu0 %v696
  %v764 = vpop.f32.mrb[0].mxu0
  %v765 = vadd.f32 %v342, %v764
  %v766 = vpop.f32.mrb[0].mxu0
  %767 = vdwg.mxu0
  %v768 = vadd.f32 %v692, %v765
  %v769 = vxor.u32 %v768, 2147483648
  %v770 = vmul.f32 %v769, 1.442695
  %v771 = vpow.pop %v770
  %v772 = vadd.f32 %v771, 1.0
  %v773 = vrcp.pop %v772
  %v774 = vmul.f32 1.0, %v773
  %v775 = vadd.f32 %v692, %v545
  %777 = vrot.lane.b32.xlu0 %v765, 96
  %v778 = vpop.permute.xlu0 %777
  %v780 = vmul.f32 %v774, %v778
  %782 = vrot.lane.b32.xlu0 %v780, 32
  %v783 = vpop.permute.xlu0 %782
  %v785 = vadd.f32 %v775, %v783
  %v786 = vtanh.pop %v785
  %v787 = vsub.f32 %v583, %v786
  %789 = vrot.lane.b32.xlu0 %v787, 112
  %v790 = vpop.permute.xlu0 %789
  %v792 = vmul.f32 %v774, %v790
  %794 = vrot.lane.b32.xlu0 %v792, 16
  %v795 = vpop.permute.xlu0 %794
  %v797 = vadd.f32 %v786, %v795
  %vm798 = vcmp.gt.s32.totalorder %v322, 1
  %v799 = vsel %vm798, 1, 0
  %800 = vset.pattern.permute.xlu0 0
  %801 = vperm.xlu0 %800, %v799
  %v802 = vpop.permute.xlu0 %801
  %vm803 = vcmp.eq.s32.totalorder %v802, 1
  %v804 = vsel %vm803, %v690, %v576
  %vm805 = vcmp.le.s32.totalorder %v323, 1
  %v806 = vsel %vm805, 1, 0
  %807 = vset.pattern.permute.xlu0 0
  %808 = vperm.xlu0 %807, %v806
  %v809 = vpop.permute.xlu0 %808
  %vm810 = vcmp.eq.s32.totalorder %v809, 1
  %v811 = vsel %vm810, %v797, %v583
  %s812 = scalar_lea.vmem [#allocation2], 16
  %v813 = vld [vmem:[%s812] sm:$0xff]
  %815 = vrot.lane.b32.xlu0 %v804, 96
  %v816 = vpop.permute.xlu0 %815
  %v817 = vsel %vm358, %v816, 0
  %819 = vmatprep.subr.mxu0 0.0
  %820 = vmatpush1.msra.mxu0 %v324
  %821 = vmatprep.subr.mxu0 0.0
  %822 = vmatpush1.msra.mxu0 %v325
  %823 = vmatprep.subr.mxu0 0.0
  %824 = vmatpush1.msra.mxu0 0.0
  %825 = vmatprep.subr.mxu0 0.0
  %826 = vmatpush1.msra.mxu0 0.0
  %827 = vmatprep.subr.mxu0 0.0
  %828 = vmatpush1.msra.mxu0 0.0
  %829 = vmatprep.subr.mxu0 0.0
  %830 = vmatpush1.msra.mxu0 0.0
  %831 = vmatprep.subr.mxu0 0.0
  %832 = vmatpush1.msra.mxu0 0.0
  %833 = vmatprep.subr.mxu0 0.0
  %834 = vmatpush1.msra.mxu0 0.0
  %835 = vmatprep.subr.mxu0 0.0
  %836 = vmatpush1.msra.mxu0 0.0
  %837 = vmatprep.subr.mxu0 0.0
  %838 = vmatpush1.msra.mxu0 0.0
  %839 = vmatprep.subr.mxu0 0.0
  %840 = vmatpush1.msra.mxu0 0.0
  %841 = vmatprep.subr.mxu0 0.0
  %842 = vmatpush1.msra.mxu0 0.0
  %843 = vmatprep.subr.mxu0 0.0
  %844 = vmatpush1.msra.mxu0 0.0
  %845 = vmatprep.subr.mxu0 0.0
  %846 = vmatpush1.msra.mxu0 0.0
  %847 = vmatprep.subr.mxu0 0.0
  %848 = vmatpush1.msra.mxu0 0.0
  %849 = vmatprep.subr.mxu0 0.0
  %850 = vmatpush1.msra.mxu0 0.0
  %851 = vmatprep.subr.mxu0 0.0
  %852 = vmatpush1.msra.mxu0 0.0
  %853 = vmatprep.subr.mxu0 0.0
  %854 = vmatpush1.msra.mxu0 0.0
  %855 = vmatprep.subr.mxu0 0.0
  %856 = vmatpush1.msra.mxu0 0.0
  %857 = vmatprep.subr.mxu0 0.0
  %858 = vmatpush1.msra.mxu0 0.0
  %859 = vmatprep.subr.mxu0 0.0
  %860 = vmatpush1.msra.mxu0 0.0
  %861 = vmatprep.subr.mxu0 0.0
  %862 = vmatpush1.msra.mxu0 0.0
  %863 = vmatprep.subr.mxu0 0.0
  %864 = vmatpush1.msra.mxu0 0.0
  %865 = vmatprep.subr.mxu0 0.0
  %866 = vmatpush1.msra.mxu0 0.0
  %867 = vmatprep.subr.mxu0 0.0
  %868 = vmatpush1.msra.mxu0 0.0
  %869 = vmatprep.subr.mxu0 0.0
  %870 = vmatpush1.msra.mxu0 0.0
  %871 = vmatprep.subr.mxu0 0.0
  %872 = vmatpush1.msra.mxu0 0.0
  %873 = vmatprep.subr.mxu0 0.0
  %874 = vmatpush1.msra.mxu0 0.0
  %875 = vmatprep.subr.mxu0 0.0
  %876 = vmatpush1.msra.mxu0 0.0
  %877 = vmatprep.subr.mxu0 0.0
  %878 = vmatpush1.msra.mxu0 0.0
  %879 = vmatprep.subr.mxu0 0.0
  %880 = vmatpush1.msra.mxu0 0.0
  %881 = vmatprep.subr.mxu0 0.0
  %882 = vmatpush1.msra.mxu0 0.0
  %883 = vmatprep.mubr.f32.mxu0 0.0
  %884 = vmatmul.mubr.f32.gmra.mrb[0].mxu0 %v817
  %v885 = vpop.f32.mrb[0].mxu0
  %v886 = vadd.f32 %v334, %v885
  %v887 = vpop.f32.mrb[0].mxu0
  %888 = vdwg.mxu0
  %v889 = vadd.f32 %v813, %v886
  %v890 = vxor.u32 %v889, 2147483648
  %v891 = vmul.f32 %v890, 1.442695
  %v892 = vpow.pop %v891
  %v893 = vadd.f32 %v892, 1.0
  %v894 = vrcp.pop %v893
  %v895 = vmul.f32 1.0, %v894
  %v896 = vadd.f32 %v813, %v440
  %898 = vrot.lane.b32.xlu0 %v886, 96
  %v899 = vpop.permute.xlu0 %898
  %v901 = vmul.f32 %v895, %v899
  %903 = vrot.lane.b32.xlu0 %v901, 32
  %v904 = vpop.permute.xlu0 %903
  %v906 = vadd.f32 %v896, %v904
  %v907 = vtanh.pop %v906
  %v908 = vsub.f32 %v804, %v907
  %910 = vrot.lane.b32.xlu0 %v908, 112
  %v911 = vpop.permute.xlu0 %910
  %v913 = vmul.f32 %v895, %v911
  %915 = vrot.lane.b32.xlu0 %v913, 16
  %v916 = vpop.permute.xlu0 %915
  %v918 = vadd.f32 %v907, %v916
  %s919 = scalar_lea.vmem [#allocation3], 40
  %v920 = vld [vmem:[%s919] sm:$0xff]
  %922 = vrot.lane.b32.xlu0 %v811, 96
  %v923 = vpop.permute.xlu0 %922
  %v924 = vsel %vm358, %v923, 0
  %926 = vmatprep.subr.mxu0 0.0
  %927 = vmatpush1.msra.mxu0 %v327
  %928 = vmatprep.subr.mxu0 0.0
  %929 = vmatpush1.msra.mxu0 %v328
  %930 = vmatprep.subr.mxu0 0.0
  %931 = vmatpush1.msra.mxu0 0.0
  %932 = vmatprep.subr.mxu0 0.0
  %933 = vmatpush1.msra.mxu0 0.0
  %934 = vmatprep.subr.mxu0 0.0
  %935 = vmatpush1.msra.mxu0 0.0
  %936 = vmatprep.subr.mxu0 0.0
  %937 = vmatpush1.msra.mxu0 0.0
  %938 = vmatprep.subr.mxu0 0.0
  %939 = vmatpush1.msra.mxu0 0.0
  %940 = vmatprep.subr.mxu0 0.0
  %941 = vmatpush1.msra.mxu0 0.0
  %942 = vmatprep.subr.mxu0 0.0
  %943 = vmatpush1.msra.mxu0 0.0
  %944 = vmatprep.subr.mxu0 0.0
  %945 = vmatpush1.msra.mxu0 0.0
  %946 = vmatprep.subr.mxu0 0.0
  %947 = vmatpush1.msra.mxu0 0.0
  %948 = vmatprep.subr.mxu0 0.0
  %949 = vmatpush1.msra.mxu0 0.0
  %950 = vmatprep.subr.mxu0 0.0
  %951 = vmatpush1.msra.mxu0 0.0
  %952 = vmatprep.subr.mxu0 0.0
  %953 = vmatpush1.msra.mxu0 0.0
  %954 = vmatprep.subr.mxu0 0.0
  %955 = vmatpush1.msra.mxu0 0.0
  %956 = vmatprep.subr.mxu0 0.0
  %957 = vmatpush1.msra.mxu0 0.0
  %958 = vmatprep.subr.mxu0 0.0
  %959 = vmatpush1.msra.mxu0 0.0
  %960 = vmatprep.subr.mxu0 0.0
  %961 = vmatpush1.msra.mxu0 0.0
  %962 = vmatprep.subr.mxu0 0.0
  %963 = vmatpush1.msra.mxu0 0.0
  %964 = vmatprep.subr.mxu0 0.0
  %965 = vmatpush1.msra.mxu0 0.0
  %966 = vmatprep.subr.mxu0 0.0
  %967 = vmatpush1.msra.mxu0 0.0
  %968 = vmatprep.subr.mxu0 0.0
  %969 = vmatpush1.msra.mxu0 0.0
  %970 = vmatprep.subr.mxu0 0.0
  %971 = vmatpush1.msra.mxu0 0.0
  %972 = vmatprep.subr.mxu0 0.0
  %973 = vmatpush1.msra.mxu0 0.0
  %974 = vmatprep.subr.mxu0 0.0
  %975 = vmatpush1.msra.mxu0 0.0
  %976 = vmatprep.subr.mxu0 0.0
  %977 = vmatpush1.msra.mxu0 0.0
  %978 = vmatprep.subr.mxu0 0.0
  %979 = vmatpush1.msra.mxu0 0.0
  %980 = vmatprep.subr.mxu0 0.0
  %981 = vmatpush1.msra.mxu0 0.0
  %982 = vmatprep.subr.mxu0 0.0
  %983 = vmatpush1.msra.mxu0 0.0
  %984 = vmatprep.subr.mxu0 0.0
  %985 = vmatpush1.msra.mxu0 0.0
  %986 = vmatprep.subr.mxu0 0.0
  %987 = vmatpush1.msra.mxu0 0.0
  %988 = vmatprep.subr.mxu0 0.0
  %989 = vmatpush1.msra.mxu0 0.0
  %990 = vmatprep.mubr.f32.mxu0 0.0
  %991 = vmatmul.mubr.f32.gmra.mrb[0].mxu0 %v924
  %v992 = vpop.f32.mrb[0].mxu0
  %v993 = vadd.f32 %v342, %v992
  %v994 = vpop.f32.mrb[0].mxu0
  %995 = vdwg.mxu0
  %v996 = vadd.f32 %v920, %v993
  %v997 = vxor.u32 %v996, 2147483648
  %v998 = vmul.f32 %v997, 1.442695
  %v999 = vpow.pop %v998
  %v1000 = vadd.f32 %v999, 1.0
  %v1001 = vrcp.pop %v1000
  %v1002 = vmul.f32 1.0, %v1001
  %v1003 = vadd.f32 %v920, %v545
  %1005 = vrot.lane.b32.xlu0 %v993, 96
  %v1006 = vpop.permute.xlu0 %1005
  %v1008 = vmul.f32 %v1002, %v1006
  %1010 = vrot.lane.b32.xlu0 %v1008, 32
  %v1011 = vpop.permute.xlu0 %1010
  %v1013 = vadd.f32 %v1003, %v1011
  %v1014 = vtanh.pop %v1013
  %v1015 = vsub.f32 %v811, %v1014
  %1017 = vrot.lane.b32.xlu0 %v1015, 112
  %v1018 = vpop.permute.xlu0 %1017
  %v1020 = vmul.f32 %v1002, %v1018
  %1022 = vrot.lane.b32.xlu0 %v1020, 16
  %v1023 = vpop.permute.xlu0 %1022
  %v1025 = vadd.f32 %v1014, %v1023
  %vm1026 = vcmp.gt.s32.totalorder %v322, 2
  %v1027 = vsel %vm1026, 1, 0
  %1028 = vset.pattern.permute.xlu0 0
  %1029 = vperm.xlu0 %1028, %v1027
  %v1030 = vpop.permute.xlu0 %1029
  %vm1031 = vcmp.eq.s32.totalorder %v1030, 1
  %v1032 = vsel %vm1031, %v918, %v804
  %vm1033 = vcmp.le.s32.totalorder %v323, 2
  %v1034 = vsel %vm1033, 1, 0
  %1035 = vset.pattern.permute.xlu0 0
  %1036 = vperm.xlu0 %1035, %v1034
  %v1037 = vpop.permute.xlu0 %1036
  %vm1038 = vcmp.eq.s32.totalorder %v1037, 1
  %v1039 = vsel %vm1038, %v1025, %v811
  %s1040 = scalar_lea.vmem [#allocation2], 24
  %v1041 = vld [vmem:[%s1040] sm:$0xff]
  %1043 = vrot.lane.b32.xlu0 %v1032, 96
  %v1044 = vpop.permute.xlu0 %1043
  %v1045 = vsel %vm358, %v1044, 0
  %1047 = vmatprep.subr.mxu0 0.0
  %1048 = vmatpush1.msra.mxu0 %v324
  %1049 = vmatprep.subr.mxu0 0.0
  %1050 = vmatpush1.msra.mxu0 %v325
  %1051 = vmatprep.subr.mxu0 0.0
  %1052 = vmatpush1.msra.mxu0 0.0
  %1053 = vmatprep.subr.mxu0 0.0
  %1054 = vmatpush1.msra.mxu0 0.0
  %1055 = vmatprep.subr.mxu0 0.0
  %1056 = vmatpush1.msra.mxu0 0.0
  %1057 = vmatprep.subr.mxu0 0.0
  %1058 = vmatpush1.msra.mxu0 0.0
  %1059 = vmatprep.subr.mxu0 0.0
  %1060 = vmatpush1.msra.mxu0 0.0
  %1061 = vmatprep.subr.mxu0 0.0
  %1062 = vmatpush1.msra.mxu0 0.0
  %1063 = vmatprep.subr.mxu0 0.0
  %1064 = vmatpush1.msra.mxu0 0.0
  %1065 = vmatprep.subr.mxu0 0.0
  %1066 = vmatpush1.msra.mxu0 0.0
  %1067 = vmatprep.subr.mxu0 0.0
  %1068 = vmatpush1.msra.mxu0 0.0
  %1069 = vmatprep.subr.mxu0 0.0
  %1070 = vmatpush1.msra.mxu0 0.0
  %1071 = vmatprep.subr.mxu0 0.0
  %1072 = vmatpush1.msra.mxu0 0.0
  %1073 = vmatprep.subr.mxu0 0.0
  %1074 = vmatpush1.msra.mxu0 0.0
  %1075 = vmatprep.subr.mxu0 0.0
  %1076 = vmatpush1.msra.mxu0 0.0
  %1077 = vmatprep.subr.mxu0 0.0
  %1078 = vmatpush1.msra.mxu0 0.0
  %1079 = vmatprep.subr.mxu0 0.0
  %1080 = vmatpush1.msra.mxu0 0.0
  %1081 = vmatprep.subr.mxu0 0.0
  %1082 = vmatpush1.msra.mxu0 0.0
  %1083 = vmatprep.subr.mxu0 0.0
  %1084 = vmatpush1.msra.mxu0 0.0
  %1085 = vmatprep.subr.mxu0 0.0
  %1086 = vmatpush1.msra.mxu0 0.0
  %1087 = vmatprep.subr.mxu0 0.0
  %1088 = vmatpush1.msra.mxu0 0.0
  %1089 = vmatprep.subr.mxu0 0.0
  %1090 = vmatpush1.msra.mxu0 0.0
  %1091 = vmatprep.subr.mxu0 0.0
  %1092 = vmatpush1.msra.mxu0 0.0
  %1093 = vmatprep.subr.mxu0 0.0
  %1094 = vmatpush1.msra.mxu0 0.0
  %1095 = vmatprep.subr.mxu0 0.0
  %1096 = vmatpush1.msra.mxu0 0.0
  %1097 = vmatprep.subr.mxu0 0.0
  %1098 = vmatpush1.msra.mxu0 0.0
  %1099 = vmatprep.subr.mxu0 0.0
  %1100 = vmatpush1.msra.mxu0 0.0
  %1101 = vmatprep.subr.mxu0 0.0
  %1102 = vmatpush1.msra.mxu0 0.0
  %1103 = vmatprep.subr.mxu0 0.0
  %1104 = vmatpush1.msra.mxu0 0.0
  %1105 = vmatprep.subr.mxu0 0.0
  %1106 = vmatpush1.msra.mxu0 0.0
  %1107 = vmatprep.subr.mxu0 0.0
  %1108 = vmatpush1.msra.mxu0 0.0
  %1109 = vmatprep.subr.mxu0 0.0
  %1110 = vmatpush1.msra.mxu0 0.0
  %1111 = vmatprep.mubr.f32.mxu0 0.0
  %1112 = vmatmul.mubr.f32.gmra.mrb[0].mxu0 %v1045
  %v1113 = vpop.f32.mrb[0].mxu0
  %v1114 = vadd.f32 %v334, %v1113
  %v1115 = vpop.f32.mrb[0].mxu0
  %1116 = vdwg.mxu0
  %v1117 = vadd.f32 %v1041, %v1114
  %v1118 = vxor.u32 %v1117, 2147483648
  %v1119 = vmul.f32 %v1118, 1.442695
  %v1120 = vpow.pop %v1119
  %v1121 = vadd.f32 %v1120, 1.0
  %v1122 = vrcp.pop %v1121
  %v1123 = vmul.f32 1.0, %v1122
  %v1124 = vadd.f32 %v1041, %v440
  %1126 = vrot.lane.b32.xlu0 %v1114, 96
  %v1127 = vpop.permute.xlu0 %1126
  %v1129 = vmul.f32 %v1123, %v1127
  %1131 = vrot.lane.b32.xlu0 %v1129, 32
  %v1132 = vpop.permute.xlu0 %1131
  %v1134 = vadd.f32 %v1124, %v1132
  %v1135 = vtanh.pop %v1134
  %v1136 = vsub.f32 %v1032, %v1135
  %1138 = vrot.lane.b32.xlu0 %v1136, 112
  %v1139 = vpop.permute.xlu0 %1138
  %v1141 = vmul.f32 %v1123, %v1139
  %1143 = vrot.lane.b32.xlu0 %v1141, 16
  %v1144 = vpop.permute.xlu0 %1143
  %v1146 = vadd.f32 %v1135, %v1144
  %s1147 = scalar_lea.vmem [#allocation3], 32
  %v1148 = vld [vmem:[%s1147] sm:$0xff]
  %1150 = vrot.lane.b32.xlu0 %v1039, 96
  %v1151 = vpop.permute.xlu0 %1150
  %v1152 = vsel %vm358, %v1151, 0
  %1154 = vmatprep.subr.mxu0 0.0
  %1155 = vmatpush1.msra.mxu0 %v327
  %1156 = vmatprep.subr.mxu0 0.0
  %1157 = vmatpush1.msra.mxu0 %v328
  %1158 = vmatprep.subr.mxu0 0.0
  %1159 = vmatpush1.msra.mxu0 0.0
  %1160 = vmatprep.subr.mxu0 0.0
  %1161 = vmatpush1.msra.mxu0 0.0
  %1162 = vmatprep.subr.mxu0 0.0
  %1163 = vmatpush1.msra.mxu0 0.0
  %1164 = vmatprep.subr.mxu0 0.0
  %1165 = vmatpush1.msra.mxu0 0.0
  %1166 = vmatprep.subr.mxu0 0.0
  %1167 = vmatpush1.msra.mxu0 0.0
  %1168 = vmatprep.subr.mxu0 0.0
  %1169 = vmatpush1.msra.mxu0 0.0
  %1170 = vmatprep.subr.mxu0 0.0
  %1171 = vmatpush1.msra.mxu0 0.0
  %1172 = vmatprep.subr.mxu0 0.0
  %1173 = vmatpush1.msra.mxu0 0.0
  %1174 = vmatprep.subr.mxu0 0.0
  %1175 = vmatpush1.msra.mxu0 0.0
  %1176 = vmatprep.subr.mxu0 0.0
  %1177 = vmatpush1.msra.mxu0 0.0
  %1178 = vmatprep.subr.mxu0 0.0
  %1179 = vmatpush1.msra.mxu0 0.0
  %1180 = vmatprep.subr.mxu0 0.0
  %1181 = vmatpush1.msra.mxu0 0.0
  %1182 = vmatprep.subr.mxu0 0.0
  %1183 = vmatpush1.msra.mxu0 0.0
  %1184 = vmatprep.subr.mxu0 0.0
  %1185 = vmatpush1.msra.mxu0 0.0
  %1186 = vmatprep.subr.mxu0 0.0
  %1187 = vmatpush1.msra.mxu0 0.0
  %1188 = vmatprep.subr.mxu0 0.0
  %1189 = vmatpush1.msra.mxu0 0.0
  %1190 = vmatprep.subr.mxu0 0.0
  %1191 = vmatpush1.msra.mxu0 0.0
  %1192 = vmatprep.subr.mxu0 0.0
  %1193 = vmatpush1.msra.mxu0 0.0
  %1194 = vmatprep.subr.mxu0 0.0
  %1195 = vmatpush1.msra.mxu0 0.0
  %1196 = vmatprep.subr.mxu0 0.0
  %1197 = vmatpush1.msra.mxu0 0.0
  %1198 = vmatprep.subr.mxu0 0.0
  %1199 = vmatpush1.msra.mxu0 0.0
  %1200 = vmatprep.subr.mxu0 0.0
  %1201 = vmatpush1.msra.mxu0 0.0
  %1202 = vmatprep.subr.mxu0 0.0
  %1203 = vmatpush1.msra.mxu0 0.0
  %1204 = vmatprep.subr.mxu0 0.0
  %1205 = vmatpush1.msra.mxu0 0.0
  %1206 = vmatprep.subr.mxu0 0.0
  %1207 = vmatpush1.msra.mxu0 0.0
  %1208 = vmatprep.subr.mxu0 0.0
  %1209 = vmatpush1.msra.mxu0 0.0
  %1210 = vmatprep.subr.mxu0 0.0
  %1211 = vmatpush1.msra.mxu0 0.0
  %1212 = vmatprep.subr.mxu0 0.0
  %1213 = vmatpush1.msra.mxu0 0.0
  %1214 = vmatprep.subr.mxu0 0.0
  %1215 = vmatpush1.msra.mxu0 0.0
  %1216 = vmatprep.subr.mxu0 0.0
  %1217 = vmatpush1.msra.mxu0 0.0
  %1218 = vmatprep.mubr.f32.mxu0 0.0
  %1219 = vmatmul.mubr.f32.gmra.mrb[0].mxu0 %v1152
  %v1220 = vpop.f32.mrb[0].mxu0
  %v1221 = vadd.f32 %v342, %v1220
  %v1222 = vpop.f32.mrb[0].mxu0
  %1223 = vdwg.mxu0
  %v1224 = vadd.f32 %v1148, %v1221
  %v1225 = vxor.u32 %v1224, 2147483648
  %v1226 = vmul.f32 %v1225, 1.442695
  %v1227 = vpow.pop %v1226
  %v1228 = vadd.f32 %v1227, 1.0
  %v1229 = vrcp.pop %v1228
  %v1230 = vmul.f32 1.0, %v1229
  %v1231 = vadd.f32 %v1148, %v545
  %1233 = vrot.lane.b32.xlu0 %v1221, 96
  %v1234 = vpop.permute.xlu0 %1233
  %v1236 = vmul.f32 %v1230, %v1234
  %1238 = vrot.lane.b32.xlu0 %v1236, 32
  %v1239 = vpop.permute.xlu0 %1238
  %v1241 = vadd.f32 %v1231, %v1239
  %v1242 = vtanh.pop %v1241
  %v1243 = vsub.f32 %v1039, %v1242
  %1245 = vrot.lane.b32.xlu0 %v1243, 112
  %v1246 = vpop.permute.xlu0 %1245
  %v1248 = vmul.f32 %v1230, %v1246
  %1250 = vrot.lane.b32.xlu0 %v1248, 16
  %v1251 = vpop.permute.xlu0 %1250
  %v1253 = vadd.f32 %v1242, %v1251
  %vm1254 = vcmp.gt.s32.totalorder %v322, 3
  %v1255 = vsel %vm1254, 1, 0
  %1256 = vset.pattern.permute.xlu0 0
  %1257 = vperm.xlu0 %1256, %v1255
  %v1258 = vpop.permute.xlu0 %1257
  %vm1259 = vcmp.eq.s32.totalorder %v1258, 1
  %v1260 = vsel %vm1259, %v1146, %v1032
  %vm1261 = vcmp.le.s32.totalorder %v323, 3
  %v1262 = vsel %vm1261, 1, 0
  %1263 = vset.pattern.permute.xlu0 0
  %1264 = vperm.xlu0 %1263, %v1262
  %v1265 = vpop.permute.xlu0 %1264
  %vm1266 = vcmp.eq.s32.totalorder %v1265, 1
  %v1267 = vsel %vm1266, %v1253, %v1039
  %s1268 = scalar_lea.vmem [#allocation2], 32
  %v1269 = vld [vmem:[%s1268] sm:$0xff]
  %1271 = vrot.lane.b32.xlu0 %v1260, 96
  %v1272 = vpop.permute.xlu0 %1271
  %v1273 = vsel %vm358, %v1272, 0
  %1275 = vmatprep.subr.mxu0 0.0
  %1276 = vmatpush1.msra.mxu0 %v324
  %1277 = vmatprep.subr.mxu0 0.0
  %1278 = vmatpush1.msra.mxu0 %v325
  %1279 = vmatprep.subr.mxu0 0.0
  %1280 = vmatpush1.msra.mxu0 0.0
  %1281 = vmatprep.subr.mxu0 0.0
  %1282 = vmatpush1.msra.mxu0 0.0
  %1283 = vmatprep.subr.mxu0 0.0
  %1284 = vmatpush1.msra.mxu0 0.0
  %1285 = vmatprep.subr.mxu0 0.0
  %1286 = vmatpush1.msra.mxu0 0.0
  %1287 = vmatprep.subr.mxu0 0.0
  %1288 = vmatpush1.msra.mxu0 0.0
  %1289 = vmatprep.subr.mxu0 0.0
  %1290 = vmatpush1.msra.mxu0 0.0
  %1291 = vmatprep.subr.mxu0 0.0
  %1292 = vmatpush1.msra.mxu0 0.0
  %1293 = vmatprep.subr.mxu0 0.0
  %1294 = vmatpush1.msra.mxu0 0.0
  %1295 = vmatprep.subr.mxu0 0.0
  %1296 = vmatpush1.msra.mxu0 0.0
  %1297 = vmatprep.subr.mxu0 0.0
  %1298 = vmatpush1.msra.mxu0 0.0
  %1299 = vmatprep.subr.mxu0 0.0
  %1300 = vmatpush1.msra.mxu0 0.0
  %1301 = vmatprep.subr.mxu0 0.0
  %1302 = vmatpush1.msra.mxu0 0.0
  %1303 = vmatprep.subr.mxu0 0.0
  %1304 = vmatpush1.msra.mxu0 0.0
  %1305 = vmatprep.subr.mxu0 0.0
  %1306 = vmatpush1.msra.mxu0 0.0
  %1307 = vmatprep.subr.mxu0 0.0
  %1308 = vmatpush1.msra.mxu0 0.0
  %1309 = vmatprep.subr.mxu0 0.0
  %1310 = vmatpush1.msra.mxu0 0.0
  %1311 = vmatprep.subr.mxu0 0.0
  %1312 = vmatpush1.msra.mxu0 0.0
  %1313 = vmatprep.subr.mxu0 0.0
  %1314 = vmatpush1.msra.mxu0 0.0
  %1315 = vmatprep.subr.mxu0 0.0
  %1316 = vmatpush1.msra.mxu0 0.0
  %1317 = vmatprep.subr.mxu0 0.0
  %1318 = vmatpush1.msra.mxu0 0.0
  %1319 = vmatprep.subr.mxu0 0.0
  %1320 = vmatpush1.msra.mxu0 0.0
  %1321 = vmatprep.subr.mxu0 0.0
  %1322 = vmatpush1.msra.mxu0 0.0
  %1323 = vmatprep.subr.mxu0 0.0
  %1324 = vmatpush1.msra.mxu0 0.0
  %1325 = vmatprep.subr.mxu0 0.0
  %1326 = vmatpush1.msra.mxu0 0.0
  %1327 = vmatprep.subr.mxu0 0.0
  %1328 = vmatpush1.msra.mxu0 0.0
  %1329 = vmatprep.subr.mxu0 0.0
  %1330 = vmatpush1.msra.mxu0 0.0
  %1331 = vmatprep.subr.mxu0 0.0
  %1332 = vmatpush1.msra.mxu0 0.0
  %1333 = vmatprep.subr.mxu0 0.0
  %1334 = vmatpush1.msra.mxu0 0.0
  %1335 = vmatprep.subr.mxu0 0.0
  %1336 = vmatpush1.msra.mxu0 0.0
  %1337 = vmatprep.subr.mxu0 0.0
  %1338 = vmatpush1.msra.mxu0 0.0
  %1339 = vmatprep.mubr.f32.mxu0 0.0
  %1340 = vmatmul.mubr.f32.gmra.mrb[0].mxu0 %v1273
  %v1341 = vpop.f32.mrb[0].mxu0
  %v1342 = vadd.f32 %v334, %v1341
  %v1343 = vpop.f32.mrb[0].mxu0
  %1344 = vdwg.mxu0
  %v1345 = vadd.f32 %v1269, %v1342
  %v1346 = vxor.u32 %v1345, 2147483648
  %v1347 = vmul.f32 %v1346, 1.442695
  %v1348 = vpow.pop %v1347
  %v1349 = vadd.f32 %v1348, 1.0
  %v1350 = vrcp.pop %v1349
  %v1351 = vmul.f32 1.0, %v1350
  %v1352 = vadd.f32 %v1269, %v440
  %1354 = vrot.lane.b32.xlu0 %v1342, 96
  %v1355 = vpop.permute.xlu0 %1354
  %v1357 = vmul.f32 %v1351, %v1355
  %1359 = vrot.lane.b32.xlu0 %v1357, 32
  %v1360 = vpop.permute.xlu0 %1359
  %v1362 = vadd.f32 %v1352, %v1360
  %v1363 = vtanh.pop %v1362
  %v1364 = vsub.f32 %v1260, %v1363
  %1366 = vrot.lane.b32.xlu0 %v1364, 112
  %v1367 = vpop.permute.xlu0 %1366
  %v1369 = vmul.f32 %v1351, %v1367
  %1371 = vrot.lane.b32.xlu0 %v1369, 16
  %v1372 = vpop.permute.xlu0 %1371
  %v1374 = vadd.f32 %v1363, %v1372
  %s1375 = scalar_lea.vmem [#allocation3], 24
  %v1376 = vld [vmem:[%s1375] sm:$0xff]
  %1378 = vrot.lane.b32.xlu0 %v1267, 96
  %v1379 = vpop.permute.xlu0 %1378
  %v1380 = vsel %vm358, %v1379, 0
  %1382 = vmatprep.subr.mxu0 0.0
  %1383 = vmatpush1.msra.mxu0 %v327
  %1384 = vmatprep.subr.mxu0 0.0
  %1385 = vmatpush1.msra.mxu0 %v328
  %1386 = vmatprep.subr.mxu0 0.0
  %1387 = vmatpush1.msra.mxu0 0.0
  %1388 = vmatprep.subr.mxu0 0.0
  %1389 = vmatpush1.msra.mxu0 0.0
  %1390 = vmatprep.subr.mxu0 0.0
  %1391 = vmatpush1.msra.mxu0 0.0
  %1392 = vmatprep.subr.mxu0 0.0
  %1393 = vmatpush1.msra.mxu0 0.0
  %1394 = vmatprep.subr.mxu0 0.0
  %1395 = vmatpush1.msra.mxu0 0.0
  %1396 = vmatprep.subr.mxu0 0.0
  %1397 = vmatpush1.msra.mxu0 0.0
  %1398 = vmatprep.subr.mxu0 0.0
  %1399 = vmatpush1.msra.mxu0 0.0
  %1400 = vmatprep.subr.mxu0 0.0
  %1401 = vmatpush1.msra.mxu0 0.0
  %1402 = vmatprep.subr.mxu0 0.0
  %1403 = vmatpush1.msra.mxu0 0.0
  %1404 = vmatprep.subr.mxu0 0.0
  %1405 = vmatpush1.msra.mxu0 0.0
  %1406 = vmatprep.subr.mxu0 0.0
  %1407 = vmatpush1.msra.mxu0 0.0
  %1408 = vmatprep.subr.mxu0 0.0
  %1409 = vmatpush1.msra.mxu0 0.0
  %1410 = vmatprep.subr.mxu0 0.0
  %1411 = vmatpush1.msra.mxu0 0.0
  %1412 = vmatprep.subr.mxu0 0.0
  %1413 = vmatpush1.msra.mxu0 0.0
  %1414 = vmatprep.subr.mxu0 0.0
  %1415 = vmatpush1.msra.mxu0 0.0
  %1416 = vmatprep.subr.mxu0 0.0
  %1417 = vmatpush1.msra.mxu0 0.0
  %1418 = vmatprep.subr.mxu0 0.0
  %1419 = vmatpush1.msra.mxu0 0.0
  %1420 = vmatprep.subr.mxu0 0.0
  %1421 = vmatpush1.msra.mxu0 0.0
  %1422 = vmatprep.subr.mxu0 0.0
  %1423 = vmatpush1.msra.mxu0 0.0
  %1424 = vmatprep.subr.mxu0 0.0
  %1425 = vmatpush1.msra.mxu0 0.0
  %1426 = vmatprep.subr.mxu0 0.0
  %1427 = vmatpush1.msra.mxu0 0.0
  %1428 = vmatprep.subr.mxu0 0.0
  %1429 = vmatpush1.msra.mxu0 0.0
  %1430 = vmatprep.subr.mxu0 0.0
  %1431 = vmatpush1.msra.mxu0 0.0
  %1432 = vmatprep.subr.mxu0 0.0
  %1433 = vmatpush1.msra.mxu0 0.0
  %1434 = vmatprep.subr.mxu0 0.0
  %1435 = vmatpush1.msra.mxu0 0.0
  %1436 = vmatprep.subr.mxu0 0.0
  %1437 = vmatpush1.msra.mxu0 0.0
  %1438 = vmatprep.subr.mxu0 0.0
  %1439 = vmatpush1.msra.mxu0 0.0
  %1440 = vmatprep.subr.mxu0 0.0
  %1441 = vmatpush1.msra.mxu0 0.0
  %1442 = vmatprep.subr.mxu0 0.0
  %1443 = vmatpush1.msra.mxu0 0.0
  %1444 = vmatprep.subr.mxu0 0.0
  %1445 = vmatpush1.msra.mxu0 0.0
  %1446 = vmatprep.mubr.f32.mxu0 0.0
  %1447 = vmatmul.mubr.f32.gmra.mrb[0].mxu0 %v1380
  %v1448 = vpop.f32.mrb[0].mxu0
  %v1449 = vadd.f32 %v342, %v1448
  %v1450 = vpop.f32.mrb[0].mxu0
  %1451 = vdwg.mxu0
  %v1452 = vadd.f32 %v1376, %v1449
  %v1453 = vxor.u32 %v1452, 2147483648
  %v1454 = vmul.f32 %v1453, 1.442695
  %v1455 = vpow.pop %v1454
  %v1456 = vadd.f32 %v1455, 1.0
  %v1457 = vrcp.pop %v1456
  %v1458 = vmul.f32 1.0, %v1457
  %v1459 = vadd.f32 %v1376, %v545
  %1461 = vrot.lane.b32.xlu0 %v1449, 96
  %v1462 = vpop.permute.xlu0 %1461
  %v1464 = vmul.f32 %v1458, %v1462
  %1466 = vrot.lane.b32.xlu0 %v1464, 32
  %v1467 = vpop.permute.xlu0 %1466
  %v1469 = vadd.f32 %v1459, %v1467
  %v1470 = vtanh.pop %v1469
  %v1471 = vsub.f32 %v1267, %v1470
  %1473 = vrot.lane.b32.xlu0 %v1471, 112
  %v1474 = vpop.permute.xlu0 %1473
  %v1476 = vmul.f32 %v1458, %v1474
  %1478 = vrot.lane.b32.xlu0 %v1476, 16
  %v1479 = vpop.permute.xlu0 %1478
  %v1481 = vadd.f32 %v1470, %v1479
  %vm1482 = vcmp.gt.s32.totalorder %v322, 4
  %v1483 = vsel %vm1482, 1, 0
  %1484 = vset.pattern.permute.xlu0 0
  %1485 = vperm.xlu0 %1484, %v1483
  %v1486 = vpop.permute.xlu0 %1485
  %vm1487 = vcmp.eq.s32.totalorder %v1486, 1
  %v1488 = vsel %vm1487, %v1374, %v1260
  %vm1489 = vcmp.le.s32.totalorder %v323, 4
  %v1490 = vsel %vm1489, 1, 0
  %1491 = vset.pattern.permute.xlu0 0
  %1492 = vperm.xlu0 %1491, %v1490
  %v1493 = vpop.permute.xlu0 %1492
  %vm1494 = vcmp.eq.s32.totalorder %v1493, 1
  %v1495 = vsel %vm1494, %v1481, %v1267
  %s1496 = scalar_lea.vmem [#allocation2], 40
  %v1497 = vld [vmem:[%s1496] sm:$0xff]
  %1499 = vrot.lane.b32.xlu0 %v1488, 96
  %v1500 = vpop.permute.xlu0 %1499
  %v1501 = vsel %vm358, %v1500, 0
  %1503 = vmatprep.subr.mxu0 0.0
  %1504 = vmatpush1.msra.mxu0 %v324
  %1505 = vmatprep.subr.mxu0 0.0
  %1506 = vmatpush1.msra.mxu0 %v325
  %1507 = vmatprep.subr.mxu0 0.0
  %1508 = vmatpush1.msra.mxu0 0.0
  %1509 = vmatprep.subr.mxu0 0.0
  %1510 = vmatpush1.msra.mxu0 0.0
  %1511 = vmatprep.subr.mxu0 0.0
  %1512 = vmatpush1.msra.mxu0 0.0
  %1513 = vmatprep.subr.mxu0 0.0
  %1514 = vmatpush1.msra.mxu0 0.0
  %1515 = vmatprep.subr.mxu0 0.0
  %1516 = vmatpush1.msra.mxu0 0.0
  %1517 = vmatprep.subr.mxu0 0.0
  %1518 = vmatpush1.msra.mxu0 0.0
  %1519 = vmatprep.subr.mxu0 0.0
  %1520 = vmatpush1.msra.mxu0 0.0
  %1521 = vmatprep.subr.mxu0 0.0
  %1522 = vmatpush1.msra.mxu0 0.0
  %1523 = vmatprep.subr.mxu0 0.0
  %1524 = vmatpush1.msra.mxu0 0.0
  %1525 = vmatprep.subr.mxu0 0.0
  %1526 = vmatpush1.msra.mxu0 0.0
  %1527 = vmatprep.subr.mxu0 0.0
  %1528 = vmatpush1.msra.mxu0 0.0
  %1529 = vmatprep.subr.mxu0 0.0
  %1530 = vmatpush1.msra.mxu0 0.0
  %1531 = vmatprep.subr.mxu0 0.0
  %1532 = vmatpush1.msra.mxu0 0.0
  %1533 = vmatprep.subr.mxu0 0.0
  %1534 = vmatpush1.msra.mxu0 0.0
  %1535 = vmatprep.subr.mxu0 0.0
  %1536 = vmatpush1.msra.mxu0 0.0
  %1537 = vmatprep.subr.mxu0 0.0
  %1538 = vmatpush1.msra.mxu0 0.0
  %1539 = vmatprep.subr.mxu0 0.0
  %1540 = vmatpush1.msra.mxu0 0.0
  %1541 = vmatprep.subr.mxu0 0.0
  %1542 = vmatpush1.msra.mxu0 0.0
  %1543 = vmatprep.subr.mxu0 0.0
  %1544 = vmatpush1.msra.mxu0 0.0
  %1545 = vmatprep.subr.mxu0 0.0
  %1546 = vmatpush1.msra.mxu0 0.0
  %1547 = vmatprep.subr.mxu0 0.0
  %1548 = vmatpush1.msra.mxu0 0.0
  %1549 = vmatprep.subr.mxu0 0.0
  %1550 = vmatpush1.msra.mxu0 0.0
  %1551 = vmatprep.subr.mxu0 0.0
  %1552 = vmatpush1.msra.mxu0 0.0
  %1553 = vmatprep.subr.mxu0 0.0
  %1554 = vmatpush1.msra.mxu0 0.0
  %1555 = vmatprep.subr.mxu0 0.0
  %1556 = vmatpush1.msra.mxu0 0.0
  %1557 = vmatprep.subr.mxu0 0.0
  %1558 = vmatpush1.msra.mxu0 0.0
  %1559 = vmatprep.subr.mxu0 0.0
  %1560 = vmatpush1.msra.mxu0 0.0
  %1561 = vmatprep.subr.mxu0 0.0
  %1562 = vmatpush1.msra.mxu0 0.0
  %1563 = vmatprep.subr.mxu0 0.0
  %1564 = vmatpush1.msra.mxu0 0.0
  %1565 = vmatprep.subr.mxu0 0.0
  %1566 = vmatpush1.msra.mxu0 0.0
  %1567 = vmatprep.mubr.f32.mxu0 0.0
  %1568 = vmatmul.mubr.f32.gmra.mrb[0].mxu0 %v1501
  %v1569 = vpop.f32.mrb[0].mxu0
  %v1570 = vadd.f32 %v334, %v1569
  %v1571 = vpop.f32.mrb[0].mxu0
  %1572 = vdwg.mxu0
  %v1573 = vadd.f32 %v1497, %v1570
  %v1574 = vxor.u32 %v1573, 2147483648
  %v1575 = vmul.f32 %v1574, 1.442695
  %v1576 = vpow.pop %v1575
  %v1577 = vadd.f32 %v1576, 1.0
  %v1578 = vrcp.pop %v1577
  %v1579 = vmul.f32 1.0, %v1578
  %v1580 = vadd.f32 %v1497, %v440
  %1582 = vrot.lane.b32.xlu0 %v1570, 96
  %v1583 = vpop.permute.xlu0 %1582
  %v1585 = vmul.f32 %v1579, %v1583
  %1587 = vrot.lane.b32.xlu0 %v1585, 32
  %v1588 = vpop.permute.xlu0 %1587
  %v1590 = vadd.f32 %v1580, %v1588
  %v1591 = vtanh.pop %v1590
  %v1592 = vsub.f32 %v1488, %v1591
  %1594 = vrot.lane.b32.xlu0 %v1592, 112
  %v1595 = vpop.permute.xlu0 %1594
  %v1597 = vmul.f32 %v1579, %v1595
  %1599 = vrot.lane.b32.xlu0 %v1597, 16
  %v1600 = vpop.permute.xlu0 %1599
  %v1602 = vadd.f32 %v1591, %v1600
  %s1603 = scalar_lea.vmem [#allocation3], 16
  %v1604 = vld [vmem:[%s1603] sm:$0xff]
  %1606 = vrot.lane.b32.xlu0 %v1495, 96
  %v1607 = vpop.permute.xlu0 %1606
  %v1608 = vsel %vm358, %v1607, 0
  %1610 = vmatprep.subr.mxu0 0.0
  %1611 = vmatpush1.msra.mxu0 %v327
  %1612 = vmatprep.subr.mxu0 0.0
  %1613 = vmatpush1.msra.mxu0 %v328
  %1614 = vmatprep.subr.mxu0 0.0
  %1615 = vmatpush1.msra.mxu0 0.0
  %1616 = vmatprep.subr.mxu0 0.0
  %1617 = vmatpush1.msra.mxu0 0.0
  %1618 = vmatprep.subr.mxu0 0.0
  %1619 = vmatpush1.msra.mxu0 0.0
  %1620 = vmatprep.subr.mxu0 0.0
  %1621 = vmatpush1.msra.mxu0 0.0
  %1622 = vmatprep.subr.mxu0 0.0
  %1623 = vmatpush1.msra.mxu0 0.0
  %1624 = vmatprep.subr.mxu0 0.0
  %1625 = vmatpush1.msra.mxu0 0.0
  %1626 = vmatprep.subr.mxu0 0.0
  %1627 = vmatpush1.msra.mxu0 0.0
  %1628 = vmatprep.subr.mxu0 0.0
  %1629 = vmatpush1.msra.mxu0 0.0
  %1630 = vmatprep.subr.mxu0 0.0
  %1631 = vmatpush1.msra.mxu0 0.0
  %1632 = vmatprep.subr.mxu0 0.0
  %1633 = vmatpush1.msra.mxu0 0.0
  %1634 = vmatprep.subr.mxu0 0.0
  %1635 = vmatpush1.msra.mxu0 0.0
  %1636 = vmatprep.subr.mxu0 0.0
  %1637 = vmatpush1.msra.mxu0 0.0
  %1638 = vmatprep.subr.mxu0 0.0
  %1639 = vmatpush1.msra.mxu0 0.0
  %1640 = vmatprep.subr.mxu0 0.0
  %1641 = vmatpush1.msra.mxu0 0.0
  %1642 = vmatprep.subr.mxu0 0.0
  %1643 = vmatpush1.msra.mxu0 0.0
  %1644 = vmatprep.subr.mxu0 0.0
  %1645 = vmatpush1.msra.mxu0 0.0
  %1646 = vmatprep.subr.mxu0 0.0
  %1647 = vmatpush1.msra.mxu0 0.0
  %1648 = vmatprep.subr.mxu0 0.0
  %1649 = vmatpush1.msra.mxu0 0.0
  %1650 = vmatprep.subr.mxu0 0.0
  %1651 = vmatpush1.msra.mxu0 0.0
  %1652 = vmatprep.subr.mxu0 0.0
  %1653 = vmatpush1.msra.mxu0 0.0
  %1654 = vmatprep.subr.mxu0 0.0
  %1655 = vmatpush1.msra.mxu0 0.0
  %1656 = vmatprep.subr.mxu0 0.0
  %1657 = vmatpush1.msra.mxu0 0.0
  %1658 = vmatprep.subr.mxu0 0.0
  %1659 = vmatpush1.msra.mxu0 0.0
  %1660 = vmatprep.subr.mxu0 0.0
  %1661 = vmatpush1.msra.mxu0 0.0
  %1662 = vmatprep.subr.mxu0 0.0
  %1663 = vmatpush1.msra.mxu0 0.0
  %1664 = vmatprep.subr.mxu0 0.0
  %1665 = vmatpush1.msra.mxu0 0.0
  %1666 = vmatprep.subr.mxu0 0.0
  %1667 = vmatpush1.msra.mxu0 0.0
  %1668 = vmatprep.subr.mxu0 0.0
  %1669 = vmatpush1.msra.mxu0 0.0
  %1670 = vmatprep.subr.mxu0 0.0
  %1671 = vmatpush1.msra.mxu0 0.0
  %1672 = vmatprep.subr.mxu0 0.0
  %1673 = vmatpush1.msra.mxu0 0.0
  %1674 = vmatprep.mubr.f32.mxu0 0.0
  %1675 = vmatmul.mubr.f32.gmra.mrb[0].mxu0 %v1608
  %v1676 = vpop.f32.mrb[0].mxu0
  %v1677 = vadd.f32 %v342, %v1676
  %v1678 = vpop.f32.mrb[0].mxu0
  %1679 = vdwg.mxu0
  %v1680 = vadd.f32 %v1604, %v1677
  %v1681 = vxor.u32 %v1680, 2147483648
  %v1682 = vmul.f32 %v1681, 1.442695
  %v1683 = vpow.pop %v1682
  %v1684 = vadd.f32 %v1683, 1.0
  %v1685 = vrcp.pop %v1684
  %v1686 = vmul.f32 1.0, %v1685
  %v1687 = vadd.f32 %v1604, %v545
  %1689 = vrot.lane.b32.xlu0 %v1677, 96
  %v1690 = vpop.permute.xlu0 %1689
  %v1692 = vmul.f32 %v1686, %v1690
  %1694 = vrot.lane.b32.xlu0 %v1692, 32
  %v1695 = vpop.permute.xlu0 %1694
  %v1697 = vadd.f32 %v1687, %v1695
  %v1698 = vtanh.pop %v1697
  %v1699 = vsub.f32 %v1495, %v1698
  %1701 = vrot.lane.b32.xlu0 %v1699, 112
  %v1702 = vpop.permute.xlu0 %1701
  %v1704 = vmul.f32 %v1686, %v1702
  %1706 = vrot.lane.b32.xlu0 %v1704, 16
  %v1707 = vpop.permute.xlu0 %1706
  %v1709 = vadd.f32 %v1698, %v1707
  %vm1710 = vcmp.gt.s32.totalorder %v322, 5
  %v1711 = vsel %vm1710, 1, 0
  %1712 = vset.pattern.permute.xlu0 0
  %1713 = vperm.xlu0 %1712, %v1711
  %v1714 = vpop.permute.xlu0 %1713
  %vm1715 = vcmp.eq.s32.totalorder %v1714, 1
  %v1716 = vsel %vm1715, %v1602, %v1488
  %vm1717 = vcmp.le.s32.totalorder %v323, 5
  %v1718 = vsel %vm1717, 1, 0
  %1719 = vset.pattern.permute.xlu0 0
  %1720 = vperm.xlu0 %1719, %v1718
  %v1721 = vpop.permute.xlu0 %1720
  %vm1722 = vcmp.eq.s32.totalorder %v1721, 1
  %v1723 = vsel %vm1722, %v1709, %v1495
  %s1724 = scalar_lea.vmem [#allocation2], 48
  %v1725 = vld [vmem:[%s1724] sm:$0xff]
  %1727 = vrot.lane.b32.xlu0 %v1716, 96
  %v1728 = vpop.permute.xlu0 %1727
  %v1729 = vsel %vm358, %v1728, 0
  %1731 = vmatprep.subr.mxu0 0.0
  %1732 = vmatpush1.msra.mxu0 %v324
  %1733 = vmatprep.subr.mxu0 0.0
  %1734 = vmatpush1.msra.mxu0 %v325
  %1735 = vmatprep.subr.mxu0 0.0
  %1736 = vmatpush1.msra.mxu0 0.0
  %1737 = vmatprep.subr.mxu0 0.0
  %1738 = vmatpush1.msra.mxu0 0.0
  %1739 = vmatprep.subr.mxu0 0.0
  %1740 = vmatpush1.msra.mxu0 0.0
  %1741 = vmatprep.subr.mxu0 0.0
  %1742 = vmatpush1.msra.mxu0 0.0
  %1743 = vmatprep.subr.mxu0 0.0
  %1744 = vmatpush1.msra.mxu0 0.0
  %1745 = vmatprep.subr.mxu0 0.0
  %1746 = vmatpush1.msra.mxu0 0.0
  %1747 = vmatprep.subr.mxu0 0.0
  %1748 = vmatpush1.msra.mxu0 0.0
  %1749 = vmatprep.subr.mxu0 0.0
  %1750 = vmatpush1.msra.mxu0 0.0
  %1751 = vmatprep.subr.mxu0 0.0
  %1752 = vmatpush1.msra.mxu0 0.0
  %1753 = vmatprep.subr.mxu0 0.0
  %1754 = vmatpush1.msra.mxu0 0.0
  %1755 = vmatprep.subr.mxu0 0.0
  %1756 = vmatpush1.msra.mxu0 0.0
  %1757 = vmatprep.subr.mxu0 0.0
  %1758 = vmatpush1.msra.mxu0 0.0
  %1759 = vmatprep.subr.mxu0 0.0
  %1760 = vmatpush1.msra.mxu0 0.0
  %1761 = vmatprep.subr.mxu0 0.0
  %1762 = vmatpush1.msra.mxu0 0.0
  %1763 = vmatprep.subr.mxu0 0.0
  %1764 = vmatpush1.msra.mxu0 0.0
  %1765 = vmatprep.subr.mxu0 0.0
  %1766 = vmatpush1.msra.mxu0 0.0
  %1767 = vmatprep.subr.mxu0 0.0
  %1768 = vmatpush1.msra.mxu0 0.0
  %1769 = vmatprep.subr.mxu0 0.0
  %1770 = vmatpush1.msra.mxu0 0.0
  %1771 = vmatprep.subr.mxu0 0.0
  %1772 = vmatpush1.msra.mxu0 0.0
  %1773 = vmatprep.subr.mxu0 0.0
  %1774 = vmatpush1.msra.mxu0 0.0
  %1775 = vmatprep.subr.mxu0 0.0
  %1776 = vmatpush1.msra.mxu0 0.0
  %1777 = vmatprep.subr.mxu0 0.0
  %1778 = vmatpush1.msra.mxu0 0.0
  %1779 = vmatprep.subr.mxu0 0.0
  %1780 = vmatpush1.msra.mxu0 0.0
  %1781 = vmatprep.subr.mxu0 0.0
  %1782 = vmatpush1.msra.mxu0 0.0
  %1783 = vmatprep.subr.mxu0 0.0
  %1784 = vmatpush1.msra.mxu0 0.0
  %1785 = vmatprep.subr.mxu0 0.0
  %1786 = vmatpush1.msra.mxu0 0.0
  %1787 = vmatprep.subr.mxu0 0.0
  %1788 = vmatpush1.msra.mxu0 0.0
  %1789 = vmatprep.subr.mxu0 0.0
  %1790 = vmatpush1.msra.mxu0 0.0
  %1791 = vmatprep.subr.mxu0 0.0
  %1792 = vmatpush1.msra.mxu0 0.0
  %1793 = vmatprep.subr.mxu0 0.0
  %1794 = vmatpush1.msra.mxu0 0.0
  %1795 = vmatprep.mubr.f32.mxu0 0.0
  %1796 = vmatmul.mubr.f32.gmra.mrb[0].mxu0 %v1729
  %v1797 = vpop.f32.mrb[0].mxu0
  %v1798 = vadd.f32 %v334, %v1797
  %v1799 = vpop.f32.mrb[0].mxu0
  %1800 = vdwg.mxu0
  %v1801 = vadd.f32 %v1725, %v1798
  %v1802 = vxor.u32 %v1801, 2147483648
  %v1803 = vmul.f32 %v1802, 1.442695
  %v1804 = vpow.pop %v1803
  %v1805 = vadd.f32 %v1804, 1.0
  %v1806 = vrcp.pop %v1805
  %v1807 = vmul.f32 1.0, %v1806
  %v1808 = vadd.f32 %v1725, %v440
  %1810 = vrot.lane.b32.xlu0 %v1798, 96
  %v1811 = vpop.permute.xlu0 %1810
  %v1813 = vmul.f32 %v1807, %v1811
  %1815 = vrot.lane.b32.xlu0 %v1813, 32
  %v1816 = vpop.permute.xlu0 %1815
  %v1818 = vadd.f32 %v1808, %v1816
  %v1819 = vtanh.pop %v1818
  %v1820 = vsub.f32 %v1716, %v1819
  %1822 = vrot.lane.b32.xlu0 %v1820, 112
  %v1823 = vpop.permute.xlu0 %1822
  %v1825 = vmul.f32 %v1807, %v1823
  %1827 = vrot.lane.b32.xlu0 %v1825, 16
  %v1828 = vpop.permute.xlu0 %1827
  %v1830 = vadd.f32 %v1819, %v1828
  %s1831 = scalar_lea.vmem [#allocation3], 8
  %v1832 = vld [vmem:[%s1831] sm:$0xff]
  %1834 = vrot.lane.b32.xlu0 %v1723, 96
  %v1835 = vpop.permute.xlu0 %1834
  %v1836 = vsel %vm358, %v1835, 0
  %1838 = vmatprep.subr.mxu0 0.0
  %1839 = vmatpush1.msra.mxu0 %v327
  %1840 = vmatprep.subr.mxu0 0.0
  %1841 = vmatpush1.msra.mxu0 %v328
  %1842 = vmatprep.subr.mxu0 0.0
  %1843 = vmatpush1.msra.mxu0 0.0
  %1844 = vmatprep.subr.mxu0 0.0
  %1845 = vmatpush1.msra.mxu0 0.0
  %1846 = vmatprep.subr.mxu0 0.0
  %1847 = vmatpush1.msra.mxu0 0.0
  %1848 = vmatprep.subr.mxu0 0.0
  %1849 = vmatpush1.msra.mxu0 0.0
  %1850 = vmatprep.subr.mxu0 0.0
  %1851 = vmatpush1.msra.mxu0 0.0
  %1852 = vmatprep.subr.mxu0 0.0
  %1853 = vmatpush1.msra.mxu0 0.0
  %1854 = vmatprep.subr.mxu0 0.0
  %1855 = vmatpush1.msra.mxu0 0.0
  %1856 = vmatprep.subr.mxu0 0.0
  %1857 = vmatpush1.msra.mxu0 0.0
  %1858 = vmatprep.subr.mxu0 0.0
  %1859 = vmatpush1.msra.mxu0 0.0
  %1860 = vmatprep.subr.mxu0 0.0
  %1861 = vmatpush1.msra.mxu0 0.0
  %1862 = vmatprep.subr.mxu0 0.0
  %1863 = vmatpush1.msra.mxu0 0.0
  %1864 = vmatprep.subr.mxu0 0.0
  %1865 = vmatpush1.msra.mxu0 0.0
  %1866 = vmatprep.subr.mxu0 0.0
  %1867 = vmatpush1.msra.mxu0 0.0
  %1868 = vmatprep.subr.mxu0 0.0
  %1869 = vmatpush1.msra.mxu0 0.0
  %1870 = vmatprep.subr.mxu0 0.0
  %1871 = vmatpush1.msra.mxu0 0.0
  %1872 = vmatprep.subr.mxu0 0.0
  %1873 = vmatpush1.msra.mxu0 0.0
  %1874 = vmatprep.subr.mxu0 0.0
  %1875 = vmatpush1.msra.mxu0 0.0
  %1876 = vmatprep.subr.mxu0 0.0
  %1877 = vmatpush1.msra.mxu0 0.0
  %1878 = vmatprep.subr.mxu0 0.0
  %1879 = vmatpush1.msra.mxu0 0.0
  %1880 = vmatprep.subr.mxu0 0.0
  %1881 = vmatpush1.msra.mxu0 0.0
  %1882 = vmatprep.subr.mxu0 0.0
  %1883 = vmatpush1.msra.mxu0 0.0
  %1884 = vmatprep.subr.mxu0 0.0
  %1885 = vmatpush1.msra.mxu0 0.0
  %1886 = vmatprep.subr.mxu0 0.0
  %1887 = vmatpush1.msra.mxu0 0.0
  %1888 = vmatprep.subr.mxu0 0.0
  %1889 = vmatpush1.msra.mxu0 0.0
  %1890 = vmatprep.subr.mxu0 0.0
  %1891 = vmatpush1.msra.mxu0 0.0
  %1892 = vmatprep.subr.mxu0 0.0
  %1893 = vmatpush1.msra.mxu0 0.0
  %1894 = vmatprep.subr.mxu0 0.0
  %1895 = vmatpush1.msra.mxu0 0.0
  %1896 = vmatprep.subr.mxu0 0.0
  %1897 = vmatpush1.msra.mxu0 0.0
  %1898 = vmatprep.subr.mxu0 0.0
  %1899 = vmatpush1.msra.mxu0 0.0
  %1900 = vmatprep.subr.mxu0 0.0
  %1901 = vmatpush1.msra.mxu0 0.0
  %1902 = vmatprep.mubr.f32.mxu0 0.0
  %1903 = vmatmul.mubr.f32.gmra.mrb[0].mxu0 %v1836
  %v1904 = vpop.f32.mrb[0].mxu0
  %v1905 = vadd.f32 %v342, %v1904
  %v1906 = vpop.f32.mrb[0].mxu0
  %1907 = vdwg.mxu0
  %v1908 = vadd.f32 %v1832, %v1905
  %v1909 = vxor.u32 %v1908, 2147483648
  %v1910 = vmul.f32 %v1909, 1.442695
  %v1911 = vpow.pop %v1910
  %v1912 = vadd.f32 %v1911, 1.0
  %v1913 = vrcp.pop %v1912
  %v1914 = vmul.f32 1.0, %v1913
  %v1915 = vadd.f32 %v1832, %v545
  %1917 = vrot.lane.b32.xlu0 %v1905, 96
  %v1918 = vpop.permute.xlu0 %1917
  %v1920 = vmul.f32 %v1914, %v1918
  %1922 = vrot.lane.b32.xlu0 %v1920, 32
  %v1923 = vpop.permute.xlu0 %1922
  %v1925 = vadd.f32 %v1915, %v1923
  %v1926 = vtanh.pop %v1925
  %v1927 = vsub.f32 %v1723, %v1926
  %1929 = vrot.lane.b32.xlu0 %v1927, 112
  %v1930 = vpop.permute.xlu0 %1929
  %v1932 = vmul.f32 %v1914, %v1930
  %1934 = vrot.lane.b32.xlu0 %v1932, 16
  %v1935 = vpop.permute.xlu0 %1934
  %v1937 = vadd.f32 %v1926, %v1935
  %vm1938 = vcmp.gt.s32.totalorder %v322, 6
  %v1939 = vsel %vm1938, 1, 0
  %1940 = vset.pattern.permute.xlu0 0
  %1941 = vperm.xlu0 %1940, %v1939
  %v1942 = vpop.permute.xlu0 %1941
  %vm1943 = vcmp.eq.s32.totalorder %v1942, 1
  %v1944 = vsel %vm1943, %v1830, %v1716
  %vm1945 = vcmp.le.s32.totalorder %v323, 6
  %v1946 = vsel %vm1945, 1, 0
  %1947 = vset.pattern.permute.xlu0 0
  %1948 = vperm.xlu0 %1947, %v1946
  %v1949 = vpop.permute.xlu0 %1948
  %vm1950 = vcmp.eq.s32.totalorder %v1949, 1
  %v1951 = vsel %vm1950, %v1937, %v1723
  %s1952 = scalar_lea.vmem [#allocation2], 56
  %v1953 = vld [vmem:[%s1952] sm:$0xff]
  %1955 = vrot.lane.b32.xlu0 %v1944, 96
  %v1956 = vpop.permute.xlu0 %1955
  %v1957 = vsel %vm358, %v1956, 0
  %1959 = vmatprep.subr.mxu0 0.0
  %1960 = vmatpush1.msra.mxu0 %v324
  %1961 = vmatprep.subr.mxu0 0.0
  %1962 = vmatpush1.msra.mxu0 %v325
  %1963 = vmatprep.subr.mxu0 0.0
  %1964 = vmatpush1.msra.mxu0 0.0
  %1965 = vmatprep.subr.mxu0 0.0
  %1966 = vmatpush1.msra.mxu0 0.0
  %1967 = vmatprep.subr.mxu0 0.0
  %1968 = vmatpush1.msra.mxu0 0.0
  %1969 = vmatprep.subr.mxu0 0.0
  %1970 = vmatpush1.msra.mxu0 0.0
  %1971 = vmatprep.subr.mxu0 0.0
  %1972 = vmatpush1.msra.mxu0 0.0
  %1973 = vmatprep.subr.mxu0 0.0
  %1974 = vmatpush1.msra.mxu0 0.0
  %1975 = vmatprep.subr.mxu0 0.0
  %1976 = vmatpush1.msra.mxu0 0.0
  %1977 = vmatprep.subr.mxu0 0.0
  %1978 = vmatpush1.msra.mxu0 0.0
  %1979 = vmatprep.subr.mxu0 0.0
  %1980 = vmatpush1.msra.mxu0 0.0
  %1981 = vmatprep.subr.mxu0 0.0
  %1982 = vmatpush1.msra.mxu0 0.0
  %1983 = vmatprep.subr.mxu0 0.0
  %1984 = vmatpush1.msra.mxu0 0.0
  %1985 = vmatprep.subr.mxu0 0.0
  %1986 = vmatpush1.msra.mxu0 0.0
  %1987 = vmatprep.subr.mxu0 0.0
  %1988 = vmatpush1.msra.mxu0 0.0
  %1989 = vmatprep.subr.mxu0 0.0
  %1990 = vmatpush1.msra.mxu0 0.0
  %1991 = vmatprep.subr.mxu0 0.0
  %1992 = vmatpush1.msra.mxu0 0.0
  %1993 = vmatprep.subr.mxu0 0.0
  %1994 = vmatpush1.msra.mxu0 0.0
  %1995 = vmatprep.subr.mxu0 0.0
  %1996 = vmatpush1.msra.mxu0 0.0
  %1997 = vmatprep.subr.mxu0 0.0
  %1998 = vmatpush1.msra.mxu0 0.0
  %1999 = vmatprep.subr.mxu0 0.0
  %2000 = vmatpush1.msra.mxu0 0.0
  %2001 = vmatprep.subr.mxu0 0.0
  %2002 = vmatpush1.msra.mxu0 0.0
  %2003 = vmatprep.subr.mxu0 0.0
  %2004 = vmatpush1.msra.mxu0 0.0
  %2005 = vmatprep.subr.mxu0 0.0
  %2006 = vmatpush1.msra.mxu0 0.0
  %2007 = vmatprep.subr.mxu0 0.0
  %2008 = vmatpush1.msra.mxu0 0.0
  %2009 = vmatprep.subr.mxu0 0.0
  %2010 = vmatpush1.msra.mxu0 0.0
  %2011 = vmatprep.subr.mxu0 0.0
  %2012 = vmatpush1.msra.mxu0 0.0
  %2013 = vmatprep.subr.mxu0 0.0
  %2014 = vmatpush1.msra.mxu0 0.0
  %2015 = vmatprep.subr.mxu0 0.0
  %2016 = vmatpush1.msra.mxu0 0.0
  %2017 = vmatprep.subr.mxu0 0.0
  %2018 = vmatpush1.msra.mxu0 0.0
  %2019 = vmatprep.subr.mxu0 0.0
  %2020 = vmatpush1.msra.mxu0 0.0
  %2021 = vmatprep.subr.mxu0 0.0
  %2022 = vmatpush1.msra.mxu0 0.0
  %2023 = vmatprep.mubr.f32.mxu0 0.0
  %2024 = vmatmul.mubr.f32.gmra.mrb[0].mxu0 %v1957
  %v2025 = vpop.f32.mrb[0].mxu0
  %v2026 = vadd.f32 %v334, %v2025
  %v2027 = vpop.f32.mrb[0].mxu0
  %2028 = vdwg.mxu0
  %v2029 = vadd.f32 %v1953, %v2026
  %v2030 = vxor.u32 %v2029, 2147483648
  %v2031 = vmul.f32 %v2030, 1.442695
  %v2032 = vpow.pop %v2031
  %v2033 = vadd.f32 %v2032, 1.0
  %v2034 = vrcp.pop %v2033
  %v2035 = vmul.f32 1.0, %v2034
  %v2036 = vadd.f32 %v1953, %v440
  %2038 = vrot.lane.b32.xlu0 %v2026, 96
  %v2039 = vpop.permute.xlu0 %2038
  %v2041 = vmul.f32 %v2035, %v2039
  %2043 = vrot.lane.b32.xlu0 %v2041, 32
  %v2044 = vpop.permute.xlu0 %2043
  %v2046 = vadd.f32 %v2036, %v2044
  %v2047 = vtanh.pop %v2046
  %v2048 = vsub.f32 %v1944, %v2047
  %2050 = vrot.lane.b32.xlu0 %v2048, 112
  %v2051 = vpop.permute.xlu0 %2050
  %v2053 = vmul.f32 %v2035, %v2051
  %2055 = vrot.lane.b32.xlu0 %v2053, 16
  %v2056 = vpop.permute.xlu0 %2055
  %v2058 = vadd.f32 %v2047, %v2056
  %v2059 = vld [vmem:[#allocation3] sm:$0xff]
  %2061 = vrot.lane.b32.xlu0 %v1951, 96
  %v2062 = vpop.permute.xlu0 %2061
  %v2063 = vsel %vm358, %v2062, 0
  %2065 = vmatprep.subr.mxu0 0.0
  %2066 = vmatpush1.msra.mxu0 %v327
  %2067 = vmatprep.subr.mxu0 0.0
  %2068 = vmatpush1.msra.mxu0 %v328
  %2069 = vmatprep.subr.mxu0 0.0
  %2070 = vmatpush1.msra.mxu0 0.0
  %2071 = vmatprep.subr.mxu0 0.0
  %2072 = vmatpush1.msra.mxu0 0.0
  %2073 = vmatprep.subr.mxu0 0.0
  %2074 = vmatpush1.msra.mxu0 0.0
  %2075 = vmatprep.subr.mxu0 0.0
  %2076 = vmatpush1.msra.mxu0 0.0
  %2077 = vmatprep.subr.mxu0 0.0
  %2078 = vmatpush1.msra.mxu0 0.0
  %2079 = vmatprep.subr.mxu0 0.0
  %2080 = vmatpush1.msra.mxu0 0.0
  %2081 = vmatprep.subr.mxu0 0.0
  %2082 = vmatpush1.msra.mxu0 0.0
  %2083 = vmatprep.subr.mxu0 0.0
  %2084 = vmatpush1.msra.mxu0 0.0
  %2085 = vmatprep.subr.mxu0 0.0
  %2086 = vmatpush1.msra.mxu0 0.0
  %2087 = vmatprep.subr.mxu0 0.0
  %2088 = vmatpush1.msra.mxu0 0.0
  %2089 = vmatprep.subr.mxu0 0.0
  %2090 = vmatpush1.msra.mxu0 0.0
  %2091 = vmatprep.subr.mxu0 0.0
  %2092 = vmatpush1.msra.mxu0 0.0
  %2093 = vmatprep.subr.mxu0 0.0
  %2094 = vmatpush1.msra.mxu0 0.0
  %2095 = vmatprep.subr.mxu0 0.0
  %2096 = vmatpush1.msra.mxu0 0.0
  %2097 = vmatprep.subr.mxu0 0.0
  %2098 = vmatpush1.msra.mxu0 0.0
  %2099 = vmatprep.subr.mxu0 0.0
  %2100 = vmatpush1.msra.mxu0 0.0
  %2101 = vmatprep.subr.mxu0 0.0
  %2102 = vmatpush1.msra.mxu0 0.0
  %2103 = vmatprep.subr.mxu0 0.0
  %2104 = vmatpush1.msra.mxu0 0.0
  %2105 = vmatprep.subr.mxu0 0.0
  %2106 = vmatpush1.msra.mxu0 0.0
  %2107 = vmatprep.subr.mxu0 0.0
  %2108 = vmatpush1.msra.mxu0 0.0
  %2109 = vmatprep.subr.mxu0 0.0
  %2110 = vmatpush1.msra.mxu0 0.0
  %2111 = vmatprep.subr.mxu0 0.0
  %2112 = vmatpush1.msra.mxu0 0.0
  %2113 = vmatprep.subr.mxu0 0.0
  %2114 = vmatpush1.msra.mxu0 0.0
  %2115 = vmatprep.subr.mxu0 0.0
  %2116 = vmatpush1.msra.mxu0 0.0
  %2117 = vmatprep.subr.mxu0 0.0
  %2118 = vmatpush1.msra.mxu0 0.0
  %2119 = vmatprep.subr.mxu0 0.0
  %2120 = vmatpush1.msra.mxu0 0.0
  %2121 = vmatprep.subr.mxu0 0.0
  %2122 = vmatpush1.msra.mxu0 0.0
  %2123 = vmatprep.subr.mxu0 0.0
  %2124 = vmatpush1.msra.mxu0 0.0
  %2125 = vmatprep.subr.mxu0 0.0
  %2126 = vmatpush1.msra.mxu0 0.0
  %2127 = vmatprep.subr.mxu0 0.0
  %2128 = vmatpush1.msra.mxu0 0.0
  %2129 = vmatprep.mubr.f32.mxu0 0.0
  %2130 = vmatmul.mubr.f32.gmra.mrb[0].mxu0 %v2063
  %v2131 = vpop.f32.mrb[0].mxu0
  %v2132 = vadd.f32 %v342, %v2131
  %v2133 = vpop.f32.mrb[0].mxu0
  %2134 = vdwg.mxu0
  %v2135 = vadd.f32 %v2059, %v2132
  %v2136 = vxor.u32 %v2135, 2147483648
  %v2137 = vmul.f32 %v2136, 1.442695
  %v2138 = vpow.pop %v2137
  %v2139 = vadd.f32 %v2138, 1.0
  %v2140 = vrcp.pop %v2139
  %v2141 = vmul.f32 1.0, %v2140
  %v2142 = vadd.f32 %v2059, %v545
  %2144 = vrot.lane.b32.xlu0 %v2132, 96
  %v2145 = vpop.permute.xlu0 %2144
  %v2147 = vmul.f32 %v2141, %v2145
  %2149 = vrot.lane.b32.xlu0 %v2147, 32
  %v2150 = vpop.permute.xlu0 %2149
  %v2152 = vadd.f32 %v2142, %v2150
  %v2153 = vtanh.pop %v2152
  %v2154 = vsub.f32 %v1951, %v2153
  %2156 = vrot.lane.b32.xlu0 %v2154, 112
  %v2157 = vpop.permute.xlu0 %2156
  %v2159 = vmul.f32 %v2141, %v2157
  %2161 = vrot.lane.b32.xlu0 %v2159, 16
  %v2162 = vpop.permute.xlu0 %2161
  %v2164 = vadd.f32 %v2153, %v2162
  %vm2165 = vcmp.gt.s32.totalorder %v322, 7
  %v2166 = vsel %vm2165, 1, 0
  %2167 = vset.pattern.permute.xlu0 0
  %2168 = vperm.xlu0 %2167, %v2166
  %v2169 = vpop.permute.xlu0 %2168
  %vm2170 = vcmp.eq.s32.totalorder %v2169, 1
  %v2171 = vsel %vm2170, %v2058, %v1944
  %vm2172 = vcmp.le.s32.totalorder %v323, 7
  %v2173 = vsel %vm2172, 1, 0
  %2174 = vset.pattern.permute.xlu0 0
  %2175 = vperm.xlu0 %2174, %v2173
  %v2176 = vpop.permute.xlu0 %2175
  %vm2177 = vcmp.eq.s32.totalorder %v2176, 1
  %v2178 = vsel %vm2177, %v2164, %v1951
  %2180 = vrot.lane.b32.xlu0 %v2171, 96
  %v2181 = vpop.permute.xlu0 %2180
  %2184 = vrot.lane.b32.xlu0 %v2178, 112
  %v2185 = vpop.permute.xlu0 %2184
  %v2187 = vsel %vm358, %v2181, %v2185
  %v2188 = vld [vmem:[%s6] sm:$0x1]
  %v2189 = vld [vmem:[%s7] sm:$0x1]
  %v2190 = vsel %vm68, %v2187, 0.0
  %2191 = vadd.xlane.f32.xlu0 %v2190
  %v2192 = vpop.xlane.xlu0 %2191
  %v2193 = vrcp.pop 32.0
  %v2194 = vmul.f32 %v2192, %v2193
  %v2195 = vsub.f32 %v2187, %v2194
  %v2196 = vmul.f32 %v2195, %v2195
  %v2197 = vsel %vm68, %v2196, 0.0
  %2198 = vadd.xlane.f32.xlu0 %v2197
  %v2199 = vpop.xlane.xlu0 %2198
  %v2200 = vmul.f32 %v2199, %v2193
  %v2201 = vadd.f32 %v2200, 1e-05
  %v2202 = vrsqrt.pop %v2201
  %v2203 = vmul.f32 %v2195, %v2202
  %v2205 = vlaneseq
  %v2206 = vshrl.u32 %v2205, 7
  %v2207 = vsub.s32 0, %v2206
  %v2208 = vrot.slane %v2188, %v2207
  %v2210 = vmul.f32 %v2203, %v2208
  %v2212 = vlaneseq
  %v2213 = vshrl.u32 %v2212, 7
  %v2214 = vsub.s32 0, %v2213
  %v2215 = vrot.slane %v2189, %v2214
  %v2217 = vadd.f32 %v2210, %v2215
  %v2218 = vld [vmem:[%s8] sm:$0xff]
  %v2219 = vld [vmem:[%s8 + $0x8] sm:$0xff]
  %v2220 = vld [vmem:[%s8 + $0x10] sm:$0xff]
  %v2221 = vld [vmem:[%s8 + $0x18] sm:$0xff]
  %v2222 = vld [vmem:[%s9] sm:$0x1]
  %v2224 = vlaneseq
  %v2225 = vshrl.u32 %v2224, 7
  %v2226 = vsub.s32 0, %v2225
  %v2227 = vrot.slane %v2222, %v2226
  %v2230 = vsel %vm68, %v2217, 0
  %2232 = vmatprep.subr.mxu0 0.0
  %2233 = vmatpush1.msra.mxu0 %v2218
  %2234 = vmatprep.subr.mxu0 0.0
  %2235 = vmatpush1.msra.mxu0 %v2219
  %2236 = vmatprep.subr.mxu0 0.0
  %2237 = vmatpush1.msra.mxu0 %v2220
  %2238 = vmatprep.subr.mxu0 0.0
  %2239 = vmatpush1.msra.mxu0 %v2221
  %2240 = vmatprep.subr.mxu0 0.0
  %2241 = vmatpush1.msra.mxu0 0.0
  %2242 = vmatprep.subr.mxu0 0.0
  %2243 = vmatpush1.msra.mxu0 0.0
  %2244 = vmatprep.subr.mxu0 0.0
  %2245 = vmatpush1.msra.mxu0 0.0
  %2246 = vmatprep.subr.mxu0 0.0
  %2247 = vmatpush1.msra.mxu0 0.0
  %2248 = vmatprep.subr.mxu0 0.0
  %2249 = vmatpush1.msra.mxu0 0.0
  %2250 = vmatprep.subr.mxu0 0.0
  %2251 = vmatpush1.msra.mxu0 0.0
  %2252 = vmatprep.subr.mxu0 0.0
  %2253 = vmatpush1.msra.mxu0 0.0
  %2254 = vmatprep.subr.mxu0 0.0
  %2255 = vmatpush1.msra.mxu0 0.0
  %2256 = vmatprep.subr.mxu0 0.0
  %2257 = vmatpush1.msra.mxu0 0.0
  %2258 = vmatprep.subr.mxu0 0.0
  %2259 = vmatpush1.msra.mxu0 0.0
  %2260 = vmatprep.subr.mxu0 0.0
  %2261 = vmatpush1.msra.mxu0 0.0
  %2262 = vmatprep.subr.mxu0 0.0
  %2263 = vmatpush1.msra.mxu0 0.0
  %2264 = vmatprep.subr.mxu0 0.0
  %2265 = vmatpush1.msra.mxu0 0.0
  %2266 = vmatprep.subr.mxu0 0.0
  %2267 = vmatpush1.msra.mxu0 0.0
  %2268 = vmatprep.subr.mxu0 0.0
  %2269 = vmatpush1.msra.mxu0 0.0
  %2270 = vmatprep.subr.mxu0 0.0
  %2271 = vmatpush1.msra.mxu0 0.0
  %2272 = vmatprep.subr.mxu0 0.0
  %2273 = vmatpush1.msra.mxu0 0.0
  %2274 = vmatprep.subr.mxu0 0.0
  %2275 = vmatpush1.msra.mxu0 0.0
  %2276 = vmatprep.subr.mxu0 0.0
  %2277 = vmatpush1.msra.mxu0 0.0
  %2278 = vmatprep.subr.mxu0 0.0
  %2279 = vmatpush1.msra.mxu0 0.0
  %2280 = vmatprep.subr.mxu0 0.0
  %2281 = vmatpush1.msra.mxu0 0.0
  %2282 = vmatprep.subr.mxu0 0.0
  %2283 = vmatpush1.msra.mxu0 0.0
  %2284 = vmatprep.subr.mxu0 0.0
  %2285 = vmatpush1.msra.mxu0 0.0
  %2286 = vmatprep.subr.mxu0 0.0
  %2287 = vmatpush1.msra.mxu0 0.0
  %2288 = vmatprep.subr.mxu0 0.0
  %2289 = vmatpush1.msra.mxu0 0.0
  %2290 = vmatprep.subr.mxu0 0.0
  %2291 = vmatpush1.msra.mxu0 0.0
  %2292 = vmatprep.subr.mxu0 0.0
  %2293 = vmatpush1.msra.mxu0 0.0
  %2294 = vmatprep.subr.mxu0 0.0
  %2295 = vmatpush1.msra.mxu0 0.0
  %2296 = vmatprep.mubr.f32.mxu0 0.0
  %2297 = vmatmul.mubr.f32.gmra.mrb[0].mxu0 %v2230
  %v2298 = vpop.f32.mrb[0].mxu0
  %v2299 = vadd.f32 %v2227, %v2298
  %v2300 = vpop.f32.mrb[0].mxu0
  %2301 = vdwg.mxu0
  %v2302 = vld [vmem:[%s10] sm:$0x1]
  %v2303 = vld [vmem:[%s11] sm:$0x1]
  %v2304 = vsel %vm358, %v2299, 0.0
  %2305 = vadd.xlane.f32.xlu0 %v2304
  %v2306 = vpop.xlane.xlu0 %2305
  %v2307 = vrcp.pop 16.0
  %v2308 = vmul.f32 %v2306, %v2307
  %v2309 = vsub.f32 %v2299, %v2308
  %v2310 = vmul.f32 %v2309, %v2309
  %v2311 = vsel %vm358, %v2310, 0.0
  %2312 = vadd.xlane.f32.xlu0 %v2311
  %v2313 = vpop.xlane.xlu0 %2312
  %v2314 = vmul.f32 %v2313, %v2307
  %v2315 = vadd.f32 %v2314, 1e-05
  %v2316 = vrsqrt.pop %v2315
  %v2317 = vmul.f32 %v2309, %v2316
  %v2319 = vlaneseq
  %v2320 = vshrl.u32 %v2319, 7
  %v2321 = vsub.s32 0, %v2320
  %v2322 = vrot.slane %v2302, %v2321
  %v2324 = vmul.f32 %v2317, %v2322
  %v2326 = vlaneseq
  %v2327 = vshrl.u32 %v2326, 7
  %v2328 = vsub.s32 0, %v2327
  %v2329 = vrot.slane %v2303, %v2328
  %v2331 = vadd.f32 %v2324, %v2329
  %v2332 = vmax.f32 %v2331, 0.0
  %v2333 = vld [vmem:[%s12] sm:$0xff]
  %v2334 = vld [vmem:[%s12 + $0x8] sm:$0xff]
  %v2335 = vld [vmem:[#allocation4] sm:$0x1]
  %v2337 = vlaneseq
  %v2338 = vshrl.u32 %v2337, 7
  %v2339 = vsub.s32 0, %v2338
  %v2340 = vrot.slane %v2335, %v2339
  %v2343 = vsel %vm358, %v2332, 0
  %2345 = vmatprep.subr.mxu0 0.0
  %2346 = vmatpush1.msra.mxu0 %v2333
  %2347 = vmatprep.subr.mxu0 0.0
  %2348 = vmatpush1.msra.mxu0 %v2334
  %2349 = vmatprep.subr.mxu0 0.0
  %2350 = vmatpush1.msra.mxu0 0.0
  %2351 = vmatprep.subr.mxu0 0.0
  %2352 = vmatpush1.msra.mxu0 0.0
  %2353 = vmatprep.subr.mxu0 0.0
  %2354 = vmatpush1.msra.mxu0 0.0
  %2355 = vmatprep.subr.mxu0 0.0
  %2356 = vmatpush1.msra.mxu0 0.0
  %2357 = vmatprep.subr.mxu0 0.0
  %2358 = vmatpush1.msra.mxu0 0.0
  %2359 = vmatprep.subr.mxu0 0.0
  %2360 = vmatpush1.msra.mxu0 0.0
  %2361 = vmatprep.subr.mxu0 0.0
  %2362 = vmatpush1.msra.mxu0 0.0
  %2363 = vmatprep.subr.mxu0 0.0
  %2364 = vmatpush1.msra.mxu0 0.0
  %2365 = vmatprep.subr.mxu0 0.0
  %2366 = vmatpush1.msra.mxu0 0.0
  %2367 = vmatprep.subr.mxu0 0.0
  %2368 = vmatpush1.msra.mxu0 0.0
  %2369 = vmatprep.subr.mxu0 0.0
  %2370 = vmatpush1.msra.mxu0 0.0
  %2371 = vmatprep.subr.mxu0 0.0
  %2372 = vmatpush1.msra.mxu0 0.0
  %2373 = vmatprep.subr.mxu0 0.0
  %2374 = vmatpush1.msra.mxu0 0.0
  %2375 = vmatprep.subr.mxu0 0.0
  %2376 = vmatpush1.msra.mxu0 0.0
  %2377 = vmatprep.subr.mxu0 0.0
  %2378 = vmatpush1.msra.mxu0 0.0
  %2379 = vmatprep.subr.mxu0 0.0
  %2380 = vmatpush1.msra.mxu0 0.0
  %2381 = vmatprep.subr.mxu0 0.0
  %2382 = vmatpush1.msra.mxu0 0.0
  %2383 = vmatprep.subr.mxu0 0.0
  %2384 = vmatpush1.msra.mxu0 0.0
  %2385 = vmatprep.subr.mxu0 0.0
  %2386 = vmatpush1.msra.mxu0 0.0
  %2387 = vmatprep.subr.mxu0 0.0
  %2388 = vmatpush1.msra.mxu0 0.0
  %2389 = vmatprep.subr.mxu0 0.0
  %2390 = vmatpush1.msra.mxu0 0.0
  %2391 = vmatprep.subr.mxu0 0.0
  %2392 = vmatpush1.msra.mxu0 0.0
  %2393 = vmatprep.subr.mxu0 0.0
  %2394 = vmatpush1.msra.mxu0 0.0
  %2395 = vmatprep.subr.mxu0 0.0
  %2396 = vmatpush1.msra.mxu0 0.0
  %2397 = vmatprep.subr.mxu0 0.0
  %2398 = vmatpush1.msra.mxu0 0.0
  %2399 = vmatprep.subr.mxu0 0.0
  %2400 = vmatpush1.msra.mxu0 0.0
  %2401 = vmatprep.subr.mxu0 0.0
  %2402 = vmatpush1.msra.mxu0 0.0
  %2403 = vmatprep.subr.mxu0 0.0
  %2404 = vmatpush1.msra.mxu0 0.0
  %2405 = vmatprep.subr.mxu0 0.0
  %2406 = vmatpush1.msra.mxu0 0.0
  %2407 = vmatprep.subr.mxu0 0.0
  %2408 = vmatpush1.msra.mxu0 0.0
  %2409 = vmatprep.mubr.f32.mxu0 0.0
  %2410 = vmatmul.mubr.f32.gmra.mrb[0].mxu0 %v2343
  %v2411 = vpop.f32.mrb[0].mxu0
  %v2412 = vadd.f32 %v2340, %v2411
  %v2413 = vpop.f32.mrb[0].mxu0
  %2414 = vdwg.mxu0
  %vm2415 = vcmask 7168
  %2416 = vst.msk [vmem:[%s14] sm:$0xff] %vm2415, %v2412
  // Predicated region
  $region58: #{causal_finetune_head.1} parent=0 // pred_check
    _
  $region59: #{causal_finetune_head.1} parent=0 // pred_check_branch
    %2418 = sbr.rel (0) target = $region61
  $region60: #{causal_finetune_head.1} parent=0 // pred_region
    _
  $region61: #{causal_finetune_head.1} parent=0 // pred_fallthru
    _
  // Predicated region
  $region62: #{causal_finetune_head.1} parent=0 // pred_check
    _
  $region63: #{causal_finetune_head.1} parent=0 // pred_check_branch
    %2420 = sbr.rel (0) target = $region65
  $region64: #{causal_finetune_head.1} parent=0 // pred_region
    _
  $region65: #{causal_finetune_head.1} parent=0 // pred_fallthru
    _

</llo_original>
